<compile_context>
chip_gen: v6e
topology: v6e:2x2x1
jax: 0.10.0
libtpu: 0.0.40
codegen_flags: <defaults>
</compile_context>

<pallas_src>
import jax
import jax.numpy as jnp
from jax.experimental import pallas as pl
from jax.experimental.pallas import tpu as pltpu

# ----------------------------- configuration -------------------------------
B, S, C_IN = 2, 8, 4            # batch, seq_len, in_channels
D_MODEL, N_HEAD = 32, 4
D_FF, N_LAYERS = 64, 2
HEAD_DIM = D_MODEL // N_HEAD
LN_EPS = 1e-5
N_OUT = 2
ROWS = B * S                    # batch flattened into rows
OUT_PAD = 128                   # lane-dense padded output width


# ------------------------------ kernel helpers -----------------------------
def _layernorm(x, w, b):
    mu = jnp.mean(x, axis=-1, keepdims=True)
    var = jnp.mean((x - mu) ** 2, axis=-1, keepdims=True)
    return (x - mu) * jax.lax.rsqrt(var + LN_EPS) * w + b


def _softmax(s):
    m = jnp.max(s, axis=-1, keepdims=True)
    e = jnp.exp(s - m)
    # divide on the EUP slot instead of VPU divide sequences
    return e * pl.reciprocal(jnp.sum(e, axis=-1, keepdims=True), approx=True)


# ------------------------------- the kernel --------------------------------
def percepformer_kernel(x_ref, mask_ref, emb_w_ref, emb_b_ref, pe_ref,
                        wqkv_ref, bqkv_ref, wo_ref, bo_ref,
                        ln1w_ref, ln1b_ref, ln2w_ref, ln2b_ref,
                        f1w_ref, f1b_ref, f2w_ref, f2b_ref,
                        outw_ref, outb_ref,
                        o_ref):
    x = x_ref[...]                                            # (ROWS, C_IN)
    mask = mask_ref[...]                                      # (ROWS, ROWS) block-diag

    # Embedding (Linear, pre-transposed weight) + positional encoding.
    # TODO(synk): EmbeddingLayer assumed to be a plain Linear (no sqrt(d_model) scale).
    h = jnp.dot(x, emb_w_ref[...],
                preferred_element_type=jnp.float32) + emb_b_ref[...]
    h = h + pe_ref[...]                                       # (ROWS, D_MODEL)

    for l in range(N_LAYERS):                                 # static unroll
        # ---- fused QKV projection: one (ROWS, D) @ (D, 3D) matmul ----
        qkv = jnp.dot(h, wqkv_ref[l],
                      preferred_element_type=jnp.float32) + bqkv_ref[l]
        wo_l = wo_ref[l]                                      # (D, D), rows = head-concat dim

        # ---- per-head attention, batch merged via block-diagonal mask ----
        # attention scale 1/sqrt(HEAD_DIM) is folded into Wq / bq on the host.
        attn = jnp.zeros((ROWS, D_MODEL), jnp.float32)
        for hh in range(N_HEAD):                              # static unroll
            qc = slice(hh * HEAD_DIM, (hh + 1) * HEAD_DIM)
            kc = slice(D_MODEL + hh * HEAD_DIM, D_MODEL + (hh + 1) * HEAD_DIM)
            vc = slice(2 * D_MODEL + hh * HEAD_DIM, 2 * D_MODEL + (hh + 1) * HEAD_DIM)
            qs = qkv[:, qc]                                   # (ROWS, HEAD_DIM)
            ks = qkv[:, kc]
            vs = qkv[:, vc]
            s = jnp.einsum('qd,kd->qk', qs, ks,
                           preferred_element_type=jnp.float32) + mask
            p = _softmax(s)                                   # (ROWS, ROWS)
            pv = jnp.dot(p, vs, preferred_element_type=jnp.float32)
            # fold Wo per head: accumulate lane-dense (ROWS, D_MODEL) value
            attn = attn + jnp.dot(pv,
                                  wo_l[hh * HEAD_DIM:(hh + 1) * HEAD_DIM, :],
                                  preferred_element_type=jnp.float32)
        attn = attn + bo_ref[l]

        # ---- residual + LayerNorm 1 (post-norm) ----
        h = _layernorm(h + attn, ln1w_ref[l], ln1b_ref[l])

        # ---- feed-forward (ReLU) ----
        ff = jnp.dot(h, f1w_ref[l],
                     preferred_element_type=jnp.float32) + f1b_ref[l]
        ff = jnp.maximum(ff, 0.0)
        ff = jnp.dot(ff, f2w_ref[l],
                     preferred_element_type=jnp.float32) + f2b_ref[l]

        # ---- residual + LayerNorm 2 ----
        h = _layernorm(h + ff, ln2w_ref[l], ln2b_ref[l])

    # Output projection, lane-dense (weight zero-padded to 128 columns on host)
    out = jnp.dot(h, outw_ref[...],
                  preferred_element_type=jnp.float32) + outb_ref[...]
    o_ref[...] = out.astype(o_ref.dtype)                      # (ROWS, OUT_PAD)


# ------------------------------ host wrapper --------------------------------
def percepformer_forward(x, weights):
    x2 = x.reshape(ROWS, C_IN)

    # Block-diagonal additive mask: rows of different batches never attend.
    row_b = jnp.repeat(jnp.arange(B, dtype=jnp.int32), S)
    mask = jnp.where(row_b[:, None] == row_b[None, :], 0.0, -1e9).astype(jnp.float32)

    def full_spec(a):
        nd = a.ndim
        return pl.BlockSpec(a.shape, lambda i, _nd=nd: (0,) * _nd)

    inputs = [x2, mask] + list(weights)
    in_specs = [full_spec(a) for a in inputs]
    out_spec = pl.BlockSpec((ROWS, OUT_PAD), lambda i: (0, 0))

    # Advisory cost estimate for the XLA scheduler around the custom call.
    flops = 2 * ROWS * C_IN * D_MODEL
    per_layer = (2 * ROWS * D_MODEL * (3 * D_MODEL)                     # QKV
                 + N_HEAD * (2 * 2 * ROWS * ROWS * HEAD_DIM             # scores + PV
                             + 2 * ROWS * HEAD_DIM * D_MODEL)           # per-head Wo
                 + 2 * 2 * ROWS * D_MODEL * D_FF)                       # FFN
    flops += N_LAYERS * per_layer + 2 * ROWS * D_MODEL * OUT_PAD
    transcendentals = N_LAYERS * N_HEAD * ROWS * ROWS                   # softmax exp
    bytes_accessed = sum(int(a.size) * a.dtype.itemsize for a in inputs)
    bytes_accessed += ROWS * OUT_PAD * 4

    out = pl.pallas_call(
        percepformer_kernel,
        out_shape=jax.ShapeDtypeStruct((ROWS, OUT_PAD), jnp.float32),
        grid_spec=pltpu.PrefetchScalarGridSpec(
            num_scalar_prefetch=0,
            grid=(1,),
            in_specs=in_specs,
            out_specs=out_spec,
        ),
        compiler_params=pltpu.CompilerParams(
            dimension_semantics=("arbitrary",)),
        cost_estimate=pl.CostEstimate(flops=flops,
                                      transcendentals=transcendentals,
                                      bytes_accessed=bytes_accessed),
    )(*inputs)
    return out[:, :N_OUT].reshape(B, S, N_OUT)


# --------------------------- parameter construction -------------------------
def make_positional_encoding(seq_len, d_model):
    pos = jnp.arange(seq_len, dtype=jnp.float32)[:, None]
    i = jnp.arange(0, d_model, 2, dtype=jnp.float32)[None, :]
    div = jnp.exp(-(jnp.log(10000.0)) * i / d_model)
    pe = jnp.zeros((seq_len, d_model), jnp.float32)
    pe = pe.at[:, 0::2].set(jnp.sin(pos * div))
    pe = pe.at[:, 1::2].set(jnp.cos(pos * div))
    return pe


def init_params(key):
    """Init in PyTorch (out_features, in_features) convention, then apply
    one-time host-side layout transforms for the kernel."""
    ks = jax.random.split(key, 32)
    ki = iter(ks)

    def u(shape, scale=0.1):
        return (jax.random.uniform(next(ki), shape, jnp.float32) - 0.5) * 2 * scale

    # --- PyTorch-convention params ---
    emb_w = u((D_MODEL, C_IN))
    emb_b = u((D_MODEL,))
    pe = make_positional_encoding(S, D_MODEL)

    inw = u((N_LAYERS, 3 * D_MODEL, D_MODEL))   # MHA in_proj_weight
    inb = u((N_LAYERS, 3 * D_MODEL))            # MHA in_proj_bias
    ow = u((N_LAYERS, D_MODEL, D_MODEL))        # MHA out_proj.weight
    ob = u((N_LAYERS, D_MODEL))
    ln1w = jnp.ones((N_LAYERS, D_MODEL), jnp.float32)
    ln1b = jnp.zeros((N_LAYERS, D_MODEL), jnp.float32)
    ln2w = jnp.ones((N_LAYERS, D_MODEL), jnp.float32)
    ln2b = jnp.zeros((N_LAYERS, D_MODEL), jnp.float32)
    f1w = u((N_LAYERS, D_FF, D_MODEL))
    f1b = u((N_LAYERS, D_FF))
    f2w = u((N_LAYERS, D_MODEL, D_FF))
    f2b = u((N_LAYERS, D_MODEL))
    outw = u((N_OUT, D_MODEL))
    outb = u((N_OUT,))

    # --- host-side one-time transforms (pre-transpose, fuse scale, tile PE,
    #     zero-pad output projection to 128 lanes) ---
    scale = 1.0 / (HEAD_DIM ** 0.5)

    emb_w_t = emb_w.T                                   # (C_IN, D_MODEL)
    emb_b2 = emb_b.reshape(1, D_MODEL)
    pe_full = jnp.tile(pe, (B, 1))                      # (ROWS, D_MODEL)

    wqkv_t = jnp.transpose(inw, (0, 2, 1))              # (L, D, 3D)
    wqkv_t = wqkv_t.at[:, :, :D_MODEL].multiply(scale)  # fold attn scale into Wq
    bqkv = inb.reshape(N_LAYERS, 1, 3 * D_MODEL)
    bqkv = bqkv.at[:, :, :D_MODEL].multiply(scale)      # and into bq

    wo_t = jnp.transpose(ow, (0, 2, 1))                 # (L, D, D) rows = head-concat dim
    bo2 = ob.reshape(N_LAYERS, 1, D_MODEL)
    ln1w2 = ln1w.reshape(N_LAYERS, 1, D_MODEL)
    ln1b2 = ln1b.reshape(N_LAYERS, 1, D_MODEL)
    ln2w2 = ln2w.reshape(N_LAYERS, 1, D_MODEL)
    ln2b2 = ln2b.reshape(N_LAYERS, 1, D_MODEL)
    f1w_t = jnp.transpose(f1w, (0, 2, 1))               # (L, D, D_FF)
    f1b2 = f1b.reshape(N_LAYERS, 1, D_FF)
    f2w_t = jnp.transpose(f2w, (0, 2, 1))               # (L, D_FF, D)
    f2b2 = f2b.reshape(N_LAYERS, 1, D_MODEL)
    outw_t = jnp.zeros((D_MODEL, OUT_PAD), jnp.float32).at[:, :N_OUT].set(outw.T)
    outb2 = jnp.zeros((1, OUT_PAD), jnp.float32).at[:, :N_OUT].set(outb)

    return [emb_w_t, emb_b2, pe_full, wqkv_t, bqkv, wo_t, bo2,
            ln1w2, ln1b2, ln2w2, ln2b2, f1w_t, f1b2, f2w_t, f2b2,
            outw_t, outb2]


# ----------------------------------- main ------------------------------------
if __name__ == "__main__":
    key = jax.random.PRNGKey(0)
    kx, kp = jax.random.split(key)
    x = jax.random.normal(kx, (B, S, C_IN), jnp.float32)
    params = init_params(kp)

    out = percepformer_forward(x, params)
    out = jax.block_until_ready(out)
    assert out.shape == (B, S, N_OUT), out.shape
    assert jnp.all(jnp.isfinite(out))
    print("KERNEL_OK")
</pallas_src>

<mosaic_0001>
module attributes {stable_mosaic.version = 11 : i64} {
  func.func @percepformer_kernel(%arg0: i32, %arg1: memref<16x4xf32, #tpu.memory_space<vmem>>, %arg2: memref<16x16xf32, #tpu.memory_space<vmem>>, %arg3: memref<4x32xf32, #tpu.memory_space<vmem>>, %arg4: memref<1x32xf32, #tpu.memory_space<vmem>>, %arg5: memref<16x32xf32, #tpu.memory_space<vmem>>, %arg6: memref<2x32x96xf32, #tpu.memory_space<vmem>>, %arg7: memref<2x1x96xf32, #tpu.memory_space<vmem>>, %arg8: memref<2x32x32xf32, #tpu.memory_space<vmem>>, %arg9: memref<2x1x32xf32, #tpu.memory_space<vmem>>, %arg10: memref<2x1x32xf32, #tpu.memory_space<vmem>>, %arg11: memref<2x1x32xf32, #tpu.memory_space<vmem>>, %arg12: memref<2x1x32xf32, #tpu.memory_space<vmem>>, %arg13: memref<2x1x32xf32, #tpu.memory_space<vmem>>, %arg14: memref<2x32x64xf32, #tpu.memory_space<vmem>>, %arg15: memref<2x1x64xf32, #tpu.memory_space<vmem>>, %arg16: memref<2x64x32xf32, #tpu.memory_space<vmem>>, %arg17: memref<2x1x32xf32, #tpu.memory_space<vmem>>, %arg18: memref<32x128xf32, #tpu.memory_space<vmem>>, %arg19: memref<1x128xf32, #tpu.memory_space<vmem>>, %arg20: memref<16x128xf32, #tpu.memory_space<vmem>>) attributes {dimension_semantics = [#tpu.dimension_semantics<arbitrary>], iteration_bounds = array<i64: 1>, scalar_prefetch = 0 : i64, scratch_operands = 0 : i64, tpu.core_type = #tpu.core_type<tc>, window_params = [{pipeline_mode = #tpu.pipeline_mode<synchronous>, transform_indices = @transform_0, window_bounds = array<i64: 16, 4>}, {pipeline_mode = #tpu.pipeline_mode<synchronous>, transform_indices = @transform_1, window_bounds = array<i64: 16, 16>}, {pipeline_mode = #tpu.pipeline_mode<synchronous>, transform_indices = @transform_2, window_bounds = array<i64: 4, 32>}, {pipeline_mode = #tpu.pipeline_mode<synchronous>, transform_indices = @transform_3, window_bounds = array<i64: 1, 32>}, {pipeline_mode = #tpu.pipeline_mode<synchronous>, transform_indices = @transform_4, window_bounds = array<i64: 16, 32>}, {pipeline_mode = #tpu.pipeline_mode<synchronous>, transform_indices = @transform_5, window_bounds = array<i64: 2, 32, 96>}, {pipeline_mode = #tpu.pipeline_mode<synchronous>, transform_indices = @transform_6, window_bounds = array<i64: 2, 1, 96>}, {pipeline_mode = #tpu.pipeline_mode<synchronous>, transform_indices = @transform_7, window_bounds = array<i64: 2, 32, 32>}, {pipeline_mode = #tpu.pipeline_mode<synchronous>, transform_indices = @transform_8, window_bounds = array<i64: 2, 1, 32>}, {pipeline_mode = #tpu.pipeline_mode<synchronous>, transform_indices = @transform_9, window_bounds = array<i64: 2, 1, 32>}, {pipeline_mode = #tpu.pipeline_mode<synchronous>, transform_indices = @transform_10, window_bounds = array<i64: 2, 1, 32>}, {pipeline_mode = #tpu.pipeline_mode<synchronous>, transform_indices = @transform_11, window_bounds = array<i64: 2, 1, 32>}, {pipeline_mode = #tpu.pipeline_mode<synchronous>, transform_indices = @transform_12, window_bounds = array<i64: 2, 1, 32>}, {pipeline_mode = #tpu.pipeline_mode<synchronous>, transform_indices = @transform_13, window_bounds = array<i64: 2, 32, 64>}, {pipeline_mode = #tpu.pipeline_mode<synchronous>, transform_indices = @transform_14, window_bounds = array<i64: 2, 1, 64>}, {pipeline_mode = #tpu.pipeline_mode<synchronous>, transform_indices = @transform_15, window_bounds = array<i64: 2, 64, 32>}, {pipeline_mode = #tpu.pipeline_mode<synchronous>, transform_indices = @transform_16, window_bounds = array<i64: 2, 1, 32>}, {pipeline_mode = #tpu.pipeline_mode<synchronous>, transform_indices = @transform_17, window_bounds = array<i64: 32, 128>}, {pipeline_mode = #tpu.pipeline_mode<synchronous>, transform_indices = @transform_18, window_bounds = array<i64: 1, 128>}, {pipeline_mode = #tpu.pipeline_mode<synchronous>, transform_indices = @transform_19, window_bounds = array<i64: 16, 128>}]} {
    %c0 = arith.constant 0 : index
    %c0_0 = arith.constant 0 : index
    %0 = vector.load %arg1[%c0, %c0_0] : memref<16x4xf32, #tpu.memory_space<vmem>>, vector<16x4xf32>
    %c0_1 = arith.constant 0 : index
    %c0_2 = arith.constant 0 : index
    %1 = vector.load %arg2[%c0_1, %c0_2] : memref<16x16xf32, #tpu.memory_space<vmem>>, vector<16x16xf32>
    %c0_3 = arith.constant 0 : index
    %c0_4 = arith.constant 0 : index
    %2 = vector.load %arg3[%c0_3, %c0_4] : memref<4x32xf32, #tpu.memory_space<vmem>>, vector<4x32xf32>
    %cst = arith.constant dense<0.000000e+00> : vector<16x32xf32>
    %3 = tpu.matmul %0, %2, %cst {dimension_numbers = #tpu.dot_dimension_numbers<[1], [0], [0], [1], [0, 0, 1, 1], [], []>} : vector<16x4xf32>, vector<4x32xf32>, vector<16x32xf32> -> vector<16x32xf32>
    %c0_5 = arith.constant 0 : index
    %c0_6 = arith.constant 0 : index
    %4 = vector.load %arg4[%c0_5, %c0_6] : memref<1x32xf32, #tpu.memory_space<vmem>>, vector<1x32xf32>
    %5 = vector.broadcast %4 : vector<1x32xf32> to vector<16x32xf32>
    %6 = arith.addf %3, %5 : vector<16x32xf32>
    %c0_7 = arith.constant 0 : index
    %c0_8 = arith.constant 0 : index
    %7 = vector.load %arg5[%c0_7, %c0_8] : memref<16x32xf32, #tpu.memory_space<vmem>>, vector<16x32xf32>
    %8 = arith.addf %6, %7 : vector<16x32xf32>
    %c0_9 = arith.constant 0 : index
    %c0_10 = arith.constant 0 : index
    %c0_11 = arith.constant 0 : index
    %9 = vector.load %arg6[%c0_9, %c0_10, %c0_11] : memref<2x32x96xf32, #tpu.memory_space<vmem>>, vector<1x32x96xf32>
    %10 = vector.shape_cast %9 : vector<1x32x96xf32> to vector<32x96xf32>
    %cst_12 = arith.constant dense<0.000000e+00> : vector<16x96xf32>
    %11 = tpu.matmul %8, %10, %cst_12 {dimension_numbers = #tpu.dot_dimension_numbers<[1], [0], [0], [1], [0, 0, 1, 1], [], []>} : vector<16x32xf32>, vector<32x96xf32>, vector<16x96xf32> -> vector<16x96xf32>
    %c0_13 = arith.constant 0 : index
    %c0_14 = arith.constant 0 : index
    %c0_15 = arith.constant 0 : index
    %12 = vector.load %arg7[%c0_13, %c0_14, %c0_15] : memref<2x1x96xf32, #tpu.memory_space<vmem>>, vector<1x1x96xf32>
    %13 = vector.shape_cast %12 : vector<1x1x96xf32> to vector<1x96xf32>
    %14 = vector.broadcast %13 : vector<1x96xf32> to vector<16x96xf32>
    %15 = arith.addf %11, %14 : vector<16x96xf32>
    %c0_16 = arith.constant 0 : index
    %c0_17 = arith.constant 0 : index
    %c0_18 = arith.constant 0 : index
    %16 = vector.load %arg8[%c0_16, %c0_17, %c0_18] : memref<2x32x32xf32, #tpu.memory_space<vmem>>, vector<1x32x32xf32>
    %17 = vector.shape_cast %16 : vector<1x32x32xf32> to vector<32x32xf32>
    %cst_19 = arith.constant 0.000000e+00 : f32
    %18 = vector.broadcast %cst_19 : f32 to vector<16x32xf32>
    %19 = vector.extract_strided_slice %15 {offsets = [0, 0], sizes = [16, 8], strides = [1, 1]} : vector<16x96xf32> to vector<16x8xf32>
    %20 = vector.extract_strided_slice %15 {offsets = [0, 32], sizes = [16, 8], strides = [1, 1]} : vector<16x96xf32> to vector<16x8xf32>
    %21 = vector.extract_strided_slice %15 {offsets = [0, 64], sizes = [16, 8], strides = [1, 1]} : vector<16x96xf32> to vector<16x8xf32>
    "tpu.trace_start"() <{level = 10 : i32, message = "qd,kd->qk"}> : () -> ()
    %cst_20 = arith.constant dense<0.000000e+00> : vector<16x16xf32>
    %22 = tpu.matmul %19, %20, %cst_20 {dimension_numbers = #tpu.dot_dimension_numbers<[1], [1], [0], [0], [0, 0, 1, 0], [], []>} : vector<16x8xf32>, vector<16x8xf32>, vector<16x16xf32> -> vector<16x16xf32>
    "tpu.trace_stop"() : () -> ()
    %23 = arith.addf %22, %1 : vector<16x16xf32>
    %cst_21 = arith.constant dense<0xFF800000> : vector<16xf32>
    %24 = vector.multi_reduction <maximumf>, %23, %cst_21 [1] : vector<16x16xf32> to vector<16xf32>
    %25 = vector.shape_cast %24 : vector<16xf32> to vector<16x1xf32>
    %26 = vector.broadcast %25 : vector<16x1xf32> to vector<16x16xf32>
    %27 = arith.subf %23, %26 : vector<16x16xf32>
    %28 = math.exp %27 : vector<16x16xf32>
    %cst_22 = arith.constant dense<0.000000e+00> : vector<16xf32>
    %29 = vector.multi_reduction <add>, %28, %cst_22 [1] : vector<16x16xf32> to vector<16xf32>
    %30 = vector.shape_cast %29 : vector<16xf32> to vector<16x1xf32>
    %31 = tpu.reciprocal %30 {approx = true} : vector<16x1xf32> -> vector<16x1xf32>
    %32 = vector.broadcast %31 : vector<16x1xf32> to vector<16x16xf32>
    %33 = arith.mulf %28, %32 : vector<16x16xf32>
    %cst_23 = arith.constant dense<0.000000e+00> : vector<16x8xf32>
    %34 = tpu.matmul %33, %21, %cst_23 {dimension_numbers = #tpu.dot_dimension_numbers<[1], [0], [0], [1], [0, 0, 1, 1], [], []>} : vector<16x16xf32>, vector<16x8xf32>, vector<16x8xf32> -> vector<16x8xf32>
    %35 = vector.extract_strided_slice %17 {offsets = [0, 0], sizes = [8, 32], strides = [1, 1]} : vector<32x32xf32> to vector<8x32xf32>
    %cst_24 = arith.constant dense<0.000000e+00> : vector<16x32xf32>
    %36 = tpu.matmul %34, %35, %cst_24 {dimension_numbers = #tpu.dot_dimension_numbers<[1], [0], [0], [1], [0, 0, 1, 1], [], []>} : vector<16x8xf32>, vector<8x32xf32>, vector<16x32xf32> -> vector<16x32xf32>
    %37 = arith.addf %18, %36 : vector<16x32xf32>
    %38 = vector.extract_strided_slice %15 {offsets = [0, 8], sizes = [16, 8], strides = [1, 1]} : vector<16x96xf32> to vector<16x8xf32>
    %39 = vector.extract_strided_slice %15 {offsets = [0, 40], sizes = [16, 8], strides = [1, 1]} : vector<16x96xf32> to vector<16x8xf32>
    %40 = vector.extract_strided_slice %15 {offsets = [0, 72], sizes = [16, 8], strides = [1, 1]} : vector<16x96xf32> to vector<16x8xf32>
    "tpu.trace_start"() <{level = 10 : i32, message = "qd,kd->qk"}> : () -> ()
    %cst_25 = arith.constant dense<0.000000e+00> : vector<16x16xf32>
    %41 = tpu.matmul %38, %39, %cst_25 {dimension_numbers = #tpu.dot_dimension_numbers<[1], [1], [0], [0], [0, 0, 1, 0], [], []>} : vector<16x8xf32>, vector<16x8xf32>, vector<16x16xf32> -> vector<16x16xf32>
    "tpu.trace_stop"() : () -> ()
    %42 = arith.addf %41, %1 : vector<16x16xf32>
    %cst_26 = arith.constant dense<0xFF800000> : vector<16xf32>
    %43 = vector.multi_reduction <maximumf>, %42, %cst_26 [1] : vector<16x16xf32> to vector<16xf32>
    %44 = vector.shape_cast %43 : vector<16xf32> to vector<16x1xf32>
    %45 = vector.broadcast %44 : vector<16x1xf32> to vector<16x16xf32>
    %46 = arith.subf %42, %45 : vector<16x16xf32>
    %47 = math.exp %46 : vector<16x16xf32>
    %cst_27 = arith.constant dense<0.000000e+00> : vector<16xf32>
    %48 = vector.multi_reduction <add>, %47, %cst_27 [1] : vector<16x16xf32> to vector<16xf32>
    %49 = vector.shape_cast %48 : vector<16xf32> to vector<16x1xf32>
    %50 = tpu.reciprocal %49 {approx = true} : vector<16x1xf32> -> vector<16x1xf32>
    %51 = vector.broadcast %50 : vector<16x1xf32> to vector<16x16xf32>
    %52 = arith.mulf %47, %51 : vector<16x16xf32>
    %cst_28 = arith.constant dense<0.000000e+00> : vector<16x8xf32>
    %53 = tpu.matmul %52, %40, %cst_28 {dimension_numbers = #tpu.dot_dimension_numbers<[1], [0], [0], [1], [0, 0, 1, 1], [], []>} : vector<16x16xf32>, vector<16x8xf32>, vector<16x8xf32> -> vector<16x8xf32>
    %54 = vector.extract_strided_slice %17 {offsets = [8, 0], sizes = [8, 32], strides = [1, 1]} : vector<32x32xf32> to vector<8x32xf32>
    %cst_29 = arith.constant dense<0.000000e+00> : vector<16x32xf32>
    %55 = tpu.matmul %53, %54, %cst_29 {dimension_numbers = #tpu.dot_dimension_numbers<[1], [0], [0], [1], [0, 0, 1, 1], [], []>} : vector<16x8xf32>, vector<8x32xf32>, vector<16x32xf32> -> vector<16x32xf32>
    %56 = arith.addf %37, %55 : vector<16x32xf32>
    %57 = vector.extract_strided_slice %15 {offsets = [0, 16], sizes = [16, 8], strides = [1, 1]} : vector<16x96xf32> to vector<16x8xf32>
    %58 = vector.extract_strided_slice %15 {offsets = [0, 48], sizes = [16, 8], strides = [1, 1]} : vector<16x96xf32> to vector<16x8xf32>
    %59 = vector.extract_strided_slice %15 {offsets = [0, 80], sizes = [16, 8], strides = [1, 1]} : vector<16x96xf32> to vector<16x8xf32>
    "tpu.trace_start"() <{level = 10 : i32, message = "qd,kd->qk"}> : () -> ()
    %cst_30 = arith.constant dense<0.000000e+00> : vector<16x16xf32>
    %60 = tpu.matmul %57, %58, %cst_30 {dimension_numbers = #tpu.dot_dimension_numbers<[1], [1], [0], [0], [0, 0, 1, 0], [], []>} : vector<16x8xf32>, vector<16x8xf32>, vector<16x16xf32> -> vector<16x16xf32>
    "tpu.trace_stop"() : () -> ()
    %61 = arith.addf %60, %1 : vector<16x16xf32>
    %cst_31 = arith.constant dense<0xFF800000> : vector<16xf32>
    %62 = vector.multi_reduction <maximumf>, %61, %cst_31 [1] : vector<16x16xf32> to vector<16xf32>
    %63 = vector.shape_cast %62 : vector<16xf32> to vector<16x1xf32>
    %64 = vector.broadcast %63 : vector<16x1xf32> to vector<16x16xf32>
    %65 = arith.subf %61, %64 : vector<16x16xf32>
    %66 = math.exp %65 : vector<16x16xf32>
    %cst_32 = arith.constant dense<0.000000e+00> : vector<16xf32>
    %67 = vector.multi_reduction <add>, %66, %cst_32 [1] : vector<16x16xf32> to vector<16xf32>
    %68 = vector.shape_cast %67 : vector<16xf32> to vector<16x1xf32>
    %69 = tpu.reciprocal %68 {approx = true} : vector<16x1xf32> -> vector<16x1xf32>
    %70 = vector.broadcast %69 : vector<16x1xf32> to vector<16x16xf32>
    %71 = arith.mulf %66, %70 : vector<16x16xf32>
    %cst_33 = arith.constant dense<0.000000e+00> : vector<16x8xf32>
    %72 = tpu.matmul %71, %59, %cst_33 {dimension_numbers = #tpu.dot_dimension_numbers<[1], [0], [0], [1], [0, 0, 1, 1], [], []>} : vector<16x16xf32>, vector<16x8xf32>, vector<16x8xf32> -> vector<16x8xf32>
    %73 = vector.extract_strided_slice %17 {offsets = [16, 0], sizes = [8, 32], strides = [1, 1]} : vector<32x32xf32> to vector<8x32xf32>
    %cst_34 = arith.constant dense<0.000000e+00> : vector<16x32xf32>
    %74 = tpu.matmul %72, %73, %cst_34 {dimension_numbers = #tpu.dot_dimension_numbers<[1], [0], [0], [1], [0, 0, 1, 1], [], []>} : vector<16x8xf32>, vector<8x32xf32>, vector<16x32xf32> -> vector<16x32xf32>
    %75 = arith.addf %56, %74 : vector<16x32xf32>
    %76 = vector.extract_strided_slice %15 {offsets = [0, 24], sizes = [16, 8], strides = [1, 1]} : vector<16x96xf32> to vector<16x8xf32>
    %77 = vector.extract_strided_slice %15 {offsets = [0, 56], sizes = [16, 8], strides = [1, 1]} : vector<16x96xf32> to vector<16x8xf32>
    %78 = vector.extract_strided_slice %15 {offsets = [0, 88], sizes = [16, 8], strides = [1, 1]} : vector<16x96xf32> to vector<16x8xf32>
    "tpu.trace_start"() <{level = 10 : i32, message = "qd,kd->qk"}> : () -> ()
    %cst_35 = arith.constant dense<0.000000e+00> : vector<16x16xf32>
    %79 = tpu.matmul %76, %77, %cst_35 {dimension_numbers = #tpu.dot_dimension_numbers<[1], [1], [0], [0], [0, 0, 1, 0], [], []>} : vector<16x8xf32>, vector<16x8xf32>, vector<16x16xf32> -> vector<16x16xf32>
    "tpu.trace_stop"() : () -> ()
    %80 = arith.addf %79, %1 : vector<16x16xf32>
    %cst_36 = arith.constant dense<0xFF800000> : vector<16xf32>
    %81 = vector.multi_reduction <maximumf>, %80, %cst_36 [1] : vector<16x16xf32> to vector<16xf32>
    %82 = vector.shape_cast %81 : vector<16xf32> to vector<16x1xf32>
    %83 = vector.broadcast %82 : vector<16x1xf32> to vector<16x16xf32>
    %84 = arith.subf %80, %83 : vector<16x16xf32>
    %85 = math.exp %84 : vector<16x16xf32>
    %cst_37 = arith.constant dense<0.000000e+00> : vector<16xf32>
    %86 = vector.multi_reduction <add>, %85, %cst_37 [1] : vector<16x16xf32> to vector<16xf32>
    %87 = vector.shape_cast %86 : vector<16xf32> to vector<16x1xf32>
    %88 = tpu.reciprocal %87 {approx = true} : vector<16x1xf32> -> vector<16x1xf32>
    %89 = vector.broadcast %88 : vector<16x1xf32> to vector<16x16xf32>
    %90 = arith.mulf %85, %89 : vector<16x16xf32>
    %cst_38 = arith.constant dense<0.000000e+00> : vector<16x8xf32>
    %91 = tpu.matmul %90, %78, %cst_38 {dimension_numbers = #tpu.dot_dimension_numbers<[1], [0], [0], [1], [0, 0, 1, 1], [], []>} : vector<16x16xf32>, vector<16x8xf32>, vector<16x8xf32> -> vector<16x8xf32>
    %92 = vector.extract_strided_slice %17 {offsets = [24, 0], sizes = [8, 32], strides = [1, 1]} : vector<32x32xf32> to vector<8x32xf32>
    %cst_39 = arith.constant dense<0.000000e+00> : vector<16x32xf32>
    %93 = tpu.matmul %91, %92, %cst_39 {dimension_numbers = #tpu.dot_dimension_numbers<[1], [0], [0], [1], [0, 0, 1, 1], [], []>} : vector<16x8xf32>, vector<8x32xf32>, vector<16x32xf32> -> vector<16x32xf32>
    %94 = arith.addf %75, %93 : vector<16x32xf32>
    %c0_40 = arith.constant 0 : index
    %c0_41 = arith.constant 0 : index
    %c0_42 = arith.constant 0 : index
    %95 = vector.load %arg9[%c0_40, %c0_41, %c0_42] : memref<2x1x32xf32, #tpu.memory_space<vmem>>, vector<1x1x32xf32>
    %96 = vector.shape_cast %95 : vector<1x1x32xf32> to vector<1x32xf32>
    %97 = vector.broadcast %96 : vector<1x32xf32> to vector<16x32xf32>
    %98 = arith.addf %94, %97 : vector<16x32xf32>
    %99 = arith.addf %8, %98 : vector<16x32xf32>
    %c0_43 = arith.constant 0 : index
    %c0_44 = arith.constant 0 : index
    %c0_45 = arith.constant 0 : index
    %100 = vector.load %arg10[%c0_43, %c0_44, %c0_45] : memref<2x1x32xf32, #tpu.memory_space<vmem>>, vector<1x1x32xf32>
    %101 = vector.shape_cast %100 : vector<1x1x32xf32> to vector<1x32xf32>
    %c0_46 = arith.constant 0 : index
    %c0_47 = arith.constant 0 : index
    %c0_48 = arith.constant 0 : index
    %102 = vector.load %arg11[%c0_46, %c0_47, %c0_48] : memref<2x1x32xf32, #tpu.memory_space<vmem>>, vector<1x1x32xf32>
    %103 = vector.shape_cast %102 : vector<1x1x32xf32> to vector<1x32xf32>
    %cst_49 = arith.constant dense<0.000000e+00> : vector<16xf32>
    %104 = vector.multi_reduction <add>, %99, %cst_49 [1] : vector<16x32xf32> to vector<16xf32>
    %105 = vector.shape_cast %104 : vector<16xf32> to vector<16x1xf32>
    %cst_50 = arith.constant 3.200000e+01 : f32
    %106 = vector.broadcast %cst_50 : f32 to vector<16x1xf32>
    %107 = arith.divf %105, %106 : vector<16x1xf32>
    %108 = vector.broadcast %107 : vector<16x1xf32> to vector<16x32xf32>
    %109 = arith.subf %99, %108 : vector<16x32xf32>
    %110 = arith.mulf %109, %109 : vector<16x32xf32>
    %cst_51 = arith.constant dense<0.000000e+00> : vector<16xf32>
    %111 = vector.multi_reduction <add>, %110, %cst_51 [1] : vector<16x32xf32> to vector<16xf32>
    %112 = vector.shape_cast %111 : vector<16xf32> to vector<16x1xf32>
    %cst_52 = arith.constant 3.200000e+01 : f32
    %113 = vector.broadcast %cst_52 : f32 to vector<16x1xf32>
    %114 = arith.divf %112, %113 : vector<16x1xf32>
    %115 = vector.broadcast %107 : vector<16x1xf32> to vector<16x32xf32>
    %116 = arith.subf %99, %115 : vector<16x32xf32>
    %cst_53 = arith.constant 9.99999974E-6 : f32
    %117 = vector.broadcast %cst_53 : f32 to vector<16x1xf32>
    %118 = arith.addf %114, %117 : vector<16x1xf32>
    %119 = math.rsqrt %118 : vector<16x1xf32>
    %120 = vector.broadcast %119 : vector<16x1xf32> to vector<16x32xf32>
    %121 = arith.mulf %116, %120 : vector<16x32xf32>
    %122 = vector.broadcast %101 : vector<1x32xf32> to vector<16x32xf32>
    %123 = arith.mulf %121, %122 : vector<16x32xf32>
    %124 = vector.broadcast %103 : vector<1x32xf32> to vector<16x32xf32>
    %125 = arith.addf %123, %124 : vector<16x32xf32>
    %c0_54 = arith.constant 0 : index
    %c0_55 = arith.constant 0 : index
    %c0_56 = arith.constant 0 : index
    %126 = vector.load %arg14[%c0_54, %c0_55, %c0_56] : memref<2x32x64xf32, #tpu.memory_space<vmem>>, vector<1x32x64xf32>
    %127 = vector.shape_cast %126 : vector<1x32x64xf32> to vector<32x64xf32>
    %cst_57 = arith.constant dense<0.000000e+00> : vector<16x64xf32>
    %128 = tpu.matmul %125, %127, %cst_57 {dimension_numbers = #tpu.dot_dimension_numbers<[1], [0], [0], [1], [0, 0, 1, 1], [], []>} : vector<16x32xf32>, vector<32x64xf32>, vector<16x64xf32> -> vector<16x64xf32>
    %c0_58 = arith.constant 0 : index
    %c0_59 = arith.constant 0 : index
    %c0_60 = arith.constant 0 : index
    %129 = vector.load %arg15[%c0_58, %c0_59, %c0_60] : memref<2x1x64xf32, #tpu.memory_space<vmem>>, vector<1x1x64xf32>
    %130 = vector.shape_cast %129 : vector<1x1x64xf32> to vector<1x64xf32>
    %131 = vector.broadcast %130 : vector<1x64xf32> to vector<16x64xf32>
    %132 = arith.addf %128, %131 : vector<16x64xf32>
    %cst_61 = arith.constant 0.000000e+00 : f32
    %133 = vector.broadcast %cst_61 : f32 to vector<16x64xf32>
    %134 = arith.maximumf %132, %133 : vector<16x64xf32>
    %c0_62 = arith.constant 0 : index
    %c0_63 = arith.constant 0 : index
    %c0_64 = arith.constant 0 : index
    %135 = vector.load %arg16[%c0_62, %c0_63, %c0_64] : memref<2x64x32xf32, #tpu.memory_space<vmem>>, vector<1x64x32xf32>
    %136 = vector.shape_cast %135 : vector<1x64x32xf32> to vector<64x32xf32>
    %cst_65 = arith.constant dense<0.000000e+00> : vector<16x32xf32>
    %137 = tpu.matmul %134, %136, %cst_65 {dimension_numbers = #tpu.dot_dimension_numbers<[1], [0], [0], [1], [0, 0, 1, 1], [], []>} : vector<16x64xf32>, vector<64x32xf32>, vector<16x32xf32> -> vector<16x32xf32>
    %c0_66 = arith.constant 0 : index
    %c0_67 = arith.constant 0 : index
    %c0_68 = arith.constant 0 : index
    %138 = vector.load %arg17[%c0_66, %c0_67, %c0_68] : memref<2x1x32xf32, #tpu.memory_space<vmem>>, vector<1x1x32xf32>
    %139 = vector.shape_cast %138 : vector<1x1x32xf32> to vector<1x32xf32>
    %140 = vector.broadcast %139 : vector<1x32xf32> to vector<16x32xf32>
    %141 = arith.addf %137, %140 : vector<16x32xf32>
    %142 = arith.addf %125, %141 : vector<16x32xf32>
    %c0_69 = arith.constant 0 : index
    %c0_70 = arith.constant 0 : index
    %c0_71 = arith.constant 0 : index
    %143 = vector.load %arg12[%c0_69, %c0_70, %c0_71] : memref<2x1x32xf32, #tpu.memory_space<vmem>>, vector<1x1x32xf32>
    %144 = vector.shape_cast %143 : vector<1x1x32xf32> to vector<1x32xf32>
    %c0_72 = arith.constant 0 : index
    %c0_73 = arith.constant 0 : index
    %c0_74 = arith.constant 0 : index
    %145 = vector.load %arg13[%c0_72, %c0_73, %c0_74] : memref<2x1x32xf32, #tpu.memory_space<vmem>>, vector<1x1x32xf32>
    %146 = vector.shape_cast %145 : vector<1x1x32xf32> to vector<1x32xf32>
    %cst_75 = arith.constant dense<0.000000e+00> : vector<16xf32>
    %147 = vector.multi_reduction <add>, %142, %cst_75 [1] : vector<16x32xf32> to vector<16xf32>
    %148 = vector.shape_cast %147 : vector<16xf32> to vector<16x1xf32>
    %cst_76 = arith.constant 3.200000e+01 : f32
    %149 = vector.broadcast %cst_76 : f32 to vector<16x1xf32>
    %150 = arith.divf %148, %149 : vector<16x1xf32>
    %151 = vector.broadcast %150 : vector<16x1xf32> to vector<16x32xf32>
    %152 = arith.subf %142, %151 : vector<16x32xf32>
    %153 = arith.mulf %152, %152 : vector<16x32xf32>
    %cst_77 = arith.constant dense<0.000000e+00> : vector<16xf32>
    %154 = vector.multi_reduction <add>, %153, %cst_77 [1] : vector<16x32xf32> to vector<16xf32>
    %155 = vector.shape_cast %154 : vector<16xf32> to vector<16x1xf32>
    %cst_78 = arith.constant 3.200000e+01 : f32
    %156 = vector.broadcast %cst_78 : f32 to vector<16x1xf32>
    %157 = arith.divf %155, %156 : vector<16x1xf32>
    %158 = vector.broadcast %150 : vector<16x1xf32> to vector<16x32xf32>
    %159 = arith.subf %142, %158 : vector<16x32xf32>
    %cst_79 = arith.constant 9.99999974E-6 : f32
    %160 = vector.broadcast %cst_79 : f32 to vector<16x1xf32>
    %161 = arith.addf %157, %160 : vector<16x1xf32>
    %162 = math.rsqrt %161 : vector<16x1xf32>
    %163 = vector.broadcast %162 : vector<16x1xf32> to vector<16x32xf32>
    %164 = arith.mulf %159, %163 : vector<16x32xf32>
    %165 = vector.broadcast %144 : vector<1x32xf32> to vector<16x32xf32>
    %166 = arith.mulf %164, %165 : vector<16x32xf32>
    %167 = vector.broadcast %146 : vector<1x32xf32> to vector<16x32xf32>
    %168 = arith.addf %166, %167 : vector<16x32xf32>
    %c1 = arith.constant 1 : index
    %c0_80 = arith.constant 0 : index
    %c0_81 = arith.constant 0 : index
    %169 = vector.load %arg6[%c1, %c0_80, %c0_81] : memref<2x32x96xf32, #tpu.memory_space<vmem>>, vector<1x32x96xf32>
    %170 = vector.shape_cast %169 : vector<1x32x96xf32> to vector<32x96xf32>
    %cst_82 = arith.constant dense<0.000000e+00> : vector<16x96xf32>
    %171 = tpu.matmul %168, %170, %cst_82 {dimension_numbers = #tpu.dot_dimension_numbers<[1], [0], [0], [1], [0, 0, 1, 1], [], []>} : vector<16x32xf32>, vector<32x96xf32>, vector<16x96xf32> -> vector<16x96xf32>
    %c1_83 = arith.constant 1 : index
    %c0_84 = arith.constant 0 : index
    %c0_85 = arith.constant 0 : index
    %172 = vector.load %arg7[%c1_83, %c0_84, %c0_85] : memref<2x1x96xf32, #tpu.memory_space<vmem>>, vector<1x1x96xf32>
    %173 = vector.shape_cast %172 : vector<1x1x96xf32> to vector<1x96xf32>
    %174 = vector.broadcast %173 : vector<1x96xf32> to vector<16x96xf32>
    %175 = arith.addf %171, %174 : vector<16x96xf32>
    %c1_86 = arith.constant 1 : index
    %c0_87 = arith.constant 0 : index
    %c0_88 = arith.constant 0 : index
    %176 = vector.load %arg8[%c1_86, %c0_87, %c0_88] : memref<2x32x32xf32, #tpu.memory_space<vmem>>, vector<1x32x32xf32>
    %177 = vector.shape_cast %176 : vector<1x32x32xf32> to vector<32x32xf32>
    %cst_89 = arith.constant 0.000000e+00 : f32
    %178 = vector.broadcast %cst_89 : f32 to vector<16x32xf32>
    %179 = vector.extract_strided_slice %175 {offsets = [0, 0], sizes = [16, 8], strides = [1, 1]} : vector<16x96xf32> to vector<16x8xf32>
    %180 = vector.extract_strided_slice %175 {offsets = [0, 32], sizes = [16, 8], strides = [1, 1]} : vector<16x96xf32> to vector<16x8xf32>
    %181 = vector.extract_strided_slice %175 {offsets = [0, 64], sizes = [16, 8], strides = [1, 1]} : vector<16x96xf32> to vector<16x8xf32>
    "tpu.trace_start"() <{level = 10 : i32, message = "qd,kd->qk"}> : () -> ()
    %cst_90 = arith.constant dense<0.000000e+00> : vector<16x16xf32>
    %182 = tpu.matmul %179, %180, %cst_90 {dimension_numbers = #tpu.dot_dimension_numbers<[1], [1], [0], [0], [0, 0, 1, 0], [], []>} : vector<16x8xf32>, vector<16x8xf32>, vector<16x16xf32> -> vector<16x16xf32>
    "tpu.trace_stop"() : () -> ()
    %183 = arith.addf %182, %1 : vector<16x16xf32>
    %cst_91 = arith.constant dense<0xFF800000> : vector<16xf32>
    %184 = vector.multi_reduction <maximumf>, %183, %cst_91 [1] : vector<16x16xf32> to vector<16xf32>
    %185 = vector.shape_cast %184 : vector<16xf32> to vector<16x1xf32>
    %186 = vector.broadcast %185 : vector<16x1xf32> to vector<16x16xf32>
    %187 = arith.subf %183, %186 : vector<16x16xf32>
    %188 = math.exp %187 : vector<16x16xf32>
    %cst_92 = arith.constant dense<0.000000e+00> : vector<16xf32>
    %189 = vector.multi_reduction <add>, %188, %cst_92 [1] : vector<16x16xf32> to vector<16xf32>
    %190 = vector.shape_cast %189 : vector<16xf32> to vector<16x1xf32>
    %191 = tpu.reciprocal %190 {approx = true} : vector<16x1xf32> -> vector<16x1xf32>
    %192 = vector.broadcast %191 : vector<16x1xf32> to vector<16x16xf32>
    %193 = arith.mulf %188, %192 : vector<16x16xf32>
    %cst_93 = arith.constant dense<0.000000e+00> : vector<16x8xf32>
    %194 = tpu.matmul %193, %181, %cst_93 {dimension_numbers = #tpu.dot_dimension_numbers<[1], [0], [0], [1], [0, 0, 1, 1], [], []>} : vector<16x16xf32>, vector<16x8xf32>, vector<16x8xf32> -> vector<16x8xf32>
    %195 = vector.extract_strided_slice %177 {offsets = [0, 0], sizes = [8, 32], strides = [1, 1]} : vector<32x32xf32> to vector<8x32xf32>
    %cst_94 = arith.constant dense<0.000000e+00> : vector<16x32xf32>
    %196 = tpu.matmul %194, %195, %cst_94 {dimension_numbers = #tpu.dot_dimension_numbers<[1], [0], [0], [1], [0, 0, 1, 1], [], []>} : vector<16x8xf32>, vector<8x32xf32>, vector<16x32xf32> -> vector<16x32xf32>
    %197 = arith.addf %178, %196 : vector<16x32xf32>
    %198 = vector.extract_strided_slice %175 {offsets = [0, 8], sizes = [16, 8], strides = [1, 1]} : vector<16x96xf32> to vector<16x8xf32>
    %199 = vector.extract_strided_slice %175 {offsets = [0, 40], sizes = [16, 8], strides = [1, 1]} : vector<16x96xf32> to vector<16x8xf32>
    %200 = vector.extract_strided_slice %175 {offsets = [0, 72], sizes = [16, 8], strides = [1, 1]} : vector<16x96xf32> to vector<16x8xf32>
    "tpu.trace_start"() <{level = 10 : i32, message = "qd,kd->qk"}> : () -> ()
    %cst_95 = arith.constant dense<0.000000e+00> : vector<16x16xf32>
    %201 = tpu.matmul %198, %199, %cst_95 {dimension_numbers = #tpu.dot_dimension_numbers<[1], [1], [0], [0], [0, 0, 1, 0], [], []>} : vector<16x8xf32>, vector<16x8xf32>, vector<16x16xf32> -> vector<16x16xf32>
    "tpu.trace_stop"() : () -> ()
    %202 = arith.addf %201, %1 : vector<16x16xf32>
    %cst_96 = arith.constant dense<0xFF800000> : vector<16xf32>
    %203 = vector.multi_reduction <maximumf>, %202, %cst_96 [1] : vector<16x16xf32> to vector<16xf32>
    %204 = vector.shape_cast %203 : vector<16xf32> to vector<16x1xf32>
    %205 = vector.broadcast %204 : vector<16x1xf32> to vector<16x16xf32>
    %206 = arith.subf %202, %205 : vector<16x16xf32>
    %207 = math.exp %206 : vector<16x16xf32>
    %cst_97 = arith.constant dense<0.000000e+00> : vector<16xf32>
    %208 = vector.multi_reduction <add>, %207, %cst_97 [1] : vector<16x16xf32> to vector<16xf32>
    %209 = vector.shape_cast %208 : vector<16xf32> to vector<16x1xf32>
    %210 = tpu.reciprocal %209 {approx = true} : vector<16x1xf32> -> vector<16x1xf32>
    %211 = vector.broadcast %210 : vector<16x1xf32> to vector<16x16xf32>
    %212 = arith.mulf %207, %211 : vector<16x16xf32>
    %cst_98 = arith.constant dense<0.000000e+00> : vector<16x8xf32>
    %213 = tpu.matmul %212, %200, %cst_98 {dimension_numbers = #tpu.dot_dimension_numbers<[1], [0], [0], [1], [0, 0, 1, 1], [], []>} : vector<16x16xf32>, vector<16x8xf32>, vector<16x8xf32> -> vector<16x8xf32>
    %214 = vector.extract_strided_slice %177 {offsets = [8, 0], sizes = [8, 32], strides = [1, 1]} : vector<32x32xf32> to vector<8x32xf32>
    %cst_99 = arith.constant dense<0.000000e+00> : vector<16x32xf32>
    %215 = tpu.matmul %213, %214, %cst_99 {dimension_numbers = #tpu.dot_dimension_numbers<[1], [0], [0], [1], [0, 0, 1, 1], [], []>} : vector<16x8xf32>, vector<8x32xf32>, vector<16x32xf32> -> vector<16x32xf32>
    %216 = arith.addf %197, %215 : vector<16x32xf32>
    %217 = vector.extract_strided_slice %175 {offsets = [0, 16], sizes = [16, 8], strides = [1, 1]} : vector<16x96xf32> to vector<16x8xf32>
    %218 = vector.extract_strided_slice %175 {offsets = [0, 48], sizes = [16, 8], strides = [1, 1]} : vector<16x96xf32> to vector<16x8xf32>
    %219 = vector.extract_strided_slice %175 {offsets = [0, 80], sizes = [16, 8], strides = [1, 1]} : vector<16x96xf32> to vector<16x8xf32>
    "tpu.trace_start"() <{level = 10 : i32, message = "qd,kd->qk"}> : () -> ()
    %cst_100 = arith.constant dense<0.000000e+00> : vector<16x16xf32>
    %220 = tpu.matmul %217, %218, %cst_100 {dimension_numbers = #tpu.dot_dimension_numbers<[1], [1], [0], [0], [0, 0, 1, 0], [], []>} : vector<16x8xf32>, vector<16x8xf32>, vector<16x16xf32> -> vector<16x16xf32>
    "tpu.trace_stop"() : () -> ()
    %221 = arith.addf %220, %1 : vector<16x16xf32>
    %cst_101 = arith.constant dense<0xFF800000> : vector<16xf32>
    %222 = vector.multi_reduction <maximumf>, %221, %cst_101 [1] : vector<16x16xf32> to vector<16xf32>
    %223 = vector.shape_cast %222 : vector<16xf32> to vector<16x1xf32>
    %224 = vector.broadcast %223 : vector<16x1xf32> to vector<16x16xf32>
    %225 = arith.subf %221, %224 : vector<16x16xf32>
    %226 = math.exp %225 : vector<16x16xf32>
    %cst_102 = arith.constant dense<0.000000e+00> : vector<16xf32>
    %227 = vector.multi_reduction <add>, %226, %cst_102 [1] : vector<16x16xf32> to vector<16xf32>
    %228 = vector.shape_cast %227 : vector<16xf32> to vector<16x1xf32>
    %229 = tpu.reciprocal %228 {approx = true} : vector<16x1xf32> -> vector<16x1xf32>
    %230 = vector.broadcast %229 : vector<16x1xf32> to vector<16x16xf32>
    %231 = arith.mulf %226, %230 : vector<16x16xf32>
    %cst_103 = arith.constant dense<0.000000e+00> : vector<16x8xf32>
    %232 = tpu.matmul %231, %219, %cst_103 {dimension_numbers = #tpu.dot_dimension_numbers<[1], [0], [0], [1], [0, 0, 1, 1], [], []>} : vector<16x16xf32>, vector<16x8xf32>, vector<16x8xf32> -> vector<16x8xf32>
    %233 = vector.extract_strided_slice %177 {offsets = [16, 0], sizes = [8, 32], strides = [1, 1]} : vector<32x32xf32> to vector<8x32xf32>
    %cst_104 = arith.constant dense<0.000000e+00> : vector<16x32xf32>
    %234 = tpu.matmul %232, %233, %cst_104 {dimension_numbers = #tpu.dot_dimension_numbers<[1], [0], [0], [1], [0, 0, 1, 1], [], []>} : vector<16x8xf32>, vector<8x32xf32>, vector<16x32xf32> -> vector<16x32xf32>
    %235 = arith.addf %216, %234 : vector<16x32xf32>
    %236 = vector.extract_strided_slice %175 {offsets = [0, 24], sizes = [16, 8], strides = [1, 1]} : vector<16x96xf32> to vector<16x8xf32>
    %237 = vector.extract_strided_slice %175 {offsets = [0, 56], sizes = [16, 8], strides = [1, 1]} : vector<16x96xf32> to vector<16x8xf32>
    %238 = vector.extract_strided_slice %175 {offsets = [0, 88], sizes = [16, 8], strides = [1, 1]} : vector<16x96xf32> to vector<16x8xf32>
    "tpu.trace_start"() <{level = 10 : i32, message = "qd,kd->qk"}> : () -> ()
    %cst_105 = arith.constant dense<0.000000e+00> : vector<16x16xf32>
    %239 = tpu.matmul %236, %237, %cst_105 {dimension_numbers = #tpu.dot_dimension_numbers<[1], [1], [0], [0], [0, 0, 1, 0], [], []>} : vector<16x8xf32>, vector<16x8xf32>, vector<16x16xf32> -> vector<16x16xf32>
    "tpu.trace_stop"() : () -> ()
    %240 = arith.addf %239, %1 : vector<16x16xf32>
    %cst_106 = arith.constant dense<0xFF800000> : vector<16xf32>
    %241 = vector.multi_reduction <maximumf>, %240, %cst_106 [1] : vector<16x16xf32> to vector<16xf32>
    %242 = vector.shape_cast %241 : vector<16xf32> to vector<16x1xf32>
    %243 = vector.broadcast %242 : vector<16x1xf32> to vector<16x16xf32>
    %244 = arith.subf %240, %243 : vector<16x16xf32>
    %245 = math.exp %244 : vector<16x16xf32>
    %cst_107 = arith.constant dense<0.000000e+00> : vector<16xf32>
    %246 = vector.multi_reduction <add>, %245, %cst_107 [1] : vector<16x16xf32> to vector<16xf32>
    %247 = vector.shape_cast %246 : vector<16xf32> to vector<16x1xf32>
    %248 = tpu.reciprocal %247 {approx = true} : vector<16x1xf32> -> vector<16x1xf32>
    %249 = vector.broadcast %248 : vector<16x1xf32> to vector<16x16xf32>
    %250 = arith.mulf %245, %249 : vector<16x16xf32>
    %cst_108 = arith.constant dense<0.000000e+00> : vector<16x8xf32>
    %251 = tpu.matmul %250, %238, %cst_108 {dimension_numbers = #tpu.dot_dimension_numbers<[1], [0], [0], [1], [0, 0, 1, 1], [], []>} : vector<16x16xf32>, vector<16x8xf32>, vector<16x8xf32> -> vector<16x8xf32>
    %252 = vector.extract_strided_slice %177 {offsets = [24, 0], sizes = [8, 32], strides = [1, 1]} : vector<32x32xf32> to vector<8x32xf32>
    %cst_109 = arith.constant dense<0.000000e+00> : vector<16x32xf32>
    %253 = tpu.matmul %251, %252, %cst_109 {dimension_numbers = #tpu.dot_dimension_numbers<[1], [0], [0], [1], [0, 0, 1, 1], [], []>} : vector<16x8xf32>, vector<8x32xf32>, vector<16x32xf32> -> vector<16x32xf32>
    %254 = arith.addf %235, %253 : vector<16x32xf32>
    %c1_110 = arith.constant 1 : index
    %c0_111 = arith.constant 0 : index
    %c0_112 = arith.constant 0 : index
    %255 = vector.load %arg9[%c1_110, %c0_111, %c0_112] : memref<2x1x32xf32, #tpu.memory_space<vmem>>, vector<1x1x32xf32>
    %256 = vector.shape_cast %255 : vector<1x1x32xf32> to vector<1x32xf32>
    %257 = vector.broadcast %256 : vector<1x32xf32> to vector<16x32xf32>
    %258 = arith.addf %254, %257 : vector<16x32xf32>
    %259 = arith.addf %168, %258 : vector<16x32xf32>
    %c1_113 = arith.constant 1 : index
    %c0_114 = arith.constant 0 : index
    %c0_115 = arith.constant 0 : index
    %260 = vector.load %arg10[%c1_113, %c0_114, %c0_115] : memref<2x1x32xf32, #tpu.memory_space<vmem>>, vector<1x1x32xf32>
    %261 = vector.shape_cast %260 : vector<1x1x32xf32> to vector<1x32xf32>
    %c1_116 = arith.constant 1 : index
    %c0_117 = arith.constant 0 : index
    %c0_118 = arith.constant 0 : index
    %262 = vector.load %arg11[%c1_116, %c0_117, %c0_118] : memref<2x1x32xf32, #tpu.memory_space<vmem>>, vector<1x1x32xf32>
    %263 = vector.shape_cast %262 : vector<1x1x32xf32> to vector<1x32xf32>
    %cst_119 = arith.constant dense<0.000000e+00> : vector<16xf32>
    %264 = vector.multi_reduction <add>, %259, %cst_119 [1] : vector<16x32xf32> to vector<16xf32>
    %265 = vector.shape_cast %264 : vector<16xf32> to vector<16x1xf32>
    %cst_120 = arith.constant 3.200000e+01 : f32
    %266 = vector.broadcast %cst_120 : f32 to vector<16x1xf32>
    %267 = arith.divf %265, %266 : vector<16x1xf32>
    %268 = vector.broadcast %267 : vector<16x1xf32> to vector<16x32xf32>
    %269 = arith.subf %259, %268 : vector<16x32xf32>
    %270 = arith.mulf %269, %269 : vector<16x32xf32>
    %cst_121 = arith.constant dense<0.000000e+00> : vector<16xf32>
    %271 = vector.multi_reduction <add>, %270, %cst_121 [1] : vector<16x32xf32> to vector<16xf32>
    %272 = vector.shape_cast %271 : vector<16xf32> to vector<16x1xf32>
    %cst_122 = arith.constant 3.200000e+01 : f32
    %273 = vector.broadcast %cst_122 : f32 to vector<16x1xf32>
    %274 = arith.divf %272, %273 : vector<16x1xf32>
    %275 = vector.broadcast %267 : vector<16x1xf32> to vector<16x32xf32>
    %276 = arith.subf %259, %275 : vector<16x32xf32>
    %cst_123 = arith.constant 9.99999974E-6 : f32
    %277 = vector.broadcast %cst_123 : f32 to vector<16x1xf32>
    %278 = arith.addf %274, %277 : vector<16x1xf32>
    %279 = math.rsqrt %278 : vector<16x1xf32>
    %280 = vector.broadcast %279 : vector<16x1xf32> to vector<16x32xf32>
    %281 = arith.mulf %276, %280 : vector<16x32xf32>
    %282 = vector.broadcast %261 : vector<1x32xf32> to vector<16x32xf32>
    %283 = arith.mulf %281, %282 : vector<16x32xf32>
    %284 = vector.broadcast %263 : vector<1x32xf32> to vector<16x32xf32>
    %285 = arith.addf %283, %284 : vector<16x32xf32>
    %c1_124 = arith.constant 1 : index
    %c0_125 = arith.constant 0 : index
    %c0_126 = arith.constant 0 : index
    %286 = vector.load %arg14[%c1_124, %c0_125, %c0_126] : memref<2x32x64xf32, #tpu.memory_space<vmem>>, vector<1x32x64xf32>
    %287 = vector.shape_cast %286 : vector<1x32x64xf32> to vector<32x64xf32>
    %cst_127 = arith.constant dense<0.000000e+00> : vector<16x64xf32>
    %288 = tpu.matmul %285, %287, %cst_127 {dimension_numbers = #tpu.dot_dimension_numbers<[1], [0], [0], [1], [0, 0, 1, 1], [], []>} : vector<16x32xf32>, vector<32x64xf32>, vector<16x64xf32> -> vector<16x64xf32>
    %c1_128 = arith.constant 1 : index
    %c0_129 = arith.constant 0 : index
    %c0_130 = arith.constant 0 : index
    %289 = vector.load %arg15[%c1_128, %c0_129, %c0_130] : memref<2x1x64xf32, #tpu.memory_space<vmem>>, vector<1x1x64xf32>
    %290 = vector.shape_cast %289 : vector<1x1x64xf32> to vector<1x64xf32>
    %291 = vector.broadcast %290 : vector<1x64xf32> to vector<16x64xf32>
    %292 = arith.addf %288, %291 : vector<16x64xf32>
    %cst_131 = arith.constant 0.000000e+00 : f32
    %293 = vector.broadcast %cst_131 : f32 to vector<16x64xf32>
    %294 = arith.maximumf %292, %293 : vector<16x64xf32>
    %c1_132 = arith.constant 1 : index
    %c0_133 = arith.constant 0 : index
    %c0_134 = arith.constant 0 : index
    %295 = vector.load %arg16[%c1_132, %c0_133, %c0_134] : memref<2x64x32xf32, #tpu.memory_space<vmem>>, vector<1x64x32xf32>
    %296 = vector.shape_cast %295 : vector<1x64x32xf32> to vector<64x32xf32>
    %cst_135 = arith.constant dense<0.000000e+00> : vector<16x32xf32>
    %297 = tpu.matmul %294, %296, %cst_135 {dimension_numbers = #tpu.dot_dimension_numbers<[1], [0], [0], [1], [0, 0, 1, 1], [], []>} : vector<16x64xf32>, vector<64x32xf32>, vector<16x32xf32> -> vector<16x32xf32>
    %c1_136 = arith.constant 1 : index
    %c0_137 = arith.constant 0 : index
    %c0_138 = arith.constant 0 : index
    %298 = vector.load %arg17[%c1_136, %c0_137, %c0_138] : memref<2x1x32xf32, #tpu.memory_space<vmem>>, vector<1x1x32xf32>
    %299 = vector.shape_cast %298 : vector<1x1x32xf32> to vector<1x32xf32>
    %300 = vector.broadcast %299 : vector<1x32xf32> to vector<16x32xf32>
    %301 = arith.addf %297, %300 : vector<16x32xf32>
    %302 = arith.addf %285, %301 : vector<16x32xf32>
    %c1_139 = arith.constant 1 : index
    %c0_140 = arith.constant 0 : index
    %c0_141 = arith.constant 0 : index
    %303 = vector.load %arg12[%c1_139, %c0_140, %c0_141] : memref<2x1x32xf32, #tpu.memory_space<vmem>>, vector<1x1x32xf32>
    %304 = vector.shape_cast %303 : vector<1x1x32xf32> to vector<1x32xf32>
    %c1_142 = arith.constant 1 : index
    %c0_143 = arith.constant 0 : index
    %c0_144 = arith.constant 0 : index
    %305 = vector.load %arg13[%c1_142, %c0_143, %c0_144] : memref<2x1x32xf32, #tpu.memory_space<vmem>>, vector<1x1x32xf32>
    %306 = vector.shape_cast %305 : vector<1x1x32xf32> to vector<1x32xf32>
    %cst_145 = arith.constant dense<0.000000e+00> : vector<16xf32>
    %307 = vector.multi_reduction <add>, %302, %cst_145 [1] : vector<16x32xf32> to vector<16xf32>
    %308 = vector.shape_cast %307 : vector<16xf32> to vector<16x1xf32>
    %cst_146 = arith.constant 3.200000e+01 : f32
    %309 = vector.broadcast %cst_146 : f32 to vector<16x1xf32>
    %310 = arith.divf %308, %309 : vector<16x1xf32>
    %311 = vector.broadcast %310 : vector<16x1xf32> to vector<16x32xf32>
    %312 = arith.subf %302, %311 : vector<16x32xf32>
    %313 = arith.mulf %312, %312 : vector<16x32xf32>
    %cst_147 = arith.constant dense<0.000000e+00> : vector<16xf32>
    %314 = vector.multi_reduction <add>, %313, %cst_147 [1] : vector<16x32xf32> to vector<16xf32>
    %315 = vector.shape_cast %314 : vector<16xf32> to vector<16x1xf32>
    %cst_148 = arith.constant 3.200000e+01 : f32
    %316 = vector.broadcast %cst_148 : f32 to vector<16x1xf32>
    %317 = arith.divf %315, %316 : vector<16x1xf32>
    %318 = vector.broadcast %310 : vector<16x1xf32> to vector<16x32xf32>
    %319 = arith.subf %302, %318 : vector<16x32xf32>
    %cst_149 = arith.constant 9.99999974E-6 : f32
    %320 = vector.broadcast %cst_149 : f32 to vector<16x1xf32>
    %321 = arith.addf %317, %320 : vector<16x1xf32>
    %322 = math.rsqrt %321 : vector<16x1xf32>
    %323 = vector.broadcast %322 : vector<16x1xf32> to vector<16x32xf32>
    %324 = arith.mulf %319, %323 : vector<16x32xf32>
    %325 = vector.broadcast %304 : vector<1x32xf32> to vector<16x32xf32>
    %326 = arith.mulf %324, %325 : vector<16x32xf32>
    %327 = vector.broadcast %306 : vector<1x32xf32> to vector<16x32xf32>
    %328 = arith.addf %326, %327 : vector<16x32xf32>
    %c0_150 = arith.constant 0 : index
    %c0_151 = arith.constant 0 : index
    %329 = vector.load %arg18[%c0_150, %c0_151] : memref<32x128xf32, #tpu.memory_space<vmem>>, vector<32x128xf32>
    %cst_152 = arith.constant dense<0.000000e+00> : vector<16x128xf32>
    %330 = tpu.matmul %328, %329, %cst_152 {dimension_numbers = #tpu.dot_dimension_numbers<[1], [0], [0], [1], [0, 0, 1, 1], [], []>} : vector<16x32xf32>, vector<32x128xf32>, vector<16x128xf32> -> vector<16x128xf32>
    %c0_153 = arith.constant 0 : index
    %c0_154 = arith.constant 0 : index
    %331 = vector.load %arg19[%c0_153, %c0_154] : memref<1x128xf32, #tpu.memory_space<vmem>>, vector<1x128xf32>
    %332 = vector.broadcast %331 : vector<1x128xf32> to vector<16x128xf32>
    %333 = arith.addf %330, %332 : vector<16x128xf32>
    %c0_155 = arith.constant 0 : index
    %c0_156 = arith.constant 0 : index
    %334 = vector.load %arg20[%c0_155, %c0_156] : memref<16x128xf32, #tpu.memory_space<vmem>>, vector<16x128xf32>
    tpu.vector_store %arg20[%c0_155, %c0_156], %333 {strides = array<i32>} : memref<16x128xf32, #tpu.memory_space<vmem>>, vector<16x128xf32>,
    return
  }
  func.func @transform_0(%arg0: i32) -> (i32, i32) {
    %c0_i32 = arith.constant 0 : i32
    %c0_i32_0 = arith.constant 0 : i32
    %c0_i32_1 = arith.constant 0 : i32
    return %c0_i32, %c0_i32_0 : i32, i32
  }
  func.func @transform_1(%arg0: i32) -> (i32, i32) {
    %c0_i32 = arith.constant 0 : i32
    %c0_i32_0 = arith.constant 0 : i32
    %c0_i32_1 = arith.constant 0 : i32
    return %c0_i32, %c0_i32_0 : i32, i32
  }
  func.func @transform_2(%arg0: i32) -> (i32, i32) {
    %c0_i32 = arith.constant 0 : i32
    %c0_i32_0 = arith.constant 0 : i32
    %c0_i32_1 = arith.constant 0 : i32
    return %c0_i32, %c0_i32_0 : i32, i32
  }
  func.func @transform_3(%arg0: i32) -> (i32, i32) {
    %c0_i32 = arith.constant 0 : i32
    %c0_i32_0 = arith.constant 0 : i32
    %c0_i32_1 = arith.constant 0 : i32
    return %c0_i32, %c0_i32_0 : i32, i32
  }
  func.func @transform_4(%arg0: i32) -> (i32, i32) {
    %c0_i32 = arith.constant 0 : i32
    %c0_i32_0 = arith.constant 0 : i32
    %c0_i32_1 = arith.constant 0 : i32
    return %c0_i32, %c0_i32_0 : i32, i32
  }
  func.func @transform_5(%arg0: i32) -> (i32, i32, i32) {
    %c0_i32 = arith.constant 0 : i32
    %c0_i32_0 = arith.constant 0 : i32
    %c0_i32_1 = arith.constant 0 : i32
    %c0_i32_2 = arith.constant 0 : i32
    return %c0_i32, %c0_i32_0, %c0_i32_1 : i32, i32, i32
  }
  func.func @transform_6(%arg0: i32) -> (i32, i32, i32) {
    %c0_i32 = arith.constant 0 : i32
    %c0_i32_0 = arith.constant 0 : i32
    %c0_i32_1 = arith.constant 0 : i32
    %c0_i32_2 = arith.constant 0 : i32
    return %c0_i32, %c0_i32_0, %c0_i32_1 : i32, i32, i32
  }
  func.func @transform_7(%arg0: i32) -> (i32, i32, i32) {
    %c0_i32 = arith.constant 0 : i32
    %c0_i32_0 = arith.constant 0 : i32
    %c0_i32_1 = arith.constant 0 : i32
    %c0_i32_2 = arith.constant 0 : i32
    return %c0_i32, %c0_i32_0, %c0_i32_1 : i32, i32, i32
  }
  func.func @transform_8(%arg0: i32) -> (i32, i32, i32) {
    %c0_i32 = arith.constant 0 : i32
    %c0_i32_0 = arith.constant 0 : i32
    %c0_i32_1 = arith.constant 0 : i32
    %c0_i32_2 = arith.constant 0 : i32
    return %c0_i32, %c0_i32_0, %c0_i32_1 : i32, i32, i32
  }
  func.func @transform_9(%arg0: i32) -> (i32, i32, i32) {
    %c0_i32 = arith.constant 0 : i32
    %c0_i32_0 = arith.constant 0 : i32
    %c0_i32_1 = arith.constant 0 : i32
    %c0_i32_2 = arith.constant 0 : i32
    return %c0_i32, %c0_i32_0, %c0_i32_1 : i32, i32, i32
  }
  func.func @transform_10(%arg0: i32) -> (i32, i32, i32) {
    %c0_i32 = arith.constant 0 : i32
    %c0_i32_0 = arith.constant 0 : i32
    %c0_i32_1 = arith.constant 0 : i32
    %c0_i32_2 = arith.constant 0 : i32
    return %c0_i32, %c0_i32_0, %c0_i32_1 : i32, i32, i32
  }
  func.func @transform_11(%arg0: i32) -> (i32, i32, i32) {
    %c0_i32 = arith.constant 0 : i32
    %c0_i32_0 = arith.constant 0 : i32
    %c0_i32_1 = arith.constant 0 : i32
    %c0_i32_2 = arith.constant 0 : i32
    return %c0_i32, %c0_i32_0, %c0_i32_1 : i32, i32, i32
  }
  func.func @transform_12(%arg0: i32) -> (i32, i32, i32) {
    %c0_i32 = arith.constant 0 : i32
    %c0_i32_0 = arith.constant 0 : i32
    %c0_i32_1 = arith.constant 0 : i32
    %c0_i32_2 = arith.constant 0 : i32
    return %c0_i32, %c0_i32_0, %c0_i32_1 : i32, i32, i32
  }
  func.func @transform_13(%arg0: i32) -> (i32, i32, i32) {
    %c0_i32 = arith.constant 0 : i32
    %c0_i32_0 = arith.constant 0 : i32
    %c0_i32_1 = arith.constant 0 : i32
    %c0_i32_2 = arith.constant 0 : i32
    return %c0_i32, %c0_i32_0, %c0_i32_1 : i32, i32, i32
  }
  func.func @transform_14(%arg0: i32) -> (i32, i32, i32) {
    %c0_i32 = arith.constant 0 : i32
    %c0_i32_0 = arith.constant 0 : i32
    %c0_i32_1 = arith.constant 0 : i32
    %c0_i32_2 = arith.constant 0 : i32
    return %c0_i32, %c0_i32_0, %c0_i32_1 : i32, i32, i32
  }
  func.func @transform_15(%arg0: i32) -> (i32, i32, i32) {
    %c0_i32 = arith.constant 0 : i32
    %c0_i32_0 = arith.constant 0 : i32
    %c0_i32_1 = arith.constant 0 : i32
    %c0_i32_2 = arith.constant 0 : i32
    return %c0_i32, %c0_i32_0, %c0_i32_1 : i32, i32, i32
  }
  func.func @transform_16(%arg0: i32) -> (i32, i32, i32) {
    %c0_i32 = arith.constant 0 : i32
    %c0_i32_0 = arith.constant 0 : i32
    %c0_i32_1 = arith.constant 0 : i32
    %c0_i32_2 = arith.constant 0 : i32
    return %c0_i32, %c0_i32_0, %c0_i32_1 : i32, i32, i32
  }
  func.func @transform_17(%arg0: i32) -> (i32, i32) {
    %c0_i32 = arith.constant 0 : i32
    %c0_i32_0 = arith.constant 0 : i32
    %c0_i32_1 = arith.constant 0 : i32
    return %c0_i32, %c0_i32_0 : i32, i32
  }
  func.func @transform_18(%arg0: i32) -> (i32, i32) {
    %c0_i32 = arith.constant 0 : i32
    %c0_i32_0 = arith.constant 0 : i32
    %c0_i32_1 = arith.constant 0 : i32
    return %c0_i32, %c0_i32_0 : i32, i32
  }
  func.func @transform_19(%arg0: i32) -> (i32, i32) {
    %c0_i32 = arith.constant 0 : i32
    %c0_i32_0 = arith.constant 0 : i32
    %c0_i32_1 = arith.constant 0 : i32
    return %c0_i32, %c0_i32_0 : i32, i32
  }
}

</mosaic_0001>

<llo_original>
// kernel: tpu_custom_call.1
$region0: #{tpu_custom_call.1}
  #allocation0 [shape = 'u32[]', space=smem, size = 0x4, offset = 0x4, fixed_abs, tag = 'smem constant byte address 0x4 - core index']
  #allocation1 [shape = 'u32[144,128]{1,0:T(1,128)}', space=vmem, size = 0x12000, scoped, tag = 'internal scratch']
  %s0 = inlined_call_operand.vmem [shape: f32[16,4], index: 0, kind: input, shape index: {}]
  %s1 = inlined_call_operand.hbm [shape: f32[16,16], index: 1, kind: input, shape index: {}]
  %s2 = inlined_call_operand.hbm [shape: f32[4,32], index: 2, kind: input, shape index: {}]
  %s3 = inlined_call_operand.hbm [shape: f32[1,32], index: 3, kind: input, shape index: {}]
  %s4 = inlined_call_operand.hbm [shape: f32[16,32], index: 4, kind: input, shape index: {}]
  %s5 = inlined_call_operand.vmem [shape: f32[2,32,96], index: 5, kind: input, shape index: {}]
  %s6 = inlined_call_operand.vmem [shape: f32[2,1,96], index: 6, kind: input, shape index: {}]
  %s7 = inlined_call_operand.vmem [shape: f32[2,32,32], index: 7, kind: input, shape index: {}]
  %s8 = inlined_call_operand.hbm [shape: f32[2,1,32], index: 8, kind: input, shape index: {}]
  %s9 = inlined_call_operand.hbm [shape: f32[2,1,32], index: 9, kind: input, shape index: {}]
  %s10 = inlined_call_operand.vmem [shape: f32[2,1,32], index: 10, kind: input, shape index: {}]
  %s11 = inlined_call_operand.vmem [shape: f32[2,1,32], index: 11, kind: input, shape index: {}]
  %s12 = inlined_call_operand.vmem [shape: f32[2,1,32], index: 12, kind: input, shape index: {}]
  %s13 = inlined_call_operand.vmem [shape: f32[2,32,64], index: 13, kind: input, shape index: {}]
  %s14 = inlined_call_operand.vmem [shape: f32[2,1,64], index: 14, kind: input, shape index: {}]
  %s15 = inlined_call_operand.vmem [shape: f32[2,64,32], index: 15, kind: input, shape index: {}]
  %s16 = inlined_call_operand.vmem [shape: f32[2,1,32], index: 16, kind: input, shape index: {}]
  %s17 = inlined_call_operand.vmem [shape: f32[32,128], index: 17, kind: input, shape index: {}]
  %s18 = inlined_call_operand.vmem [shape: f32[1,128], index: 18, kind: input, shape index: {}]
  %s19 = inlined_call_operand.hbm [shape: f32[16,128], index: 19, kind: output, shape index: {}]
  %s20 = sld [smem:[#allocation0]]
  $region110: #{tpu_custom_call.1} parent=0
    _
  %s22 = ssub.s32 1, %s20
  %s23 = scalar_select 0, %s22, %s20
  $region1: #{tpu_custom_call.1} parent=0
    #allocation2 [shape = 'u8[8192]{0}', space=vmem, size = 0x2000, scoped, tag = 'input window, operand 1, single buffered']
    #allocation3 [shape = 's32[1]{0}', space=sflag, size = 0x4, scoped, tag = 'scoped memory for tpu_custom_call.1']
    #allocation4 [shape = 's32[1]{0}', space=sflag, size = 0x4, scoped, tag = 'scoped memory for tpu_custom_call.1']
    #allocation5 [shape = 'u8[2048]{0}', space=vmem, size = 0x800, scoped, tag = 'input window, operand 2, single buffered']
    #allocation6 [shape = 's32[1]{0}', space=sflag, size = 0x4, scoped, tag = 'scoped memory for tpu_custom_call.1']
    #allocation7 [shape = 'u8[512]{0}', space=vmem, size = 0x400, scoped, tag = 'input window, operand 3, single buffered']
    #allocation8 [shape = 'u8[8192]{0}', space=vmem, size = 0x2000, scoped, tag = 'input window, operand 4, single buffered']
    #allocation9 [shape = 's32[1]{0}', space=sflag, size = 0x4, scoped, tag = 'scoped memory for tpu_custom_call.1']
    #allocation10 [shape = 'u8[1024]{0}', space=vmem, size = 0x400, scoped, tag = 'input window, operand 8, single buffered']
    #allocation11 [shape = 'u8[1024]{0}', space=vmem, size = 0x400, scoped, tag = 'input window, operand 9, single buffered']
    #allocation12 [shape = 's32[1]{0}', space=sflag, size = 0x4, scoped, tag = 'scoped memory for tpu_custom_call.1']
    #allocation13 [shape = 'u8[8192]{0}', space=vmem, size = 0x2000, scoped, tag = 'output window, operand 0, single buffered']
    %24 = vsyncpa [#allocation3], 0
    %25 = vsyncpa [#allocation6], 0
    %26 = vsyncpa [#allocation9], 0
    %27 = vsyncpa [#allocation12], 0
    %28 = vsyncpa [#allocation4], 0
    // Predicated region
    $region2: #{tpu_custom_call.1} parent=1 // pred_check
      _
    $region3: #{tpu_custom_call.1} parent=1 // pred_check_branch
      %30 = sbr.rel (0) target = $region5
    $region4: #{tpu_custom_call.1} parent=1 // pred_region
      _
    $region5: #{tpu_custom_call.1} parent=1 // pred_fallthru
      _
    // Predicated region
    $region6: #{tpu_custom_call.1} parent=1 // pred_check
      _
    $region7: #{tpu_custom_call.1} parent=1 // pred_check_branch
      %32 = sbr.rel (0) target = $region9
    $region8: #{tpu_custom_call.1} parent=1 // pred_region
      %s34 = ssub.s32 256, 256
      %35 = vsyncadd [#allocation3], %s34
      %s36 = sshll.u32 [#allocation2], 4
      %s37 = int_to_ptr.vmem [resolvable:$true] %s36
      %42 = dma.hbm_to_vmem [thread:$0]  %s1, 256, %s37, [#allocation3], 128, 128, 8
    $region9: #{tpu_custom_call.1} parent=1 // pred_fallthru
      _
    // Predicated region
    $region10: #{tpu_custom_call.1} parent=1 // pred_check
      _
    $region11: #{tpu_custom_call.1} parent=1 // pred_check_branch
      %44 = sbr.rel (0) target = $region13
    $region12: #{tpu_custom_call.1} parent=1 // pred_region
      %s46 = ssub.s32 64, 64
      %47 = vsyncadd [#allocation6], %s46
      %s49 = sshll.u32 [#allocation5], 4
      %s50 = int_to_ptr.vmem [resolvable:$true] %s49
      %52 = dma.hbm_to_vmem [thread:$0]  %s2, 64, %s50, [#allocation6]
    $region13: #{tpu_custom_call.1} parent=1 // pred_fallthru
      _
    // Predicated region
    $region14: #{tpu_custom_call.1} parent=1 // pred_check
      _
    $region15: #{tpu_custom_call.1} parent=1 // pred_check_branch
      %54 = sbr.rel (0) target = $region17
    $region16: #{tpu_custom_call.1} parent=1 // pred_region
      %s56 = ssub.s32 16, 16
      %57 = vsyncadd [#allocation6], %s56
      %s59 = sshll.u32 [#allocation7], 4
      %s60 = int_to_ptr.vmem [resolvable:$true] %s59
      %62 = dma.hbm_to_vmem [thread:$0]  %s3, 16, %s60, [#allocation6]
    $region17: #{tpu_custom_call.1} parent=1 // pred_fallthru
      _
    // Predicated region
    $region18: #{tpu_custom_call.1} parent=1 // pred_check
      _
    $region19: #{tpu_custom_call.1} parent=1 // pred_check_branch
      %64 = sbr.rel (0) target = $region21
    $region20: #{tpu_custom_call.1} parent=1 // pred_region
      %s66 = ssub.s32 256, 256
      %67 = vsyncadd [#allocation9], %s66
      %s68 = sshll.u32 [#allocation8], 4
      %s69 = int_to_ptr.vmem [resolvable:$true] %s68
      %74 = dma.hbm_to_vmem [thread:$0]  %s4, 256, %s69, [#allocation9], 128, 128, 8
    $region21: #{tpu_custom_call.1} parent=1 // pred_fallthru
      _
    // Predicated region
    $region22: #{tpu_custom_call.1} parent=1 // pred_check
      _
    $region23: #{tpu_custom_call.1} parent=1 // pred_check_branch
      %76 = sbr.rel (0) target = $region25
    $region24: #{tpu_custom_call.1} parent=1 // pred_region
      _
    $region25: #{tpu_custom_call.1} parent=1 // pred_fallthru
      _
    // Predicated region
    $region26: #{tpu_custom_call.1} parent=1 // pred_check
      _
    $region27: #{tpu_custom_call.1} parent=1 // pred_check_branch
      %78 = sbr.rel (0) target = $region29
    $region28: #{tpu_custom_call.1} parent=1 // pred_region
      _
    $region29: #{tpu_custom_call.1} parent=1 // pred_fallthru
      _
    // Predicated region
    $region30: #{tpu_custom_call.1} parent=1 // pred_check
      _
    $region31: #{tpu_custom_call.1} parent=1 // pred_check_branch
      %80 = sbr.rel (0) target = $region33
    $region32: #{tpu_custom_call.1} parent=1 // pred_region
      _
    $region33: #{tpu_custom_call.1} parent=1 // pred_fallthru
      _
    // Predicated region
    $region34: #{tpu_custom_call.1} parent=1 // pred_check
      _
    $region35: #{tpu_custom_call.1} parent=1 // pred_check_branch
      %82 = sbr.rel (0) target = $region37
    $region36: #{tpu_custom_call.1} parent=1 // pred_region
      %s84 = ssub.s32 32, 32
      %85 = vsyncadd [#allocation9], %s84
      %s86 = sshll.u32 [#allocation10], 4
      %s87 = int_to_ptr.vmem [resolvable:$true] %s86
      %92 = dma.hbm_to_vmem [thread:$0]  %s8, 32, %s87, [#allocation9], 16, 16, 1
    $region37: #{tpu_custom_call.1} parent=1 // pred_fallthru
      _
    // Predicated region
    $region38: #{tpu_custom_call.1} parent=1 // pred_check
      _
    $region39: #{tpu_custom_call.1} parent=1 // pred_check_branch
      %94 = sbr.rel (0) target = $region41
    $region40: #{tpu_custom_call.1} parent=1 // pred_region
      %s96 = ssub.s32 32, 32
      %97 = vsyncadd [#allocation12], %s96
      %s98 = sshll.u32 [#allocation11], 4
      %s99 = int_to_ptr.vmem [resolvable:$true] %s98
      %104 = dma.hbm_to_vmem [thread:$0]  %s9, 32, %s99, [#allocation12], 16, 16, 1
    $region41: #{tpu_custom_call.1} parent=1 // pred_fallthru
      _
    // Predicated region
    $region42: #{tpu_custom_call.1} parent=1 // pred_check
      _
    $region43: #{tpu_custom_call.1} parent=1 // pred_check_branch
      %106 = sbr.rel (0) target = $region45
    $region44: #{tpu_custom_call.1} parent=1 // pred_region
      _
    $region45: #{tpu_custom_call.1} parent=1 // pred_fallthru
      _
    // Predicated region
    $region46: #{tpu_custom_call.1} parent=1 // pred_check
      _
    $region47: #{tpu_custom_call.1} parent=1 // pred_check_branch
      %108 = sbr.rel (0) target = $region49
    $region48: #{tpu_custom_call.1} parent=1 // pred_region
      _
    $region49: #{tpu_custom_call.1} parent=1 // pred_fallthru
      _
    // Predicated region
    $region50: #{tpu_custom_call.1} parent=1 // pred_check
      _
    $region51: #{tpu_custom_call.1} parent=1 // pred_check_branch
      %110 = sbr.rel (0) target = $region53
    $region52: #{tpu_custom_call.1} parent=1 // pred_region
      _
    $region53: #{tpu_custom_call.1} parent=1 // pred_fallthru
      _
    // Predicated region
    $region54: #{tpu_custom_call.1} parent=1 // pred_check
      _
    $region55: #{tpu_custom_call.1} parent=1 // pred_check_branch
      %112 = sbr.rel (0) target = $region57
    $region56: #{tpu_custom_call.1} parent=1 // pred_region
      _
    $region57: #{tpu_custom_call.1} parent=1 // pred_fallthru
      _
    // Predicated region
    $region58: #{tpu_custom_call.1} parent=1 // pred_check
      _
    $region59: #{tpu_custom_call.1} parent=1 // pred_check_branch
      %114 = sbr.rel (0) target = $region61
    $region60: #{tpu_custom_call.1} parent=1 // pred_region
      _
    $region61: #{tpu_custom_call.1} parent=1 // pred_fallthru
      _
    // Predicated region
    $region62: #{tpu_custom_call.1} parent=1 // pred_check
      _
    $region63: #{tpu_custom_call.1} parent=1 // pred_check_branch
      %116 = sbr.rel (0) target = $region65
    $region64: #{tpu_custom_call.1} parent=1 // pred_region
      _
    $region65: #{tpu_custom_call.1} parent=1 // pred_fallthru
      _
    // Predicated region
    $region66: #{tpu_custom_call.1} parent=1 // pred_check
      _
    $region67: #{tpu_custom_call.1} parent=1 // pred_check_branch
      %118 = sbr.rel (0) target = $region69
    $region68: #{tpu_custom_call.1} parent=1 // pred_region
      _
    $region69: #{tpu_custom_call.1} parent=1 // pred_fallthru
      _
    // Predicated region
    $region70: #{tpu_custom_call.1} parent=1 // pred_check
      _
    $region71: #{tpu_custom_call.1} parent=1 // pred_check_branch
      %120 = sbr.rel (0) target = $region73
    $region72: #{tpu_custom_call.1} parent=1 // pred_region
      _
    $region73: #{tpu_custom_call.1} parent=1 // pred_fallthru
      _
    // Predicated region
    $region74: #{tpu_custom_call.1} parent=1 // pred_check
      _
    $region75: #{tpu_custom_call.1} parent=1 // pred_check_branch
      %122 = sbr.rel (0) target = $region77
    $region76: #{tpu_custom_call.1} parent=1 // pred_region
      _
    $region77: #{tpu_custom_call.1} parent=1 // pred_fallthru
      _
    // Predicated region
    $region78: #{tpu_custom_call.1} parent=1 // pred_check
      _
    $region79: #{tpu_custom_call.1} parent=1 // pred_check_branch
      %124 = sbr.rel (0) target = $region81
    $region80: #{tpu_custom_call.1} parent=1 // pred_region
      %125 = dma.done [#allocation3], 256
    $region81: #{tpu_custom_call.1} parent=1 // pred_fallthru
      _
    // Predicated region
    $region82: #{tpu_custom_call.1} parent=1 // pred_check
      _
    $region83: #{tpu_custom_call.1} parent=1 // pred_check_branch
      %127 = sbr.rel (0) target = $region85
    $region84: #{tpu_custom_call.1} parent=1 // pred_region
      %128 = dma.done [#allocation6], 64
    $region85: #{tpu_custom_call.1} parent=1 // pred_fallthru
      _
    // Predicated region
    $region86: #{tpu_custom_call.1} parent=1 // pred_check
      _
    $region87: #{tpu_custom_call.1} parent=1 // pred_check_branch
      %130 = sbr.rel (0) target = $region89
    $region88: #{tpu_custom_call.1} parent=1 // pred_region
      %131 = dma.done [#allocation6], 16
    $region89: #{tpu_custom_call.1} parent=1 // pred_fallthru
      _
    // Predicated region
    $region90: #{tpu_custom_call.1} parent=1 // pred_check
      _
    $region91: #{tpu_custom_call.1} parent=1 // pred_check_branch
      %133 = sbr.rel (0) target = $region93
    $region92: #{tpu_custom_call.1} parent=1 // pred_region
      %134 = dma.done [#allocation9], 256
    $region93: #{tpu_custom_call.1} parent=1 // pred_fallthru
      _
    // Predicated region
    $region94: #{tpu_custom_call.1} parent=1 // pred_check
      _
    $region95: #{tpu_custom_call.1} parent=1 // pred_check_branch
      %136 = sbr.rel (0) target = $region97
    $region96: #{tpu_custom_call.1} parent=1 // pred_region
      %137 = dma.done [#allocation9], 32
    $region97: #{tpu_custom_call.1} parent=1 // pred_fallthru
      _
    // Predicated region
    $region98: #{tpu_custom_call.1} parent=1 // pred_check
      _
    $region99: #{tpu_custom_call.1} parent=1 // pred_check_branch
      %139 = sbr.rel (0) target = $region101
    $region100: #{tpu_custom_call.1} parent=1 // pred_region
      %140 = dma.done [#allocation12], 32
    $region101: #{tpu_custom_call.1} parent=1 // pred_fallthru
      _
    %v141 = vld [vmem:[%s0] sm:$0xff]
    %v142 = vld [vmem:[%s0 + $0x8] sm:$0xff]
    %v143 = vld [vmem:[#allocation2] sm:$0xff]
    %v144 = vld [vmem:[#allocation2 + $0x8] sm:$0xff]
    %v145 = vld [vmem:[#allocation5] sm:$0xf]
    %v146 = vld [vmem:[#allocation7] sm:$0x1]
    %v148 = vlaneseq
    %v149 = vshrl.u32 %v148, 7
    %v150 = vsub.s32 0, %v149
    %v151 = vrot.slane %v146, %v150
    %vm153 = vcmask 31744
    %v155 = vsel %vm153, %v141, 0
    %v158 = vsel %vm153, %v142, 0
    %vm160 = vcmask 1043456
    %v162 = vsel %vm160, %v145, 0
    %164 = vmatprep.subr.mxu0 0.0
    %165 = vmatpush1.msra.mxu0 0.0
    %166 = vmatprep.subr.mxu0 0.0
    %167 = vmatpush1.msra.mxu0 0.0
    %168 = vmatprep.subr.mxu0 0.0
    %169 = vmatpush1.msra.mxu0 0.0
    %170 = vmatprep.subr.mxu0 0.0
    %171 = vmatpush1.msra.mxu0 0.0
    %172 = vmatprep.subr.mxu0 0.0
    %173 = vmatpush1.msra.mxu0 0.0
    %174 = vmatprep.subr.mxu0 0.0
    %175 = vmatpush1.msra.mxu0 0.0
    %176 = vmatprep.subr.mxu0 0.0
    %177 = vmatpush1.msra.mxu0 0.0
    %178 = vmatprep.subr.mxu0 0.0
    %179 = vmatpush1.msra.mxu0 0.0
    %180 = vmatprep.subr.mxu0 0.0
    %181 = vmatpush1.msra.mxu0 0.0
    %182 = vmatprep.subr.mxu0 0.0
    %183 = vmatpush1.msra.mxu0 0.0
    %184 = vmatprep.subr.mxu0 0.0
    %185 = vmatpush1.msra.mxu0 0.0
    %186 = vmatprep.subr.mxu0 0.0
    %187 = vmatpush1.msra.mxu0 0.0
    %188 = vmatprep.subr.mxu0 0.0
    %189 = vmatpush1.msra.mxu0 0.0
    %190 = vmatprep.subr.mxu0 0.0
    %191 = vmatpush1.msra.mxu0 0.0
    %192 = vmatprep.subr.mxu0 0.0
    %193 = vmatpush1.msra.mxu0 0.0
    %194 = vmatprep.subr.mxu0 0.0
    %195 = vmatpush1.msra.mxu0 %v162
    %196 = vmatprep.subr.mxu0 0.0
    %197 = vmatpush2.msra.mxu0 0.0
    %198 = vmatprep.subr.mxu0 0.0
    %199 = vmatpush2.msra.mxu0 0.0
    %200 = vmatprep.subr.mxu0 0.0
    %201 = vmatpush2.msra.mxu0 0.0
    %202 = vmatprep.subr.mxu0 0.0
    %203 = vmatpush2.msra.mxu0 0.0
    %204 = vmatprep.subr.mxu0 0.0
    %205 = vmatpush2.msra.mxu0 0.0
    %206 = vmatprep.subr.mxu0 0.0
    %207 = vmatpush2.msra.mxu0 0.0
    %208 = vmatprep.subr.mxu0 0.0
    %209 = vmatpush2.msra.mxu0 0.0
    %210 = vmatprep.subr.mxu0 0.0
    %211 = vmatpush2.msra.mxu0 0.0
    %212 = vmatprep.subr.mxu0 0.0
    %213 = vmatpush2.msra.mxu0 0.0
    %214 = vmatprep.subr.mxu0 0.0
    %215 = vmatpush2.msra.mxu0 0.0
    %216 = vmatprep.subr.mxu0 0.0
    %217 = vmatpush2.msra.mxu0 0.0
    %218 = vmatprep.subr.mxu0 0.0
    %219 = vmatpush2.msra.mxu0 0.0
    %220 = vmatprep.subr.mxu0 0.0
    %221 = vmatpush2.msra.mxu0 0.0
    %222 = vmatprep.subr.mxu0 0.0
    %223 = vmatpush2.msra.mxu0 0.0
    %224 = vmatprep.subr.mxu0 0.0
    %225 = vmatpush2.msra.mxu0 0.0
    %226 = vmatprep.subr.mxu0 0.0
    %227 = vmatpush2.msra.mxu0 0.0
    %228 = vmatprep.mubr.f32.mxu0 0.0
    %229 = vmatmul.mubr.f32.gmra.mxu0 %v155
    %v230 = vpop.f32.mrf.mxu0
    %v231 = vadd.f32 %v151, %v230
    %v232 = vpop.f32.mrf.mxu0
    %233 = vmatprep.mubr.f32.mxu0 0.0
    %234 = vmatmul.mubr.f32.gmra.mxu0 %v158
    %v235 = vpop.f32.mrf.mxu0
    %v236 = vadd.f32 %v151, %v235
    %v237 = vpop.f32.mrf.mxu0
    %238 = vdwg.mxu0
    %v239 = vld [vmem:[#allocation8] sm:$0xff]
    %v240 = vld [vmem:[#allocation8 + $0x8] sm:$0xff]
    %v241 = vadd.f32 %v231, %v239
    %v242 = vadd.f32 %v236, %v240
    %v243 = vld [vmem:[%s5] sm:$0xff]
    %v244 = vld [vmem:[%s5 + $0x8] sm:$0xff]
    %v245 = vld [vmem:[%s5 + $0x10] sm:$0xff]
    %v246 = vld [vmem:[%s5 + $0x18] sm:$0xff]
    %v247 = vld [vmem:[%s6] sm:$0x1]
    %v249 = vlaneseq
    %v250 = vshrl.u32 %v249, 7
    %v251 = vsub.s32 0, %v250
    %v252 = vrot.slane %v247, %v251
    %vm254 = vcmask 261120
    %v256 = vsel %vm254, %v241, 0
    %v259 = vsel %vm254, %v242, 0
    %261 = vmatprep.subr.mxu0 0.0
    %262 = vmatpush1.msra.mxu0 0.0
    %263 = vmatprep.subr.mxu0 0.0
    %264 = vmatpush1.msra.mxu0 0.0
    %265 = vmatprep.subr.mxu0 0.0
    %266 = vmatpush1.msra.mxu0 0.0
    %267 = vmatprep.subr.mxu0 0.0
    %268 = vmatpush1.msra.mxu0 0.0
    %269 = vmatprep.subr.mxu0 0.0
    %270 = vmatpush1.msra.mxu0 0.0
    %271 = vmatprep.subr.mxu0 0.0
    %272 = vmatpush1.msra.mxu0 0.0
    %273 = vmatprep.subr.mxu0 0.0
    %274 = vmatpush1.msra.mxu0 0.0
    %275 = vmatprep.subr.mxu0 0.0
    %276 = vmatpush1.msra.mxu0 0.0
    %277 = vmatprep.subr.mxu0 0.0
    %278 = vmatpush1.msra.mxu0 0.0
    %279 = vmatprep.subr.mxu0 0.0
    %280 = vmatpush1.msra.mxu0 0.0
    %281 = vmatprep.subr.mxu0 0.0
    %282 = vmatpush1.msra.mxu0 0.0
    %283 = vmatprep.subr.mxu0 0.0
    %284 = vmatpush1.msra.mxu0 0.0
    %285 = vmatprep.subr.mxu0 0.0
    %286 = vmatpush1.msra.mxu0 %v246
    %287 = vmatprep.subr.mxu0 0.0
    %288 = vmatpush1.msra.mxu0 %v245
    %289 = vmatprep.subr.mxu0 0.0
    %290 = vmatpush1.msra.mxu0 %v244
    %291 = vmatprep.subr.mxu0 0.0
    %292 = vmatpush1.msra.mxu0 %v243
    %293 = vmatprep.subr.mxu0 0.0
    %294 = vmatpush2.msra.mxu0 0.0
    %295 = vmatprep.subr.mxu0 0.0
    %296 = vmatpush2.msra.mxu0 0.0
    %297 = vmatprep.subr.mxu0 0.0
    %298 = vmatpush2.msra.mxu0 0.0
    %299 = vmatprep.subr.mxu0 0.0
    %300 = vmatpush2.msra.mxu0 0.0
    %301 = vmatprep.subr.mxu0 0.0
    %302 = vmatpush2.msra.mxu0 0.0
    %303 = vmatprep.subr.mxu0 0.0
    %304 = vmatpush2.msra.mxu0 0.0
    %305 = vmatprep.subr.mxu0 0.0
    %306 = vmatpush2.msra.mxu0 0.0
    %307 = vmatprep.subr.mxu0 0.0
    %308 = vmatpush2.msra.mxu0 0.0
    %309 = vmatprep.subr.mxu0 0.0
    %310 = vmatpush2.msra.mxu0 0.0
    %311 = vmatprep.subr.mxu0 0.0
    %312 = vmatpush2.msra.mxu0 0.0
    %313 = vmatprep.subr.mxu0 0.0
    %314 = vmatpush2.msra.mxu0 0.0
    %315 = vmatprep.subr.mxu0 0.0
    %316 = vmatpush2.msra.mxu0 0.0
    %317 = vmatprep.subr.mxu0 0.0
    %318 = vmatpush2.msra.mxu0 0.0
    %319 = vmatprep.subr.mxu0 0.0
    %320 = vmatpush2.msra.mxu0 0.0
    %321 = vmatprep.subr.mxu0 0.0
    %322 = vmatpush2.msra.mxu0 0.0
    %323 = vmatprep.subr.mxu0 0.0
    %324 = vmatpush2.msra.mxu0 0.0
    %325 = vmatprep.mubr.f32.mxu0 0.0
    %326 = vmatmul.mubr.f32.gmra.mxu0 %v256
    %v327 = vpop.f32.mrf.mxu0
    %v328 = vadd.f32 %v252, %v327
    %v329 = vpop.f32.mrf.mxu0
    %330 = vmatprep.mubr.f32.mxu0 0.0
    %331 = vmatmul.mubr.f32.gmra.mxu0 %v259
    %v332 = vpop.f32.mrf.mxu0
    %v333 = vadd.f32 %v252, %v332
    %v334 = vpop.f32.mrf.mxu0
    %335 = vdwg.mxu0
    %v336 = vld [vmem:[%s7] sm:$0xff]
    %v337 = vld [vmem:[%s7 + $0x8] sm:$0xff]
    %v338 = vld [vmem:[%s7 + $0x10] sm:$0xff]
    %v339 = vld [vmem:[%s7 + $0x18] sm:$0xff]
    %342 = vrot.lane.b32.xlu0 %v328, 96
    %v343 = vpop.permute.xlu0 %342
    %344 = vrot.lane.b32.xlu0 %v333, 96
    %v345 = vpop.permute.xlu0 %344
    %vm346 = vcmask 64512
    %v347 = vsel %vm346, %v328, 0
    %v349 = vsel %vm346, %v333, 0
    %v351 = vsel %vm346, %v343, 0
    %v353 = vsel %vm346, %v345, 0
    %355 = vmatprep.subr.mxu0 0.0
    %356 = vmatpush1.xpose.msra.mxu0 0.0
    %357 = vmatprep.subr.mxu0 0.0
    %358 = vmatpush1.xpose.msra.mxu0 0.0
    %359 = vmatprep.subr.mxu0 0.0
    %360 = vmatpush1.xpose.msra.mxu0 0.0
    %361 = vmatprep.subr.mxu0 0.0
    %362 = vmatpush1.xpose.msra.mxu0 0.0
    %363 = vmatprep.subr.mxu0 0.0
    %364 = vmatpush1.xpose.msra.mxu0 0.0
    %365 = vmatprep.subr.mxu0 0.0
    %366 = vmatpush1.xpose.msra.mxu0 0.0
    %367 = vmatprep.subr.mxu0 0.0
    %368 = vmatpush1.xpose.msra.mxu0 0.0
    %369 = vmatprep.subr.mxu0 0.0
    %370 = vmatpush1.xpose.msra.mxu0 0.0
    %371 = vmatprep.subr.mxu0 0.0
    %372 = vmatpush1.xpose.msra.mxu0 0.0
    %373 = vmatprep.subr.mxu0 0.0
    %374 = vmatpush1.xpose.msra.mxu0 0.0
    %375 = vmatprep.subr.mxu0 0.0
    %376 = vmatpush1.xpose.msra.mxu0 0.0
    %377 = vmatprep.subr.mxu0 0.0
    %378 = vmatpush1.xpose.msra.mxu0 0.0
    %379 = vmatprep.subr.mxu0 0.0
    %380 = vmatpush1.xpose.msra.mxu0 0.0
    %381 = vmatprep.subr.mxu0 0.0
    %382 = vmatpush1.xpose.msra.mxu0 0.0
    %383 = vmatprep.subr.mxu0 0.0
    %384 = vmatpush1.xpose.msra.mxu0 %v353
    %385 = vmatprep.subr.mxu0 0.0
    %386 = vmatpush1.xpose.msra.mxu0 %v351
    %387 = vmatprep.subr.mxu0 0.0
    %388 = vmatpush2.xpose.msra.mxu0 0.0
    %389 = vmatprep.subr.mxu0 0.0
    %390 = vmatpush2.xpose.msra.mxu0 0.0
    %391 = vmatprep.subr.mxu0 0.0
    %392 = vmatpush2.xpose.msra.mxu0 0.0
    %393 = vmatprep.subr.mxu0 0.0
    %394 = vmatpush2.xpose.msra.mxu0 0.0
    %395 = vmatprep.subr.mxu0 0.0
    %396 = vmatpush2.xpose.msra.mxu0 0.0
    %397 = vmatprep.subr.mxu0 0.0
    %398 = vmatpush2.xpose.msra.mxu0 0.0
    %399 = vmatprep.subr.mxu0 0.0
    %400 = vmatpush2.xpose.msra.mxu0 0.0
    %401 = vmatprep.subr.mxu0 0.0
    %402 = vmatpush2.xpose.msra.mxu0 0.0
    %403 = vmatprep.subr.mxu0 0.0
    %404 = vmatpush2.xpose.msra.mxu0 0.0
    %405 = vmatprep.subr.mxu0 0.0
    %406 = vmatpush2.xpose.msra.mxu0 0.0
    %407 = vmatprep.subr.mxu0 0.0
    %408 = vmatpush2.xpose.msra.mxu0 0.0
    %409 = vmatprep.subr.mxu0 0.0
    %410 = vmatpush2.xpose.msra.mxu0 0.0
    %411 = vmatprep.subr.mxu0 0.0
    %412 = vmatpush2.xpose.msra.mxu0 0.0
    %413 = vmatprep.subr.mxu0 0.0
    %414 = vmatpush2.xpose.msra.mxu0 0.0
    %415 = vmatprep.subr.mxu0 0.0
    %416 = vmatpush2.xpose.msra.mxu0 0.0
    %417 = vmatprep.subr.mxu0 0.0
    %418 = vmatpush2.xpose.msra.mxu0 0.0
    %419 = vmatprep.mubr.f32.mxu0 0.0
    %420 = vmatmul.mubr.f32.gmra.mxu0 %v347
    %v421 = vpop.f32.mrf.mxu0
    %v422 = vadd.f32 %v143, %v421
    %v423 = vpop.f32.mrf.mxu0
    %424 = vmatprep.mubr.f32.mxu0 0.0
    %425 = vmatmul.mubr.f32.gmra.mxu0 %v349
    %v426 = vpop.f32.mrf.mxu0
    %v427 = vadd.f32 %v144, %v426
    %v428 = vpop.f32.mrf.mxu0
    %429 = vdwg.mxu0
    %vm430 = vcmask 130048
    %v431 = vsel %vm430, %v422, -inf
    %432 = vmax.xlane.f32.xlu0 %v431
    %v433 = vpop.xlane.xlu0 %432
    %v434 = vsel %vm430, %v427, -inf
    %435 = vmax.xlane.f32.xlu0 %v434
    %v436 = vpop.xlane.xlu0 %435
    %v437 = vsub.f32 %v422, %v433
    %v438 = vsub.f32 %v427, %v436
    %v439 = vmul.f32 %v437, 1.442695
    %v440 = vpow.pop %v439
    %v441 = vmul.f32 %v438, 1.442695
    %v442 = vpow.pop %v441
    %v443 = vsel %vm430, %v440, 0.0
    %444 = vadd.xlane.f32.xlu0 %v443
    %v445 = vpop.xlane.xlu0 %444
    %v446 = vsel %vm430, %v442, 0.0
    %447 = vadd.xlane.f32.xlu0 %v446
    %v448 = vpop.xlane.xlu0 %447
    %v449 = vrcp.pop %v445
    %v450 = vrcp.pop %v448
    %v451 = vmul.f32 %v440, %v449
    %v452 = vmul.f32 %v442, %v450
    %453 = vrot.lane.b32.xlu0 %v328, 64
    %v454 = vpop.permute.xlu0 %453
    %455 = vrot.lane.b32.xlu0 %v333, 64
    %v456 = vpop.permute.xlu0 %455
    %v460 = vsel %vm430, %v451, 0
    %v463 = vsel %vm430, %v452, 0
    %465 = vmatprep.subr.mxu0 0.0
    %466 = vmatpush1.msra.mxu0 0.0
    %467 = vmatprep.subr.mxu0 0.0
    %468 = vmatpush1.msra.mxu0 0.0
    %469 = vmatprep.subr.mxu0 0.0
    %470 = vmatpush1.msra.mxu0 0.0
    %471 = vmatprep.subr.mxu0 0.0
    %472 = vmatpush1.msra.mxu0 0.0
    %473 = vmatprep.subr.mxu0 0.0
    %474 = vmatpush1.msra.mxu0 0.0
    %475 = vmatprep.subr.mxu0 0.0
    %476 = vmatpush1.msra.mxu0 0.0
    %477 = vmatprep.subr.mxu0 0.0
    %478 = vmatpush1.msra.mxu0 0.0
    %479 = vmatprep.subr.mxu0 0.0
    %480 = vmatpush1.msra.mxu0 0.0
    %481 = vmatprep.subr.mxu0 0.0
    %482 = vmatpush1.msra.mxu0 0.0
    %483 = vmatprep.subr.mxu0 0.0
    %484 = vmatpush1.msra.mxu0 0.0
    %485 = vmatprep.subr.mxu0 0.0
    %486 = vmatpush1.msra.mxu0 0.0
    %487 = vmatprep.subr.mxu0 0.0
    %488 = vmatpush1.msra.mxu0 0.0
    %489 = vmatprep.subr.mxu0 0.0
    %490 = vmatpush1.msra.mxu0 0.0
    %491 = vmatprep.subr.mxu0 0.0
    %492 = vmatpush1.msra.mxu0 0.0
    %493 = vmatprep.subr.mxu0 0.0
    %494 = vmatpush1.msra.mxu0 %v456
    %495 = vmatprep.subr.mxu0 0.0
    %496 = vmatpush1.msra.mxu0 %v454
    %497 = vmatprep.subr.mxu0 0.0
    %498 = vmatpush2.msra.mxu0 0.0
    %499 = vmatprep.subr.mxu0 0.0
    %500 = vmatpush2.msra.mxu0 0.0
    %501 = vmatprep.subr.mxu0 0.0
    %502 = vmatpush2.msra.mxu0 0.0
    %503 = vmatprep.subr.mxu0 0.0
    %504 = vmatpush2.msra.mxu0 0.0
    %505 = vmatprep.subr.mxu0 0.0
    %506 = vmatpush2.msra.mxu0 0.0
    %507 = vmatprep.subr.mxu0 0.0
    %508 = vmatpush2.msra.mxu0 0.0
    %509 = vmatprep.subr.mxu0 0.0
    %510 = vmatpush2.msra.mxu0 0.0
    %511 = vmatprep.subr.mxu0 0.0
    %512 = vmatpush2.msra.mxu0 0.0
    %513 = vmatprep.subr.mxu0 0.0
    %514 = vmatpush2.msra.mxu0 0.0
    %515 = vmatprep.subr.mxu0 0.0
    %516 = vmatpush2.msra.mxu0 0.0
    %517 = vmatprep.subr.mxu0 0.0
    %518 = vmatpush2.msra.mxu0 0.0
    %519 = vmatprep.subr.mxu0 0.0
    %520 = vmatpush2.msra.mxu0 0.0
    %521 = vmatprep.subr.mxu0 0.0
    %522 = vmatpush2.msra.mxu0 0.0
    %523 = vmatprep.subr.mxu0 0.0
    %524 = vmatpush2.msra.mxu0 0.0
    %525 = vmatprep.subr.mxu0 0.0
    %526 = vmatpush2.msra.mxu0 0.0
    %527 = vmatprep.subr.mxu0 0.0
    %528 = vmatpush2.msra.mxu0 0.0
    %529 = vmatprep.mubr.f32.mxu0 0.0
    %530 = vmatmul.mubr.f32.gmra.mxu0 %v460
    %v531 = vpop.f32.mrf.mxu0
    %v532 = vadd.f32 0.0, %v531
    %v533 = vpop.f32.mrf.mxu0
    %534 = vmatprep.mubr.f32.mxu0 0.0
    %535 = vmatmul.mubr.f32.gmra.mxu0 %v463
    %v536 = vpop.f32.mrf.mxu0
    %v537 = vadd.f32 0.0, %v536
    %v538 = vpop.f32.mrf.mxu0
    %539 = vdwg.mxu0
    %540 = vrot.lane.b32.xlu0 %v328, 120
    %v541 = vpop.permute.xlu0 %540
    %542 = vrot.lane.b32.xlu0 %v333, 120
    %v543 = vpop.permute.xlu0 %542
    %544 = vrot.lane.b32.xlu0 %v328, 88
    %v545 = vpop.permute.xlu0 %544
    %546 = vrot.lane.b32.xlu0 %v333, 88
    %v547 = vpop.permute.xlu0 %546
    %v548 = vsel %vm346, %v541, 0
    %v550 = vsel %vm346, %v543, 0
    %v552 = vsel %vm346, %v545, 0
    %v554 = vsel %vm346, %v547, 0
    %556 = vmatprep.subr.mxu0 0.0
    %557 = vmatpush1.xpose.msra.mxu0 0.0
    %558 = vmatprep.subr.mxu0 0.0
    %559 = vmatpush1.xpose.msra.mxu0 0.0
    %560 = vmatprep.subr.mxu0 0.0
    %561 = vmatpush1.xpose.msra.mxu0 0.0
    %562 = vmatprep.subr.mxu0 0.0
    %563 = vmatpush1.xpose.msra.mxu0 0.0
    %564 = vmatprep.subr.mxu0 0.0
    %565 = vmatpush1.xpose.msra.mxu0 0.0
    %566 = vmatprep.subr.mxu0 0.0
    %567 = vmatpush1.xpose.msra.mxu0 0.0
    %568 = vmatprep.subr.mxu0 0.0
    %569 = vmatpush1.xpose.msra.mxu0 0.0
    %570 = vmatprep.subr.mxu0 0.0
    %571 = vmatpush1.xpose.msra.mxu0 0.0
    %572 = vmatprep.subr.mxu0 0.0
    %573 = vmatpush1.xpose.msra.mxu0 0.0
    %574 = vmatprep.subr.mxu0 0.0
    %575 = vmatpush1.xpose.msra.mxu0 0.0
    %576 = vmatprep.subr.mxu0 0.0
    %577 = vmatpush1.xpose.msra.mxu0 0.0
    %578 = vmatprep.subr.mxu0 0.0
    %579 = vmatpush1.xpose.msra.mxu0 0.0
    %580 = vmatprep.subr.mxu0 0.0
    %581 = vmatpush1.xpose.msra.mxu0 0.0
    %582 = vmatprep.subr.mxu0 0.0
    %583 = vmatpush1.xpose.msra.mxu0 0.0
    %584 = vmatprep.subr.mxu0 0.0
    %585 = vmatpush1.xpose.msra.mxu0 %v554
    %586 = vmatprep.subr.mxu0 0.0
    %587 = vmatpush1.xpose.msra.mxu0 %v552
    %588 = vmatprep.subr.mxu0 0.0
    %589 = vmatpush2.xpose.msra.mxu0 0.0
    %590 = vmatprep.subr.mxu0 0.0
    %591 = vmatpush2.xpose.msra.mxu0 0.0
    %592 = vmatprep.subr.mxu0 0.0
    %593 = vmatpush2.xpose.msra.mxu0 0.0
    %594 = vmatprep.subr.mxu0 0.0
    %595 = vmatpush2.xpose.msra.mxu0 0.0
    %596 = vmatprep.subr.mxu0 0.0
    %597 = vmatpush2.xpose.msra.mxu0 0.0
    %598 = vmatprep.subr.mxu0 0.0
    %599 = vmatpush2.xpose.msra.mxu0 0.0
    %600 = vmatprep.subr.mxu0 0.0
    %601 = vmatpush2.xpose.msra.mxu0 0.0
    %602 = vmatprep.subr.mxu0 0.0
    %603 = vmatpush2.xpose.msra.mxu0 0.0
    %604 = vmatprep.subr.mxu0 0.0
    %605 = vmatpush2.xpose.msra.mxu0 0.0
    %606 = vmatprep.subr.mxu0 0.0
    %607 = vmatpush2.xpose.msra.mxu0 0.0
    %608 = vmatprep.subr.mxu0 0.0
    %609 = vmatpush2.xpose.msra.mxu0 0.0
    %610 = vmatprep.subr.mxu0 0.0
    %611 = vmatpush2.xpose.msra.mxu0 0.0
    %612 = vmatprep.subr.mxu0 0.0
    %613 = vmatpush2.xpose.msra.mxu0 0.0
    %614 = vmatprep.subr.mxu0 0.0
    %615 = vmatpush2.xpose.msra.mxu0 0.0
    %616 = vmatprep.subr.mxu0 0.0
    %617 = vmatpush2.xpose.msra.mxu0 0.0
    %618 = vmatprep.subr.mxu0 0.0
    %619 = vmatpush2.xpose.msra.mxu0 0.0
    %620 = vmatprep.mubr.f32.mxu0 0.0
    %621 = vmatmul.mubr.f32.gmra.mxu0 %v548
    %v622 = vpop.f32.mrf.mxu0
    %v623 = vadd.f32 %v143, %v622
    %v624 = vpop.f32.mrf.mxu0
    %625 = vmatprep.mubr.f32.mxu0 0.0
    %626 = vmatmul.mubr.f32.gmra.mxu0 %v550
    %v627 = vpop.f32.mrf.mxu0
    %v628 = vadd.f32 %v144, %v627
    %v629 = vpop.f32.mrf.mxu0
    %630 = vdwg.mxu0
    %v631 = vsel %vm430, %v623, -inf
    %632 = vmax.xlane.f32.xlu0 %v631
    %v633 = vpop.xlane.xlu0 %632
    %v634 = vsel %vm430, %v628, -inf
    %635 = vmax.xlane.f32.xlu0 %v634
    %v636 = vpop.xlane.xlu0 %635
    %v637 = vsub.f32 %v623, %v633
    %v638 = vsub.f32 %v628, %v636
    %v639 = vmul.f32 %v637, 1.442695
    %v640 = vpow.pop %v639
    %v641 = vmul.f32 %v638, 1.442695
    %v642 = vpow.pop %v641
    %v643 = vsel %vm430, %v640, 0.0
    %644 = vadd.xlane.f32.xlu0 %v643
    %v645 = vpop.xlane.xlu0 %644
    %v646 = vsel %vm430, %v642, 0.0
    %647 = vadd.xlane.f32.xlu0 %v646
    %v648 = vpop.xlane.xlu0 %647
    %v649 = vrcp.pop %v645
    %v650 = vrcp.pop %v648
    %v651 = vmul.f32 %v640, %v649
    %v652 = vmul.f32 %v642, %v650
    %653 = vrot.lane.b32.xlu0 %v328, 56
    %v654 = vpop.permute.xlu0 %653
    %655 = vrot.lane.b32.xlu0 %v333, 56
    %v656 = vpop.permute.xlu0 %655
    %v660 = vsel %vm430, %v651, 0
    %v663 = vsel %vm430, %v652, 0
    %665 = vmatprep.subr.mxu0 0.0
    %666 = vmatpush1.msra.mxu0 0.0
    %667 = vmatprep.subr.mxu0 0.0
    %668 = vmatpush1.msra.mxu0 0.0
    %669 = vmatprep.subr.mxu0 0.0
    %670 = vmatpush1.msra.mxu0 0.0
    %671 = vmatprep.subr.mxu0 0.0
    %672 = vmatpush1.msra.mxu0 0.0
    %673 = vmatprep.subr.mxu0 0.0
    %674 = vmatpush1.msra.mxu0 0.0
    %675 = vmatprep.subr.mxu0 0.0
    %676 = vmatpush1.msra.mxu0 0.0
    %677 = vmatprep.subr.mxu0 0.0
    %678 = vmatpush1.msra.mxu0 0.0
    %679 = vmatprep.subr.mxu0 0.0
    %680 = vmatpush1.msra.mxu0 0.0
    %681 = vmatprep.subr.mxu0 0.0
    %682 = vmatpush1.msra.mxu0 0.0
    %683 = vmatprep.subr.mxu0 0.0
    %684 = vmatpush1.msra.mxu0 0.0
    %685 = vmatprep.subr.mxu0 0.0
    %686 = vmatpush1.msra.mxu0 0.0
    %687 = vmatprep.subr.mxu0 0.0
    %688 = vmatpush1.msra.mxu0 0.0
    %689 = vmatprep.subr.mxu0 0.0
    %690 = vmatpush1.msra.mxu0 0.0
    %691 = vmatprep.subr.mxu0 0.0
    %692 = vmatpush1.msra.mxu0 0.0
    %693 = vmatprep.subr.mxu0 0.0
    %694 = vmatpush1.msra.mxu0 %v656
    %695 = vmatprep.subr.mxu0 0.0
    %696 = vmatpush1.msra.mxu0 %v654
    %697 = vmatprep.subr.mxu0 0.0
    %698 = vmatpush2.msra.mxu0 0.0
    %699 = vmatprep.subr.mxu0 0.0
    %700 = vmatpush2.msra.mxu0 0.0
    %701 = vmatprep.subr.mxu0 0.0
    %702 = vmatpush2.msra.mxu0 0.0
    %703 = vmatprep.subr.mxu0 0.0
    %704 = vmatpush2.msra.mxu0 0.0
    %705 = vmatprep.subr.mxu0 0.0
    %706 = vmatpush2.msra.mxu0 0.0
    %707 = vmatprep.subr.mxu0 0.0
    %708 = vmatpush2.msra.mxu0 0.0
    %709 = vmatprep.subr.mxu0 0.0
    %710 = vmatpush2.msra.mxu0 0.0
    %711 = vmatprep.subr.mxu0 0.0
    %712 = vmatpush2.msra.mxu0 0.0
    %713 = vmatprep.subr.mxu0 0.0
    %714 = vmatpush2.msra.mxu0 0.0
    %715 = vmatprep.subr.mxu0 0.0
    %716 = vmatpush2.msra.mxu0 0.0
    %717 = vmatprep.subr.mxu0 0.0
    %718 = vmatpush2.msra.mxu0 0.0
    %719 = vmatprep.subr.mxu0 0.0
    %720 = vmatpush2.msra.mxu0 0.0
    %721 = vmatprep.subr.mxu0 0.0
    %722 = vmatpush2.msra.mxu0 0.0
    %723 = vmatprep.subr.mxu0 0.0
    %724 = vmatpush2.msra.mxu0 0.0
    %725 = vmatprep.subr.mxu0 0.0
    %726 = vmatpush2.msra.mxu0 0.0
    %727 = vmatprep.subr.mxu0 0.0
    %728 = vmatpush2.msra.mxu0 0.0
    %729 = vmatprep.mubr.f32.mxu0 0.0
    %730 = vmatmul.mubr.f32.gmra.mxu0 %v660
    %v731 = vpop.f32.mrf.mxu0
    %v732 = vadd.f32 0.0, %v731
    %v733 = vpop.f32.mrf.mxu0
    %734 = vmatprep.mubr.f32.mxu0 0.0
    %735 = vmatmul.mubr.f32.gmra.mxu0 %v663
    %v736 = vpop.f32.mrf.mxu0
    %v737 = vadd.f32 0.0, %v736
    %v738 = vpop.f32.mrf.mxu0
    %739 = vdwg.mxu0
    %v741 = vsel %vm346, %v732, 0
    %v744 = vsel %vm346, %v737, 0
    %746 = vmatprep.subr.mxu0 0.0
    %747 = vmatpush1.msra.mxu0 0.0
    %748 = vmatprep.subr.mxu0 0.0
    %749 = vmatpush1.msra.mxu0 0.0
    %750 = vmatprep.subr.mxu0 0.0
    %751 = vmatpush1.msra.mxu0 0.0
    %752 = vmatprep.subr.mxu0 0.0
    %753 = vmatpush1.msra.mxu0 0.0
    %754 = vmatprep.subr.mxu0 0.0
    %755 = vmatpush1.msra.mxu0 0.0
    %756 = vmatprep.subr.mxu0 0.0
    %757 = vmatpush1.msra.mxu0 0.0
    %758 = vmatprep.subr.mxu0 0.0
    %759 = vmatpush1.msra.mxu0 0.0
    %760 = vmatprep.subr.mxu0 0.0
    %761 = vmatpush1.msra.mxu0 0.0
    %762 = vmatprep.subr.mxu0 0.0
    %763 = vmatpush1.msra.mxu0 0.0
    %764 = vmatprep.subr.mxu0 0.0
    %765 = vmatpush1.msra.mxu0 0.0
    %766 = vmatprep.subr.mxu0 0.0
    %767 = vmatpush1.msra.mxu0 0.0
    %768 = vmatprep.subr.mxu0 0.0
    %769 = vmatpush1.msra.mxu0 0.0
    %770 = vmatprep.subr.mxu0 0.0
    %771 = vmatpush1.msra.mxu0 0.0
    %772 = vmatprep.subr.mxu0 0.0
    %773 = vmatpush1.msra.mxu0 0.0
    %774 = vmatprep.subr.mxu0 0.0
    %775 = vmatpush1.msra.mxu0 0.0
    %776 = vmatprep.subr.mxu0 0.0
    %777 = vmatpush1.msra.mxu0 %v337
    %778 = vmatprep.subr.mxu0 0.0
    %779 = vmatpush2.msra.mxu0 0.0
    %780 = vmatprep.subr.mxu0 0.0
    %781 = vmatpush2.msra.mxu0 0.0
    %782 = vmatprep.subr.mxu0 0.0
    %783 = vmatpush2.msra.mxu0 0.0
    %784 = vmatprep.subr.mxu0 0.0
    %785 = vmatpush2.msra.mxu0 0.0
    %786 = vmatprep.subr.mxu0 0.0
    %787 = vmatpush2.msra.mxu0 0.0
    %788 = vmatprep.subr.mxu0 0.0
    %789 = vmatpush2.msra.mxu0 0.0
    %790 = vmatprep.subr.mxu0 0.0
    %791 = vmatpush2.msra.mxu0 0.0
    %792 = vmatprep.subr.mxu0 0.0
    %793 = vmatpush2.msra.mxu0 0.0
    %794 = vmatprep.subr.mxu0 0.0
    %795 = vmatpush2.msra.mxu0 0.0
    %796 = vmatprep.subr.mxu0 0.0
    %797 = vmatpush2.msra.mxu0 0.0
    %798 = vmatprep.subr.mxu0 0.0
    %799 = vmatpush2.msra.mxu0 0.0
    %800 = vmatprep.subr.mxu0 0.0
    %801 = vmatpush2.msra.mxu0 0.0
    %802 = vmatprep.subr.mxu0 0.0
    %803 = vmatpush2.msra.mxu0 0.0
    %804 = vmatprep.subr.mxu0 0.0
    %805 = vmatpush2.msra.mxu0 0.0
    %806 = vmatprep.subr.mxu0 0.0
    %807 = vmatpush2.msra.mxu0 0.0
    %808 = vmatprep.subr.mxu0 0.0
    %809 = vmatpush2.msra.mxu0 0.0
    %810 = vmatprep.mubr.f32.mxu0 0.0
    %811 = vmatmul.mubr.f32.gmra.mxu0 %v741
    %v812 = vpop.f32.mrf.mxu0
    %v813 = vadd.f32 0.0, %v812
    %v814 = vpop.f32.mrf.mxu0
    %815 = vmatprep.mubr.f32.mxu0 0.0
    %816 = vmatmul.mubr.f32.gmra.mxu0 %v744
    %v817 = vpop.f32.mrf.mxu0
    %v818 = vadd.f32 0.0, %v817
    %v819 = vpop.f32.mrf.mxu0
    %820 = vdwg.mxu0
    %v822 = vsel %vm346, %v532, 0
    %v825 = vsel %vm346, %v537, 0
    %827 = vmatprep.subr.mxu0 0.0
    %828 = vmatpush1.msra.mxu0 0.0
    %829 = vmatprep.subr.mxu0 0.0
    %830 = vmatpush1.msra.mxu0 0.0
    %831 = vmatprep.subr.mxu0 0.0
    %832 = vmatpush1.msra.mxu0 0.0
    %833 = vmatprep.subr.mxu0 0.0
    %834 = vmatpush1.msra.mxu0 0.0
    %835 = vmatprep.subr.mxu0 0.0
    %836 = vmatpush1.msra.mxu0 0.0
    %837 = vmatprep.subr.mxu0 0.0
    %838 = vmatpush1.msra.mxu0 0.0
    %839 = vmatprep.subr.mxu0 0.0
    %840 = vmatpush1.msra.mxu0 0.0
    %841 = vmatprep.subr.mxu0 0.0
    %842 = vmatpush1.msra.mxu0 0.0
    %843 = vmatprep.subr.mxu0 0.0
    %844 = vmatpush1.msra.mxu0 0.0
    %845 = vmatprep.subr.mxu0 0.0
    %846 = vmatpush1.msra.mxu0 0.0
    %847 = vmatprep.subr.mxu0 0.0
    %848 = vmatpush1.msra.mxu0 0.0
    %849 = vmatprep.subr.mxu0 0.0
    %850 = vmatpush1.msra.mxu0 0.0
    %851 = vmatprep.subr.mxu0 0.0
    %852 = vmatpush1.msra.mxu0 0.0
    %853 = vmatprep.subr.mxu0 0.0
    %854 = vmatpush1.msra.mxu0 0.0
    %855 = vmatprep.subr.mxu0 0.0
    %856 = vmatpush1.msra.mxu0 0.0
    %857 = vmatprep.subr.mxu0 0.0
    %858 = vmatpush1.msra.mxu0 %v336
    %859 = vmatprep.subr.mxu0 0.0
    %860 = vmatpush2.msra.mxu0 0.0
    %861 = vmatprep.subr.mxu0 0.0
    %862 = vmatpush2.msra.mxu0 0.0
    %863 = vmatprep.subr.mxu0 0.0
    %864 = vmatpush2.msra.mxu0 0.0
    %865 = vmatprep.subr.mxu0 0.0
    %866 = vmatpush2.msra.mxu0 0.0
    %867 = vmatprep.subr.mxu0 0.0
    %868 = vmatpush2.msra.mxu0 0.0
    %869 = vmatprep.subr.mxu0 0.0
    %870 = vmatpush2.msra.mxu0 0.0
    %871 = vmatprep.subr.mxu0 0.0
    %872 = vmatpush2.msra.mxu0 0.0
    %873 = vmatprep.subr.mxu0 0.0
    %874 = vmatpush2.msra.mxu0 0.0
    %875 = vmatprep.subr.mxu0 0.0
    %876 = vmatpush2.msra.mxu0 0.0
    %877 = vmatprep.subr.mxu0 0.0
    %878 = vmatpush2.msra.mxu0 0.0
    %879 = vmatprep.subr.mxu0 0.0
    %880 = vmatpush2.msra.mxu0 0.0
    %881 = vmatprep.subr.mxu0 0.0
    %882 = vmatpush2.msra.mxu0 0.0
    %883 = vmatprep.subr.mxu0 0.0
    %884 = vmatpush2.msra.mxu0 0.0
    %885 = vmatprep.subr.mxu0 0.0
    %886 = vmatpush2.msra.mxu0 0.0
    %887 = vmatprep.subr.mxu0 0.0
    %888 = vmatpush2.msra.mxu0 0.0
    %889 = vmatprep.subr.mxu0 0.0
    %890 = vmatpush2.msra.mxu0 0.0
    %891 = vmatprep.mubr.f32.mxu0 0.0
    %892 = vmatmul.mubr.f32.gmra.mxu0 %v822
    %v893 = vpop.f32.mrf.mxu0
    %v894 = vadd.f32 %v813, %v893
    %v895 = vpop.f32.mrf.mxu0
    %896 = vmatprep.mubr.f32.mxu0 0.0
    %897 = vmatmul.mubr.f32.gmra.mxu0 %v825
    %v898 = vpop.f32.mrf.mxu0
    %v899 = vadd.f32 %v818, %v898
    %v900 = vpop.f32.mrf.mxu0
    %901 = vdwg.mxu0
    %902 = vrot.lane.b32.xlu0 %v328, 112
    %v903 = vpop.permute.xlu0 %902
    %904 = vrot.lane.b32.xlu0 %v333, 112
    %v905 = vpop.permute.xlu0 %904
    %906 = vrot.lane.b32.xlu0 %v328, 80
    %v907 = vpop.permute.xlu0 %906
    %908 = vrot.lane.b32.xlu0 %v333, 80
    %v909 = vpop.permute.xlu0 %908
    %v910 = vsel %vm346, %v903, 0
    %v912 = vsel %vm346, %v905, 0
    %v914 = vsel %vm346, %v907, 0
    %v916 = vsel %vm346, %v909, 0
    %918 = vmatprep.subr.mxu0 0.0
    %919 = vmatpush1.xpose.msra.mxu0 0.0
    %920 = vmatprep.subr.mxu0 0.0
    %921 = vmatpush1.xpose.msra.mxu0 0.0
    %922 = vmatprep.subr.mxu0 0.0
    %923 = vmatpush1.xpose.msra.mxu0 0.0
    %924 = vmatprep.subr.mxu0 0.0
    %925 = vmatpush1.xpose.msra.mxu0 0.0
    %926 = vmatprep.subr.mxu0 0.0
    %927 = vmatpush1.xpose.msra.mxu0 0.0
    %928 = vmatprep.subr.mxu0 0.0
    %929 = vmatpush1.xpose.msra.mxu0 0.0
    %930 = vmatprep.subr.mxu0 0.0
    %931 = vmatpush1.xpose.msra.mxu0 0.0
    %932 = vmatprep.subr.mxu0 0.0
    %933 = vmatpush1.xpose.msra.mxu0 0.0
    %934 = vmatprep.subr.mxu0 0.0
    %935 = vmatpush1.xpose.msra.mxu0 0.0
    %936 = vmatprep.subr.mxu0 0.0
    %937 = vmatpush1.xpose.msra.mxu0 0.0
    %938 = vmatprep.subr.mxu0 0.0
    %939 = vmatpush1.xpose.msra.mxu0 0.0
    %940 = vmatprep.subr.mxu0 0.0
    %941 = vmatpush1.xpose.msra.mxu0 0.0
    %942 = vmatprep.subr.mxu0 0.0
    %943 = vmatpush1.xpose.msra.mxu0 0.0
    %944 = vmatprep.subr.mxu0 0.0
    %945 = vmatpush1.xpose.msra.mxu0 0.0
    %946 = vmatprep.subr.mxu0 0.0
    %947 = vmatpush1.xpose.msra.mxu0 %v916
    %948 = vmatprep.subr.mxu0 0.0
    %949 = vmatpush1.xpose.msra.mxu0 %v914
    %950 = vmatprep.subr.mxu0 0.0
    %951 = vmatpush2.xpose.msra.mxu0 0.0
    %952 = vmatprep.subr.mxu0 0.0
    %953 = vmatpush2.xpose.msra.mxu0 0.0
    %954 = vmatprep.subr.mxu0 0.0
    %955 = vmatpush2.xpose.msra.mxu0 0.0
    %956 = vmatprep.subr.mxu0 0.0
    %957 = vmatpush2.xpose.msra.mxu0 0.0
    %958 = vmatprep.subr.mxu0 0.0
    %959 = vmatpush2.xpose.msra.mxu0 0.0
    %960 = vmatprep.subr.mxu0 0.0
    %961 = vmatpush2.xpose.msra.mxu0 0.0
    %962 = vmatprep.subr.mxu0 0.0
    %963 = vmatpush2.xpose.msra.mxu0 0.0
    %964 = vmatprep.subr.mxu0 0.0
    %965 = vmatpush2.xpose.msra.mxu0 0.0
    %966 = vmatprep.subr.mxu0 0.0
    %967 = vmatpush2.xpose.msra.mxu0 0.0
    %968 = vmatprep.subr.mxu0 0.0
    %969 = vmatpush2.xpose.msra.mxu0 0.0
    %970 = vmatprep.subr.mxu0 0.0
    %971 = vmatpush2.xpose.msra.mxu0 0.0
    %972 = vmatprep.subr.mxu0 0.0
    %973 = vmatpush2.xpose.msra.mxu0 0.0
    %974 = vmatprep.subr.mxu0 0.0
    %975 = vmatpush2.xpose.msra.mxu0 0.0
    %976 = vmatprep.subr.mxu0 0.0
    %977 = vmatpush2.xpose.msra.mxu0 0.0
    %978 = vmatprep.subr.mxu0 0.0
    %979 = vmatpush2.xpose.msra.mxu0 0.0
    %980 = vmatprep.subr.mxu0 0.0
    %981 = vmatpush2.xpose.msra.mxu0 0.0
    %982 = vmatprep.mubr.f32.mxu0 0.0
    %983 = vmatmul.mubr.f32.gmra.mxu0 %v910
    %v984 = vpop.f32.mrf.mxu0
    %v985 = vadd.f32 %v143, %v984
    %v986 = vpop.f32.mrf.mxu0
    %987 = vmatprep.mubr.f32.mxu0 0.0
    %988 = vmatmul.mubr.f32.gmra.mxu0 %v912
    %v989 = vpop.f32.mrf.mxu0
    %v990 = vadd.f32 %v144, %v989
    %v991 = vpop.f32.mrf.mxu0
    %992 = vdwg.mxu0
    %v993 = vsel %vm430, %v985, -inf
    %994 = vmax.xlane.f32.xlu0 %v993
    %v995 = vpop.xlane.xlu0 %994
    %v996 = vsel %vm430, %v990, -inf
    %997 = vmax.xlane.f32.xlu0 %v996
    %v998 = vpop.xlane.xlu0 %997
    %v999 = vsub.f32 %v985, %v995
    %v1000 = vsub.f32 %v990, %v998
    %v1001 = vmul.f32 %v999, 1.442695
    %v1002 = vpow.pop %v1001
    %v1003 = vmul.f32 %v1000, 1.442695
    %v1004 = vpow.pop %v1003
    %v1005 = vsel %vm430, %v1002, 0.0
    %1006 = vadd.xlane.f32.xlu0 %v1005
    %v1007 = vpop.xlane.xlu0 %1006
    %v1008 = vsel %vm430, %v1004, 0.0
    %1009 = vadd.xlane.f32.xlu0 %v1008
    %v1010 = vpop.xlane.xlu0 %1009
    %v1011 = vrcp.pop %v1007
    %v1012 = vrcp.pop %v1010
    %v1013 = vmul.f32 %v1002, %v1011
    %v1014 = vmul.f32 %v1004, %v1012
    %1015 = vrot.lane.b32.xlu0 %v328, 48
    %v1016 = vpop.permute.xlu0 %1015
    %1017 = vrot.lane.b32.xlu0 %v333, 48
    %v1018 = vpop.permute.xlu0 %1017
    %v1022 = vsel %vm430, %v1013, 0
    %v1025 = vsel %vm430, %v1014, 0
    %1027 = vmatprep.subr.mxu0 0.0
    %1028 = vmatpush1.msra.mxu0 0.0
    %1029 = vmatprep.subr.mxu0 0.0
    %1030 = vmatpush1.msra.mxu0 0.0
    %1031 = vmatprep.subr.mxu0 0.0
    %1032 = vmatpush1.msra.mxu0 0.0
    %1033 = vmatprep.subr.mxu0 0.0
    %1034 = vmatpush1.msra.mxu0 0.0
    %1035 = vmatprep.subr.mxu0 0.0
    %1036 = vmatpush1.msra.mxu0 0.0
    %1037 = vmatprep.subr.mxu0 0.0
    %1038 = vmatpush1.msra.mxu0 0.0
    %1039 = vmatprep.subr.mxu0 0.0
    %1040 = vmatpush1.msra.mxu0 0.0
    %1041 = vmatprep.subr.mxu0 0.0
    %1042 = vmatpush1.msra.mxu0 0.0
    %1043 = vmatprep.subr.mxu0 0.0
    %1044 = vmatpush1.msra.mxu0 0.0
    %1045 = vmatprep.subr.mxu0 0.0
    %1046 = vmatpush1.msra.mxu0 0.0
    %1047 = vmatprep.subr.mxu0 0.0
    %1048 = vmatpush1.msra.mxu0 0.0
    %1049 = vmatprep.subr.mxu0 0.0
    %1050 = vmatpush1.msra.mxu0 0.0
    %1051 = vmatprep.subr.mxu0 0.0
    %1052 = vmatpush1.msra.mxu0 0.0
    %1053 = vmatprep.subr.mxu0 0.0
    %1054 = vmatpush1.msra.mxu0 0.0
    %1055 = vmatprep.subr.mxu0 0.0
    %1056 = vmatpush1.msra.mxu0 %v1018
    %1057 = vmatprep.subr.mxu0 0.0
    %1058 = vmatpush1.msra.mxu0 %v1016
    %1059 = vmatprep.subr.mxu0 0.0
    %1060 = vmatpush2.msra.mxu0 0.0
    %1061 = vmatprep.subr.mxu0 0.0
    %1062 = vmatpush2.msra.mxu0 0.0
    %1063 = vmatprep.subr.mxu0 0.0
    %1064 = vmatpush2.msra.mxu0 0.0
    %1065 = vmatprep.subr.mxu0 0.0
    %1066 = vmatpush2.msra.mxu0 0.0
    %1067 = vmatprep.subr.mxu0 0.0
    %1068 = vmatpush2.msra.mxu0 0.0
    %1069 = vmatprep.subr.mxu0 0.0
    %1070 = vmatpush2.msra.mxu0 0.0
    %1071 = vmatprep.subr.mxu0 0.0
    %1072 = vmatpush2.msra.mxu0 0.0
    %1073 = vmatprep.subr.mxu0 0.0
    %1074 = vmatpush2.msra.mxu0 0.0
    %1075 = vmatprep.subr.mxu0 0.0
    %1076 = vmatpush2.msra.mxu0 0.0
    %1077 = vmatprep.subr.mxu0 0.0
    %1078 = vmatpush2.msra.mxu0 0.0
    %1079 = vmatprep.subr.mxu0 0.0
    %1080 = vmatpush2.msra.mxu0 0.0
    %1081 = vmatprep.subr.mxu0 0.0
    %1082 = vmatpush2.msra.mxu0 0.0
    %1083 = vmatprep.subr.mxu0 0.0
    %1084 = vmatpush2.msra.mxu0 0.0
    %1085 = vmatprep.subr.mxu0 0.0
    %1086 = vmatpush2.msra.mxu0 0.0
    %1087 = vmatprep.subr.mxu0 0.0
    %1088 = vmatpush2.msra.mxu0 0.0
    %1089 = vmatprep.subr.mxu0 0.0
    %1090 = vmatpush2.msra.mxu0 0.0
    %1091 = vmatprep.mubr.f32.mxu0 0.0
    %1092 = vmatmul.mubr.f32.gmra.mxu0 %v1022
    %v1093 = vpop.f32.mrf.mxu0
    %v1094 = vadd.f32 0.0, %v1093
    %v1095 = vpop.f32.mrf.mxu0
    %1096 = vmatprep.mubr.f32.mxu0 0.0
    %1097 = vmatmul.mubr.f32.gmra.mxu0 %v1025
    %v1098 = vpop.f32.mrf.mxu0
    %v1099 = vadd.f32 0.0, %v1098
    %v1100 = vpop.f32.mrf.mxu0
    %1101 = vdwg.mxu0
    %v1103 = vsel %vm346, %v1094, 0
    %v1106 = vsel %vm346, %v1099, 0
    %1108 = vmatprep.subr.mxu0 0.0
    %1109 = vmatpush1.msra.mxu0 0.0
    %1110 = vmatprep.subr.mxu0 0.0
    %1111 = vmatpush1.msra.mxu0 0.0
    %1112 = vmatprep.subr.mxu0 0.0
    %1113 = vmatpush1.msra.mxu0 0.0
    %1114 = vmatprep.subr.mxu0 0.0
    %1115 = vmatpush1.msra.mxu0 0.0
    %1116 = vmatprep.subr.mxu0 0.0
    %1117 = vmatpush1.msra.mxu0 0.0
    %1118 = vmatprep.subr.mxu0 0.0
    %1119 = vmatpush1.msra.mxu0 0.0
    %1120 = vmatprep.subr.mxu0 0.0
    %1121 = vmatpush1.msra.mxu0 0.0
    %1122 = vmatprep.subr.mxu0 0.0
    %1123 = vmatpush1.msra.mxu0 0.0
    %1124 = vmatprep.subr.mxu0 0.0
    %1125 = vmatpush1.msra.mxu0 0.0
    %1126 = vmatprep.subr.mxu0 0.0
    %1127 = vmatpush1.msra.mxu0 0.0
    %1128 = vmatprep.subr.mxu0 0.0
    %1129 = vmatpush1.msra.mxu0 0.0
    %1130 = vmatprep.subr.mxu0 0.0
    %1131 = vmatpush1.msra.mxu0 0.0
    %1132 = vmatprep.subr.mxu0 0.0
    %1133 = vmatpush1.msra.mxu0 0.0
    %1134 = vmatprep.subr.mxu0 0.0
    %1135 = vmatpush1.msra.mxu0 0.0
    %1136 = vmatprep.subr.mxu0 0.0
    %1137 = vmatpush1.msra.mxu0 0.0
    %1138 = vmatprep.subr.mxu0 0.0
    %1139 = vmatpush1.msra.mxu0 %v338
    %1140 = vmatprep.subr.mxu0 0.0
    %1141 = vmatpush2.msra.mxu0 0.0
    %1142 = vmatprep.subr.mxu0 0.0
    %1143 = vmatpush2.msra.mxu0 0.0
    %1144 = vmatprep.subr.mxu0 0.0
    %1145 = vmatpush2.msra.mxu0 0.0
    %1146 = vmatprep.subr.mxu0 0.0
    %1147 = vmatpush2.msra.mxu0 0.0
    %1148 = vmatprep.subr.mxu0 0.0
    %1149 = vmatpush2.msra.mxu0 0.0
    %1150 = vmatprep.subr.mxu0 0.0
    %1151 = vmatpush2.msra.mxu0 0.0
    %1152 = vmatprep.subr.mxu0 0.0
    %1153 = vmatpush2.msra.mxu0 0.0
    %1154 = vmatprep.subr.mxu0 0.0
    %1155 = vmatpush2.msra.mxu0 0.0
    %1156 = vmatprep.subr.mxu0 0.0
    %1157 = vmatpush2.msra.mxu0 0.0
    %1158 = vmatprep.subr.mxu0 0.0
    %1159 = vmatpush2.msra.mxu0 0.0
    %1160 = vmatprep.subr.mxu0 0.0
    %1161 = vmatpush2.msra.mxu0 0.0
    %1162 = vmatprep.subr.mxu0 0.0
    %1163 = vmatpush2.msra.mxu0 0.0
    %1164 = vmatprep.subr.mxu0 0.0
    %1165 = vmatpush2.msra.mxu0 0.0
    %1166 = vmatprep.subr.mxu0 0.0
    %1167 = vmatpush2.msra.mxu0 0.0
    %1168 = vmatprep.subr.mxu0 0.0
    %1169 = vmatpush2.msra.mxu0 0.0
    %1170 = vmatprep.subr.mxu0 0.0
    %1171 = vmatpush2.msra.mxu0 0.0
    %1172 = vmatprep.mubr.f32.mxu0 0.0
    %1173 = vmatmul.mubr.f32.gmra.mxu0 %v1103
    %v1174 = vpop.f32.mrf.mxu0
    %v1175 = vadd.f32 0.0, %v1174
    %v1176 = vpop.f32.mrf.mxu0
    %1177 = vmatprep.mubr.f32.mxu0 0.0
    %1178 = vmatmul.mubr.f32.gmra.mxu0 %v1106
    %v1179 = vpop.f32.mrf.mxu0
    %v1180 = vadd.f32 0.0, %v1179
    %v1181 = vpop.f32.mrf.mxu0
    %1182 = vdwg.mxu0
    %v1183 = vadd.f32 %v894, %v1175
    %v1184 = vadd.f32 %v899, %v1180
    %1185 = vrot.lane.b32.xlu0 %v328, 104
    %v1186 = vpop.permute.xlu0 %1185
    %1187 = vrot.lane.b32.xlu0 %v333, 104
    %v1188 = vpop.permute.xlu0 %1187
    %1189 = vrot.lane.b32.xlu0 %v328, 72
    %v1190 = vpop.permute.xlu0 %1189
    %1191 = vrot.lane.b32.xlu0 %v333, 72
    %v1192 = vpop.permute.xlu0 %1191
    %v1193 = vsel %vm346, %v1186, 0
    %v1195 = vsel %vm346, %v1188, 0
    %v1197 = vsel %vm346, %v1190, 0
    %v1199 = vsel %vm346, %v1192, 0
    %1201 = vmatprep.subr.mxu0 0.0
    %1202 = vmatpush1.xpose.msra.mxu0 0.0
    %1203 = vmatprep.subr.mxu0 0.0
    %1204 = vmatpush1.xpose.msra.mxu0 0.0
    %1205 = vmatprep.subr.mxu0 0.0
    %1206 = vmatpush1.xpose.msra.mxu0 0.0
    %1207 = vmatprep.subr.mxu0 0.0
    %1208 = vmatpush1.xpose.msra.mxu0 0.0
    %1209 = vmatprep.subr.mxu0 0.0
    %1210 = vmatpush1.xpose.msra.mxu0 0.0
    %1211 = vmatprep.subr.mxu0 0.0
    %1212 = vmatpush1.xpose.msra.mxu0 0.0
    %1213 = vmatprep.subr.mxu0 0.0
    %1214 = vmatpush1.xpose.msra.mxu0 0.0
    %1215 = vmatprep.subr.mxu0 0.0
    %1216 = vmatpush1.xpose.msra.mxu0 0.0
    %1217 = vmatprep.subr.mxu0 0.0
    %1218 = vmatpush1.xpose.msra.mxu0 0.0
    %1219 = vmatprep.subr.mxu0 0.0
    %1220 = vmatpush1.xpose.msra.mxu0 0.0
    %1221 = vmatprep.subr.mxu0 0.0
    %1222 = vmatpush1.xpose.msra.mxu0 0.0
    %1223 = vmatprep.subr.mxu0 0.0
    %1224 = vmatpush1.xpose.msra.mxu0 0.0
    %1225 = vmatprep.subr.mxu0 0.0
    %1226 = vmatpush1.xpose.msra.mxu0 0.0
    %1227 = vmatprep.subr.mxu0 0.0
    %1228 = vmatpush1.xpose.msra.mxu0 0.0
    %1229 = vmatprep.subr.mxu0 0.0
    %1230 = vmatpush1.xpose.msra.mxu0 %v1199
    %1231 = vmatprep.subr.mxu0 0.0
    %1232 = vmatpush1.xpose.msra.mxu0 %v1197
    %1233 = vmatprep.subr.mxu0 0.0
    %1234 = vmatpush2.xpose.msra.mxu0 0.0
    %1235 = vmatprep.subr.mxu0 0.0
    %1236 = vmatpush2.xpose.msra.mxu0 0.0
    %1237 = vmatprep.subr.mxu0 0.0
    %1238 = vmatpush2.xpose.msra.mxu0 0.0
    %1239 = vmatprep.subr.mxu0 0.0
    %1240 = vmatpush2.xpose.msra.mxu0 0.0
    %1241 = vmatprep.subr.mxu0 0.0
    %1242 = vmatpush2.xpose.msra.mxu0 0.0
    %1243 = vmatprep.subr.mxu0 0.0
    %1244 = vmatpush2.xpose.msra.mxu0 0.0
    %1245 = vmatprep.subr.mxu0 0.0
    %1246 = vmatpush2.xpose.msra.mxu0 0.0
    %1247 = vmatprep.subr.mxu0 0.0
    %1248 = vmatpush2.xpose.msra.mxu0 0.0
    %1249 = vmatprep.subr.mxu0 0.0
    %1250 = vmatpush2.xpose.msra.mxu0 0.0
    %1251 = vmatprep.subr.mxu0 0.0
    %1252 = vmatpush2.xpose.msra.mxu0 0.0
    %1253 = vmatprep.subr.mxu0 0.0
    %1254 = vmatpush2.xpose.msra.mxu0 0.0
    %1255 = vmatprep.subr.mxu0 0.0
    %1256 = vmatpush2.xpose.msra.mxu0 0.0
    %1257 = vmatprep.subr.mxu0 0.0
    %1258 = vmatpush2.xpose.msra.mxu0 0.0
    %1259 = vmatprep.subr.mxu0 0.0
    %1260 = vmatpush2.xpose.msra.mxu0 0.0
    %1261 = vmatprep.subr.mxu0 0.0
    %1262 = vmatpush2.xpose.msra.mxu0 0.0
    %1263 = vmatprep.subr.mxu0 0.0
    %1264 = vmatpush2.xpose.msra.mxu0 0.0
    %1265 = vmatprep.mubr.f32.mxu0 0.0
    %1266 = vmatmul.mubr.f32.gmra.mxu0 %v1193
    %v1267 = vpop.f32.mrf.mxu0
    %v1268 = vadd.f32 %v143, %v1267
    %v1269 = vpop.f32.mrf.mxu0
    %1270 = vmatprep.mubr.f32.mxu0 0.0
    %1271 = vmatmul.mubr.f32.gmra.mxu0 %v1195
    %v1272 = vpop.f32.mrf.mxu0
    %v1273 = vadd.f32 %v144, %v1272
    %v1274 = vpop.f32.mrf.mxu0
    %1275 = vdwg.mxu0
    %v1276 = vsel %vm430, %v1268, -inf
    %1277 = vmax.xlane.f32.xlu0 %v1276
    %v1278 = vpop.xlane.xlu0 %1277
    %v1279 = vsel %vm430, %v1273, -inf
    %1280 = vmax.xlane.f32.xlu0 %v1279
    %v1281 = vpop.xlane.xlu0 %1280
    %v1282 = vsub.f32 %v1268, %v1278
    %v1283 = vsub.f32 %v1273, %v1281
    %v1284 = vmul.f32 %v1282, 1.442695
    %v1285 = vpow.pop %v1284
    %v1286 = vmul.f32 %v1283, 1.442695
    %v1287 = vpow.pop %v1286
    %v1288 = vsel %vm430, %v1285, 0.0
    %1289 = vadd.xlane.f32.xlu0 %v1288
    %v1290 = vpop.xlane.xlu0 %1289
    %v1291 = vsel %vm430, %v1287, 0.0
    %1292 = vadd.xlane.f32.xlu0 %v1291
    %v1293 = vpop.xlane.xlu0 %1292
    %v1294 = vrcp.pop %v1290
    %v1295 = vrcp.pop %v1293
    %v1296 = vmul.f32 %v1285, %v1294
    %v1297 = vmul.f32 %v1287, %v1295
    %1298 = vrot.lane.b32.xlu0 %v328, 40
    %v1299 = vpop.permute.xlu0 %1298
    %1300 = vrot.lane.b32.xlu0 %v333, 40
    %v1301 = vpop.permute.xlu0 %1300
    %v1305 = vsel %vm430, %v1296, 0
    %v1308 = vsel %vm430, %v1297, 0
    %1310 = vmatprep.subr.mxu0 0.0
    %1311 = vmatpush1.msra.mxu0 0.0
    %1312 = vmatprep.subr.mxu0 0.0
    %1313 = vmatpush1.msra.mxu0 0.0
    %1314 = vmatprep.subr.mxu0 0.0
    %1315 = vmatpush1.msra.mxu0 0.0
    %1316 = vmatprep.subr.mxu0 0.0
    %1317 = vmatpush1.msra.mxu0 0.0
    %1318 = vmatprep.subr.mxu0 0.0
    %1319 = vmatpush1.msra.mxu0 0.0
    %1320 = vmatprep.subr.mxu0 0.0
    %1321 = vmatpush1.msra.mxu0 0.0
    %1322 = vmatprep.subr.mxu0 0.0
    %1323 = vmatpush1.msra.mxu0 0.0
    %1324 = vmatprep.subr.mxu0 0.0
    %1325 = vmatpush1.msra.mxu0 0.0
    %1326 = vmatprep.subr.mxu0 0.0
    %1327 = vmatpush1.msra.mxu0 0.0
    %1328 = vmatprep.subr.mxu0 0.0
    %1329 = vmatpush1.msra.mxu0 0.0
    %1330 = vmatprep.subr.mxu0 0.0
    %1331 = vmatpush1.msra.mxu0 0.0
    %1332 = vmatprep.subr.mxu0 0.0
    %1333 = vmatpush1.msra.mxu0 0.0
    %1334 = vmatprep.subr.mxu0 0.0
    %1335 = vmatpush1.msra.mxu0 0.0
    %1336 = vmatprep.subr.mxu0 0.0
    %1337 = vmatpush1.msra.mxu0 0.0
    %1338 = vmatprep.subr.mxu0 0.0
    %1339 = vmatpush1.msra.mxu0 %v1301
    %1340 = vmatprep.subr.mxu0 0.0
    %1341 = vmatpush1.msra.mxu0 %v1299
    %1342 = vmatprep.subr.mxu0 0.0
    %1343 = vmatpush2.msra.mxu0 0.0
    %1344 = vmatprep.subr.mxu0 0.0
    %1345 = vmatpush2.msra.mxu0 0.0
    %1346 = vmatprep.subr.mxu0 0.0
    %1347 = vmatpush2.msra.mxu0 0.0
    %1348 = vmatprep.subr.mxu0 0.0
    %1349 = vmatpush2.msra.mxu0 0.0
    %1350 = vmatprep.subr.mxu0 0.0
    %1351 = vmatpush2.msra.mxu0 0.0
    %1352 = vmatprep.subr.mxu0 0.0
    %1353 = vmatpush2.msra.mxu0 0.0
    %1354 = vmatprep.subr.mxu0 0.0
    %1355 = vmatpush2.msra.mxu0 0.0
    %1356 = vmatprep.subr.mxu0 0.0
    %1357 = vmatpush2.msra.mxu0 0.0
    %1358 = vmatprep.subr.mxu0 0.0
    %1359 = vmatpush2.msra.mxu0 0.0
    %1360 = vmatprep.subr.mxu0 0.0
    %1361 = vmatpush2.msra.mxu0 0.0
    %1362 = vmatprep.subr.mxu0 0.0
    %1363 = vmatpush2.msra.mxu0 0.0
    %1364 = vmatprep.subr.mxu0 0.0
    %1365 = vmatpush2.msra.mxu0 0.0
    %1366 = vmatprep.subr.mxu0 0.0
    %1367 = vmatpush2.msra.mxu0 0.0
    %1368 = vmatprep.subr.mxu0 0.0
    %1369 = vmatpush2.msra.mxu0 0.0
    %1370 = vmatprep.subr.mxu0 0.0
    %1371 = vmatpush2.msra.mxu0 0.0
    %1372 = vmatprep.subr.mxu0 0.0
    %1373 = vmatpush2.msra.mxu0 0.0
    %1374 = vmatprep.mubr.f32.mxu0 0.0
    %1375 = vmatmul.mubr.f32.gmra.mxu0 %v1305
    %v1376 = vpop.f32.mrf.mxu0
    %v1377 = vadd.f32 0.0, %v1376
    %v1378 = vpop.f32.mrf.mxu0
    %1379 = vmatprep.mubr.f32.mxu0 0.0
    %1380 = vmatmul.mubr.f32.gmra.mxu0 %v1308
    %v1381 = vpop.f32.mrf.mxu0
    %v1382 = vadd.f32 0.0, %v1381
    %v1383 = vpop.f32.mrf.mxu0
    %1384 = vdwg.mxu0
    %v1386 = vsel %vm346, %v1377, 0
    %v1389 = vsel %vm346, %v1382, 0
    %1391 = vmatprep.subr.mxu0 0.0
    %1392 = vmatpush1.msra.mxu0 0.0
    %1393 = vmatprep.subr.mxu0 0.0
    %1394 = vmatpush1.msra.mxu0 0.0
    %1395 = vmatprep.subr.mxu0 0.0
    %1396 = vmatpush1.msra.mxu0 0.0
    %1397 = vmatprep.subr.mxu0 0.0
    %1398 = vmatpush1.msra.mxu0 0.0
    %1399 = vmatprep.subr.mxu0 0.0
    %1400 = vmatpush1.msra.mxu0 0.0
    %1401 = vmatprep.subr.mxu0 0.0
    %1402 = vmatpush1.msra.mxu0 0.0
    %1403 = vmatprep.subr.mxu0 0.0
    %1404 = vmatpush1.msra.mxu0 0.0
    %1405 = vmatprep.subr.mxu0 0.0
    %1406 = vmatpush1.msra.mxu0 0.0
    %1407 = vmatprep.subr.mxu0 0.0
    %1408 = vmatpush1.msra.mxu0 0.0
    %1409 = vmatprep.subr.mxu0 0.0
    %1410 = vmatpush1.msra.mxu0 0.0
    %1411 = vmatprep.subr.mxu0 0.0
    %1412 = vmatpush1.msra.mxu0 0.0
    %1413 = vmatprep.subr.mxu0 0.0
    %1414 = vmatpush1.msra.mxu0 0.0
    %1415 = vmatprep.subr.mxu0 0.0
    %1416 = vmatpush1.msra.mxu0 0.0
    %1417 = vmatprep.subr.mxu0 0.0
    %1418 = vmatpush1.msra.mxu0 0.0
    %1419 = vmatprep.subr.mxu0 0.0
    %1420 = vmatpush1.msra.mxu0 0.0
    %1421 = vmatprep.subr.mxu0 0.0
    %1422 = vmatpush1.msra.mxu0 %v339
    %1423 = vmatprep.subr.mxu0 0.0
    %1424 = vmatpush2.msra.mxu0 0.0
    %1425 = vmatprep.subr.mxu0 0.0
    %1426 = vmatpush2.msra.mxu0 0.0
    %1427 = vmatprep.subr.mxu0 0.0
    %1428 = vmatpush2.msra.mxu0 0.0
    %1429 = vmatprep.subr.mxu0 0.0
    %1430 = vmatpush2.msra.mxu0 0.0
    %1431 = vmatprep.subr.mxu0 0.0
    %1432 = vmatpush2.msra.mxu0 0.0
    %1433 = vmatprep.subr.mxu0 0.0
    %1434 = vmatpush2.msra.mxu0 0.0
    %1435 = vmatprep.subr.mxu0 0.0
    %1436 = vmatpush2.msra.mxu0 0.0
    %1437 = vmatprep.subr.mxu0 0.0
    %1438 = vmatpush2.msra.mxu0 0.0
    %1439 = vmatprep.subr.mxu0 0.0
    %1440 = vmatpush2.msra.mxu0 0.0
    %1441 = vmatprep.subr.mxu0 0.0
    %1442 = vmatpush2.msra.mxu0 0.0
    %1443 = vmatprep.subr.mxu0 0.0
    %1444 = vmatpush2.msra.mxu0 0.0
    %1445 = vmatprep.subr.mxu0 0.0
    %1446 = vmatpush2.msra.mxu0 0.0
    %1447 = vmatprep.subr.mxu0 0.0
    %1448 = vmatpush2.msra.mxu0 0.0
    %1449 = vmatprep.subr.mxu0 0.0
    %1450 = vmatpush2.msra.mxu0 0.0
    %1451 = vmatprep.subr.mxu0 0.0
    %1452 = vmatpush2.msra.mxu0 0.0
    %1453 = vmatprep.subr.mxu0 0.0
    %1454 = vmatpush2.msra.mxu0 0.0
    %1455 = vmatprep.mubr.f32.mxu0 0.0
    %1456 = vmatmul.mubr.f32.gmra.mxu0 %v1386
    %v1457 = vpop.f32.mrf.mxu0
    %v1458 = vadd.f32 0.0, %v1457
    %v1459 = vpop.f32.mrf.mxu0
    %1460 = vmatprep.mubr.f32.mxu0 0.0
    %1461 = vmatmul.mubr.f32.gmra.mxu0 %v1389
    %v1462 = vpop.f32.mrf.mxu0
    %v1463 = vadd.f32 0.0, %v1462
    %v1464 = vpop.f32.mrf.mxu0
    %1465 = vdwg.mxu0
    %v1466 = vadd.f32 %v1183, %v1458
    %v1467 = vadd.f32 %v1184, %v1463
    %v1468 = vld [vmem:[#allocation10] sm:$0x1]
    %v1470 = vlaneseq
    %v1471 = vshrl.u32 %v1470, 7
    %v1472 = vsub.s32 0, %v1471
    %v1473 = vrot.slane %v1468, %v1472
    %v1475 = vadd.f32 %v1466, %v1473
    %v1476 = vadd.f32 %v1467, %v1473
    %v1477 = vadd.f32 %v241, %v1475
    %v1478 = vadd.f32 %v242, %v1476
    %v1479 = vld [vmem:[#allocation11] sm:$0x1]
    %v1480 = vld [vmem:[%s10] sm:$0x1]
    %v1481 = vsel %vm254, %v1477, 0.0
    %1482 = vadd.xlane.f32.xlu0 %v1481
    %v1483 = vpop.xlane.xlu0 %1482
    %v1484 = vsel %vm254, %v1478, 0.0
    %1485 = vadd.xlane.f32.xlu0 %v1484
    %v1486 = vpop.xlane.xlu0 %1485
    %v1487 = vrcp.pop 32.0
    %v1488 = vmul.f32 %v1483, %v1487
    %v1489 = vmul.f32 %v1486, %v1487
    %v1490 = vsub.f32 %v1477, %v1488
    %v1491 = vsub.f32 %v1478, %v1489
    %v1492 = vmul.f32 %v1490, %v1490
    %v1493 = vmul.f32 %v1491, %v1491
    %v1494 = vsel %vm254, %v1492, 0.0
    %1495 = vadd.xlane.f32.xlu0 %v1494
    %v1496 = vpop.xlane.xlu0 %1495
    %v1497 = vsel %vm254, %v1493, 0.0
    %1498 = vadd.xlane.f32.xlu0 %v1497
    %v1499 = vpop.xlane.xlu0 %1498
    %v1500 = vmul.f32 %v1496, %v1487
    %v1501 = vmul.f32 %v1499, %v1487
    %v1502 = vadd.f32 %v1500, 1e-05
    %v1503 = vadd.f32 %v1501, 1e-05
    %v1504 = vrsqrt.pop %v1502
    %v1505 = vrsqrt.pop %v1503
    %v1506 = vmul.f32 %v1490, %v1504
    %v1507 = vmul.f32 %v1491, %v1505
    %v1509 = vlaneseq
    %v1510 = vshrl.u32 %v1509, 7
    %v1511 = vsub.s32 0, %v1510
    %v1512 = vrot.slane %v1479, %v1511
    %v1514 = vmul.f32 %v1506, %v1512
    %v1515 = vmul.f32 %v1507, %v1512
    %v1517 = vlaneseq
    %v1518 = vshrl.u32 %v1517, 7
    %v1519 = vsub.s32 0, %v1518
    %v1520 = vrot.slane %v1480, %v1519
    %v1522 = vadd.f32 %v1514, %v1520
    %v1523 = vadd.f32 %v1515, %v1520
    %v1524 = vld [vmem:[%s13] sm:$0xff]
    %v1525 = vld [vmem:[%s13 + $0x8] sm:$0xff]
    %v1526 = vld [vmem:[%s13 + $0x10] sm:$0xff]
    %v1527 = vld [vmem:[%s13 + $0x18] sm:$0xff]
    %v1528 = vld [vmem:[%s14] sm:$0x1]
    %v1530 = vlaneseq
    %v1531 = vshrl.u32 %v1530, 7
    %v1532 = vsub.s32 0, %v1531
    %v1533 = vrot.slane %v1528, %v1532
    %v1536 = vsel %vm254, %v1522, 0
    %v1539 = vsel %vm254, %v1523, 0
    %1541 = vmatprep.subr.mxu0 0.0
    %1542 = vmatpush1.msra.mxu0 0.0
    %1543 = vmatprep.subr.mxu0 0.0
    %1544 = vmatpush1.msra.mxu0 0.0
    %1545 = vmatprep.subr.mxu0 0.0
    %1546 = vmatpush1.msra.mxu0 0.0
    %1547 = vmatprep.subr.mxu0 0.0
    %1548 = vmatpush1.msra.mxu0 0.0
    %1549 = vmatprep.subr.mxu0 0.0
    %1550 = vmatpush1.msra.mxu0 0.0
    %1551 = vmatprep.subr.mxu0 0.0
    %1552 = vmatpush1.msra.mxu0 0.0
    %1553 = vmatprep.subr.mxu0 0.0
    %1554 = vmatpush1.msra.mxu0 0.0
    %1555 = vmatprep.subr.mxu0 0.0
    %1556 = vmatpush1.msra.mxu0 0.0
    %1557 = vmatprep.subr.mxu0 0.0
    %1558 = vmatpush1.msra.mxu0 0.0
    %1559 = vmatprep.subr.mxu0 0.0
    %1560 = vmatpush1.msra.mxu0 0.0
    %1561 = vmatprep.subr.mxu0 0.0
    %1562 = vmatpush1.msra.mxu0 0.0
    %1563 = vmatprep.subr.mxu0 0.0
    %1564 = vmatpush1.msra.mxu0 0.0
    %1565 = vmatprep.subr.mxu0 0.0
    %1566 = vmatpush1.msra.mxu0 %v1527
    %1567 = vmatprep.subr.mxu0 0.0
    %1568 = vmatpush1.msra.mxu0 %v1526
    %1569 = vmatprep.subr.mxu0 0.0
    %1570 = vmatpush1.msra.mxu0 %v1525
    %1571 = vmatprep.subr.mxu0 0.0
    %1572 = vmatpush1.msra.mxu0 %v1524
    %1573 = vmatprep.subr.mxu0 0.0
    %1574 = vmatpush2.msra.mxu0 0.0
    %1575 = vmatprep.subr.mxu0 0.0
    %1576 = vmatpush2.msra.mxu0 0.0
    %1577 = vmatprep.subr.mxu0 0.0
    %1578 = vmatpush2.msra.mxu0 0.0
    %1579 = vmatprep.subr.mxu0 0.0
    %1580 = vmatpush2.msra.mxu0 0.0
    %1581 = vmatprep.subr.mxu0 0.0
    %1582 = vmatpush2.msra.mxu0 0.0
    %1583 = vmatprep.subr.mxu0 0.0
    %1584 = vmatpush2.msra.mxu0 0.0
    %1585 = vmatprep.subr.mxu0 0.0
    %1586 = vmatpush2.msra.mxu0 0.0
    %1587 = vmatprep.subr.mxu0 0.0
    %1588 = vmatpush2.msra.mxu0 0.0
    %1589 = vmatprep.subr.mxu0 0.0
    %1590 = vmatpush2.msra.mxu0 0.0
    %1591 = vmatprep.subr.mxu0 0.0
    %1592 = vmatpush2.msra.mxu0 0.0
    %1593 = vmatprep.subr.mxu0 0.0
    %1594 = vmatpush2.msra.mxu0 0.0
    %1595 = vmatprep.subr.mxu0 0.0
    %1596 = vmatpush2.msra.mxu0 0.0
    %1597 = vmatprep.subr.mxu0 0.0
    %1598 = vmatpush2.msra.mxu0 0.0
    %1599 = vmatprep.subr.mxu0 0.0
    %1600 = vmatpush2.msra.mxu0 0.0
    %1601 = vmatprep.subr.mxu0 0.0
    %1602 = vmatpush2.msra.mxu0 0.0
    %1603 = vmatprep.subr.mxu0 0.0
    %1604 = vmatpush2.msra.mxu0 0.0
    %1605 = vmatprep.mubr.f32.mxu0 0.0
    %1606 = vmatmul.mubr.f32.gmra.mxu0 %v1536
    %v1607 = vpop.f32.mrf.mxu0
    %v1608 = vadd.f32 %v1533, %v1607
    %v1609 = vpop.f32.mrf.mxu0
    %1610 = vmatprep.mubr.f32.mxu0 0.0
    %1611 = vmatmul.mubr.f32.gmra.mxu0 %v1539
    %v1612 = vpop.f32.mrf.mxu0
    %v1613 = vadd.f32 %v1533, %v1612
    %v1614 = vpop.f32.mrf.mxu0
    %1615 = vdwg.mxu0
    %v1616 = vmax.f32 %v1608, 0.0
    %v1617 = vmax.f32 %v1613, 0.0
    %v1618 = vld [vmem:[%s15] sm:$0xff]
    %v1619 = vld [vmem:[%s15 + $0x8] sm:$0xff]
    %v1620 = vld [vmem:[%s15 + $0x10] sm:$0xff]
    %v1621 = vld [vmem:[%s15 + $0x18] sm:$0xff]
    %v1622 = vld [vmem:[%s15 + $0x20] sm:$0xff]
    %v1623 = vld [vmem:[%s15 + $0x28] sm:$0xff]
    %v1624 = vld [vmem:[%s15 + $0x30] sm:$0xff]
    %v1625 = vld [vmem:[%s15 + $0x38] sm:$0xff]
    %v1626 = vld [vmem:[%s16] sm:$0x1]
    %v1628 = vlaneseq
    %v1629 = vshrl.u32 %v1628, 7
    %v1630 = vsub.s32 0, %v1629
    %v1631 = vrot.slane %v1626, %v1630
    %vm1633 = vcmask 523264
    %v1635 = vsel %vm1633, %v1616, 0
    %v1638 = vsel %vm1633, %v1617, 0
    %1640 = vmatprep.subr.mxu0 0.0
    %1641 = vmatpush1.msra.mxu0 0.0
    %1642 = vmatprep.subr.mxu0 0.0
    %1643 = vmatpush1.msra.mxu0 0.0
    %1644 = vmatprep.subr.mxu0 0.0
    %1645 = vmatpush1.msra.mxu0 0.0
    %1646 = vmatprep.subr.mxu0 0.0
    %1647 = vmatpush1.msra.mxu0 0.0
    %1648 = vmatprep.subr.mxu0 0.0
    %1649 = vmatpush1.msra.mxu0 0.0
    %1650 = vmatprep.subr.mxu0 0.0
    %1651 = vmatpush1.msra.mxu0 0.0
    %1652 = vmatprep.subr.mxu0 0.0
    %1653 = vmatpush1.msra.mxu0 0.0
    %1654 = vmatprep.subr.mxu0 0.0
    %1655 = vmatpush1.msra.mxu0 0.0
    %1656 = vmatprep.subr.mxu0 0.0
    %1657 = vmatpush1.msra.mxu0 %v1625
    %1658 = vmatprep.subr.mxu0 0.0
    %1659 = vmatpush1.msra.mxu0 %v1624
    %1660 = vmatprep.subr.mxu0 0.0
    %1661 = vmatpush1.msra.mxu0 %v1623
    %1662 = vmatprep.subr.mxu0 0.0
    %1663 = vmatpush1.msra.mxu0 %v1622
    %1664 = vmatprep.subr.mxu0 0.0
    %1665 = vmatpush1.msra.mxu0 %v1621
    %1666 = vmatprep.subr.mxu0 0.0
    %1667 = vmatpush1.msra.mxu0 %v1620
    %1668 = vmatprep.subr.mxu0 0.0
    %1669 = vmatpush1.msra.mxu0 %v1619
    %1670 = vmatprep.subr.mxu0 0.0
    %1671 = vmatpush1.msra.mxu0 %v1618
    %1672 = vmatprep.subr.mxu0 0.0
    %1673 = vmatpush2.msra.mxu0 0.0
    %1674 = vmatprep.subr.mxu0 0.0
    %1675 = vmatpush2.msra.mxu0 0.0
    %1676 = vmatprep.subr.mxu0 0.0
    %1677 = vmatpush2.msra.mxu0 0.0
    %1678 = vmatprep.subr.mxu0 0.0
    %1679 = vmatpush2.msra.mxu0 0.0
    %1680 = vmatprep.subr.mxu0 0.0
    %1681 = vmatpush2.msra.mxu0 0.0
    %1682 = vmatprep.subr.mxu0 0.0
    %1683 = vmatpush2.msra.mxu0 0.0
    %1684 = vmatprep.subr.mxu0 0.0
    %1685 = vmatpush2.msra.mxu0 0.0
    %1686 = vmatprep.subr.mxu0 0.0
    %1687 = vmatpush2.msra.mxu0 0.0
    %1688 = vmatprep.subr.mxu0 0.0
    %1689 = vmatpush2.msra.mxu0 0.0
    %1690 = vmatprep.subr.mxu0 0.0
    %1691 = vmatpush2.msra.mxu0 0.0
    %1692 = vmatprep.subr.mxu0 0.0
    %1693 = vmatpush2.msra.mxu0 0.0
    %1694 = vmatprep.subr.mxu0 0.0
    %1695 = vmatpush2.msra.mxu0 0.0
    %1696 = vmatprep.subr.mxu0 0.0
    %1697 = vmatpush2.msra.mxu0 0.0
    %1698 = vmatprep.subr.mxu0 0.0
    %1699 = vmatpush2.msra.mxu0 0.0
    %1700 = vmatprep.subr.mxu0 0.0
    %1701 = vmatpush2.msra.mxu0 0.0
    %1702 = vmatprep.subr.mxu0 0.0
    %1703 = vmatpush2.msra.mxu0 0.0
    %1704 = vmatprep.mubr.f32.mxu0 0.0
    %1705 = vmatmul.mubr.f32.gmra.mxu0 %v1635
    %v1706 = vpop.f32.mrf.mxu0
    %v1707 = vadd.f32 %v1631, %v1706
    %v1708 = vpop.f32.mrf.mxu0
    %1709 = vmatprep.mubr.f32.mxu0 0.0
    %1710 = vmatmul.mubr.f32.gmra.mxu0 %v1638
    %v1711 = vpop.f32.mrf.mxu0
    %v1712 = vadd.f32 %v1631, %v1711
    %v1713 = vpop.f32.mrf.mxu0
    %1714 = vdwg.mxu0
    %v1715 = vadd.f32 %v1522, %v1707
    %v1716 = vadd.f32 %v1523, %v1712
    %v1717 = vld [vmem:[%s11] sm:$0x1]
    %v1718 = vld [vmem:[%s12] sm:$0x1]
    %v1719 = vsel %vm254, %v1715, 0.0
    %1720 = vadd.xlane.f32.xlu0 %v1719
    %v1721 = vpop.xlane.xlu0 %1720
    %v1722 = vsel %vm254, %v1716, 0.0
    %1723 = vadd.xlane.f32.xlu0 %v1722
    %v1724 = vpop.xlane.xlu0 %1723
    %v1725 = vmul.f32 %v1721, %v1487
    %v1726 = vmul.f32 %v1724, %v1487
    %v1727 = vsub.f32 %v1715, %v1725
    %v1728 = vsub.f32 %v1716, %v1726
    %v1729 = vmul.f32 %v1727, %v1727
    %v1730 = vmul.f32 %v1728, %v1728
    %v1731 = vsel %vm254, %v1729, 0.0
    %1732 = vadd.xlane.f32.xlu0 %v1731
    %v1733 = vpop.xlane.xlu0 %1732
    %v1734 = vsel %vm254, %v1730, 0.0
    %1735 = vadd.xlane.f32.xlu0 %v1734
    %v1736 = vpop.xlane.xlu0 %1735
    %v1737 = vmul.f32 %v1733, %v1487
    %v1738 = vmul.f32 %v1736, %v1487
    %v1739 = vadd.f32 %v1737, 1e-05
    %v1740 = vadd.f32 %v1738, 1e-05
    %v1741 = vrsqrt.pop %v1739
    %v1742 = vrsqrt.pop %v1740
    %v1743 = vmul.f32 %v1727, %v1741
    %v1744 = vmul.f32 %v1728, %v1742
    %v1746 = vlaneseq
    %v1747 = vshrl.u32 %v1746, 7
    %v1748 = vsub.s32 0, %v1747
    %v1749 = vrot.slane %v1717, %v1748
    %v1751 = vmul.f32 %v1743, %v1749
    %v1752 = vmul.f32 %v1744, %v1749
    %v1754 = vlaneseq
    %v1755 = vshrl.u32 %v1754, 7
    %v1756 = vsub.s32 0, %v1755
    %v1757 = vrot.slane %v1718, %v1756
    %v1759 = vadd.f32 %v1751, %v1757
    %v1760 = vadd.f32 %v1752, %v1757
    %s1761 = scalar_lea.vmem %s5, 32
    %v1762 = vld [vmem:[%s1761] sm:$0xff]
    %v1763 = vld [vmem:[%s1761 + $0x8] sm:$0xff]
    %v1764 = vld [vmem:[%s1761 + $0x10] sm:$0xff]
    %v1765 = vld [vmem:[%s1761 + $0x18] sm:$0xff]
    %s1766 = scalar_lea.vmem %s6, 1
    %v1767 = vld [vmem:[%s1766] sm:$0x1]
    %v1769 = vlaneseq
    %v1770 = vshrl.u32 %v1769, 7
    %v1771 = vsub.s32 0, %v1770
    %v1772 = vrot.slane %v1767, %v1771
    %v1775 = vsel %vm254, %v1759, 0
    %v1778 = vsel %vm254, %v1760, 0
    %1780 = vmatprep.subr.mxu0 0.0
    %1781 = vmatpush1.msra.mxu0 0.0
    %1782 = vmatprep.subr.mxu0 0.0
    %1783 = vmatpush1.msra.mxu0 0.0
    %1784 = vmatprep.subr.mxu0 0.0
    %1785 = vmatpush1.msra.mxu0 0.0
    %1786 = vmatprep.subr.mxu0 0.0
    %1787 = vmatpush1.msra.mxu0 0.0
    %1788 = vmatprep.subr.mxu0 0.0
    %1789 = vmatpush1.msra.mxu0 0.0
    %1790 = vmatprep.subr.mxu0 0.0
    %1791 = vmatpush1.msra.mxu0 0.0
    %1792 = vmatprep.subr.mxu0 0.0
    %1793 = vmatpush1.msra.mxu0 0.0
    %1794 = vmatprep.subr.mxu0 0.0
    %1795 = vmatpush1.msra.mxu0 0.0
    %1796 = vmatprep.subr.mxu0 0.0
    %1797 = vmatpush1.msra.mxu0 0.0
    %1798 = vmatprep.subr.mxu0 0.0
    %1799 = vmatpush1.msra.mxu0 0.0
    %1800 = vmatprep.subr.mxu0 0.0
    %1801 = vmatpush1.msra.mxu0 0.0
    %1802 = vmatprep.subr.mxu0 0.0
    %1803 = vmatpush1.msra.mxu0 0.0
    %1804 = vmatprep.subr.mxu0 0.0
    %1805 = vmatpush1.msra.mxu0 %v1765
    %1806 = vmatprep.subr.mxu0 0.0
    %1807 = vmatpush1.msra.mxu0 %v1764
    %1808 = vmatprep.subr.mxu0 0.0
    %1809 = vmatpush1.msra.mxu0 %v1763
    %1810 = vmatprep.subr.mxu0 0.0
    %1811 = vmatpush1.msra.mxu0 %v1762
    %1812 = vmatprep.subr.mxu0 0.0
    %1813 = vmatpush2.msra.mxu0 0.0
    %1814 = vmatprep.subr.mxu0 0.0
    %1815 = vmatpush2.msra.mxu0 0.0
    %1816 = vmatprep.subr.mxu0 0.0
    %1817 = vmatpush2.msra.mxu0 0.0
    %1818 = vmatprep.subr.mxu0 0.0
    %1819 = vmatpush2.msra.mxu0 0.0
    %1820 = vmatprep.subr.mxu0 0.0
    %1821 = vmatpush2.msra.mxu0 0.0
    %1822 = vmatprep.subr.mxu0 0.0
    %1823 = vmatpush2.msra.mxu0 0.0
    %1824 = vmatprep.subr.mxu0 0.0
    %1825 = vmatpush2.msra.mxu0 0.0
    %1826 = vmatprep.subr.mxu0 0.0
    %1827 = vmatpush2.msra.mxu0 0.0
    %1828 = vmatprep.subr.mxu0 0.0
    %1829 = vmatpush2.msra.mxu0 0.0
    %1830 = vmatprep.subr.mxu0 0.0
    %1831 = vmatpush2.msra.mxu0 0.0
    %1832 = vmatprep.subr.mxu0 0.0
    %1833 = vmatpush2.msra.mxu0 0.0
    %1834 = vmatprep.subr.mxu0 0.0
    %1835 = vmatpush2.msra.mxu0 0.0
    %1836 = vmatprep.subr.mxu0 0.0
    %1837 = vmatpush2.msra.mxu0 0.0
    %1838 = vmatprep.subr.mxu0 0.0
    %1839 = vmatpush2.msra.mxu0 0.0
    %1840 = vmatprep.subr.mxu0 0.0
    %1841 = vmatpush2.msra.mxu0 0.0
    %1842 = vmatprep.subr.mxu0 0.0
    %1843 = vmatpush2.msra.mxu0 0.0
    %1844 = vmatprep.mubr.f32.mxu0 0.0
    %1845 = vmatmul.mubr.f32.gmra.mxu0 %v1775
    %v1846 = vpop.f32.mrf.mxu0
    %v1847 = vadd.f32 %v1772, %v1846
    %v1848 = vpop.f32.mrf.mxu0
    %1849 = vmatprep.mubr.f32.mxu0 0.0
    %1850 = vmatmul.mubr.f32.gmra.mxu0 %v1778
    %v1851 = vpop.f32.mrf.mxu0
    %v1852 = vadd.f32 %v1772, %v1851
    %v1853 = vpop.f32.mrf.mxu0
    %1854 = vdwg.mxu0
    %s1855 = scalar_lea.vmem %s7, 32
    %v1856 = vld [vmem:[%s1855] sm:$0xff]
    %v1857 = vld [vmem:[%s1855 + $0x8] sm:$0xff]
    %v1858 = vld [vmem:[%s1855 + $0x10] sm:$0xff]
    %v1859 = vld [vmem:[%s1855 + $0x18] sm:$0xff]
    %1862 = vrot.lane.b32.xlu0 %v1847, 96
    %v1863 = vpop.permute.xlu0 %1862
    %1864 = vrot.lane.b32.xlu0 %v1852, 96
    %v1865 = vpop.permute.xlu0 %1864
    %v1866 = vsel %vm346, %v1847, 0
    %v1868 = vsel %vm346, %v1852, 0
    %v1870 = vsel %vm346, %v1863, 0
    %v1872 = vsel %vm346, %v1865, 0
    %1874 = vmatprep.subr.mxu0 0.0
    %1875 = vmatpush1.xpose.msra.mxu0 0.0
    %1876 = vmatprep.subr.mxu0 0.0
    %1877 = vmatpush1.xpose.msra.mxu0 0.0
    %1878 = vmatprep.subr.mxu0 0.0
    %1879 = vmatpush1.xpose.msra.mxu0 0.0
    %1880 = vmatprep.subr.mxu0 0.0
    %1881 = vmatpush1.xpose.msra.mxu0 0.0
    %1882 = vmatprep.subr.mxu0 0.0
    %1883 = vmatpush1.xpose.msra.mxu0 0.0
    %1884 = vmatprep.subr.mxu0 0.0
    %1885 = vmatpush1.xpose.msra.mxu0 0.0
    %1886 = vmatprep.subr.mxu0 0.0
    %1887 = vmatpush1.xpose.msra.mxu0 0.0
    %1888 = vmatprep.subr.mxu0 0.0
    %1889 = vmatpush1.xpose.msra.mxu0 0.0
    %1890 = vmatprep.subr.mxu0 0.0
    %1891 = vmatpush1.xpose.msra.mxu0 0.0
    %1892 = vmatprep.subr.mxu0 0.0
    %1893 = vmatpush1.xpose.msra.mxu0 0.0
    %1894 = vmatprep.subr.mxu0 0.0
    %1895 = vmatpush1.xpose.msra.mxu0 0.0
    %1896 = vmatprep.subr.mxu0 0.0
    %1897 = vmatpush1.xpose.msra.mxu0 0.0
    %1898 = vmatprep.subr.mxu0 0.0
    %1899 = vmatpush1.xpose.msra.mxu0 0.0
    %1900 = vmatprep.subr.mxu0 0.0
    %1901 = vmatpush1.xpose.msra.mxu0 0.0
    %1902 = vmatprep.subr.mxu0 0.0
    %1903 = vmatpush1.xpose.msra.mxu0 %v1872
    %1904 = vmatprep.subr.mxu0 0.0
    %1905 = vmatpush1.xpose.msra.mxu0 %v1870
    %1906 = vmatprep.subr.mxu0 0.0
    %1907 = vmatpush2.xpose.msra.mxu0 0.0
    %1908 = vmatprep.subr.mxu0 0.0
    %1909 = vmatpush2.xpose.msra.mxu0 0.0
    %1910 = vmatprep.subr.mxu0 0.0
    %1911 = vmatpush2.xpose.msra.mxu0 0.0
    %1912 = vmatprep.subr.mxu0 0.0
    %1913 = vmatpush2.xpose.msra.mxu0 0.0
    %1914 = vmatprep.subr.mxu0 0.0
    %1915 = vmatpush2.xpose.msra.mxu0 0.0
    %1916 = vmatprep.subr.mxu0 0.0
    %1917 = vmatpush2.xpose.msra.mxu0 0.0
    %1918 = vmatprep.subr.mxu0 0.0
    %1919 = vmatpush2.xpose.msra.mxu0 0.0
    %1920 = vmatprep.subr.mxu0 0.0
    %1921 = vmatpush2.xpose.msra.mxu0 0.0
    %1922 = vmatprep.subr.mxu0 0.0
    %1923 = vmatpush2.xpose.msra.mxu0 0.0
    %1924 = vmatprep.subr.mxu0 0.0
    %1925 = vmatpush2.xpose.msra.mxu0 0.0
    %1926 = vmatprep.subr.mxu0 0.0
    %1927 = vmatpush2.xpose.msra.mxu0 0.0
    %1928 = vmatprep.subr.mxu0 0.0
    %1929 = vmatpush2.xpose.msra.mxu0 0.0
    %1930 = vmatprep.subr.mxu0 0.0
    %1931 = vmatpush2.xpose.msra.mxu0 0.0
    %1932 = vmatprep.subr.mxu0 0.0
    %1933 = vmatpush2.xpose.msra.mxu0 0.0
    %1934 = vmatprep.subr.mxu0 0.0
    %1935 = vmatpush2.xpose.msra.mxu0 0.0
    %1936 = vmatprep.subr.mxu0 0.0
    %1937 = vmatpush2.xpose.msra.mxu0 0.0
    %1938 = vmatprep.mubr.f32.mxu0 0.0
    %1939 = vmatmul.mubr.f32.gmra.mxu0 %v1866
    %v1940 = vpop.f32.mrf.mxu0
    %v1941 = vadd.f32 %v143, %v1940
    %v1942 = vpop.f32.mrf.mxu0
    %1943 = vmatprep.mubr.f32.mxu0 0.0
    %1944 = vmatmul.mubr.f32.gmra.mxu0 %v1868
    %v1945 = vpop.f32.mrf.mxu0
    %v1946 = vadd.f32 %v144, %v1945
    %v1947 = vpop.f32.mrf.mxu0
    %1948 = vdwg.mxu0
    %v1949 = vsel %vm430, %v1941, -inf
    %1950 = vmax.xlane.f32.xlu0 %v1949
    %v1951 = vpop.xlane.xlu0 %1950
    %v1952 = vsel %vm430, %v1946, -inf
    %1953 = vmax.xlane.f32.xlu0 %v1952
    %v1954 = vpop.xlane.xlu0 %1953
    %v1955 = vsub.f32 %v1941, %v1951
    %v1956 = vsub.f32 %v1946, %v1954
    %v1957 = vmul.f32 %v1955, 1.442695
    %v1958 = vpow.pop %v1957
    %v1959 = vmul.f32 %v1956, 1.442695
    %v1960 = vpow.pop %v1959
    %v1961 = vsel %vm430, %v1958, 0.0
    %1962 = vadd.xlane.f32.xlu0 %v1961
    %v1963 = vpop.xlane.xlu0 %1962
    %v1964 = vsel %vm430, %v1960, 0.0
    %1965 = vadd.xlane.f32.xlu0 %v1964
    %v1966 = vpop.xlane.xlu0 %1965
    %v1967 = vrcp.pop %v1963
    %v1968 = vrcp.pop %v1966
    %v1969 = vmul.f32 %v1958, %v1967
    %v1970 = vmul.f32 %v1960, %v1968
    %1971 = vrot.lane.b32.xlu0 %v1847, 64
    %v1972 = vpop.permute.xlu0 %1971
    %1973 = vrot.lane.b32.xlu0 %v1852, 64
    %v1974 = vpop.permute.xlu0 %1973
    %v1978 = vsel %vm430, %v1969, 0
    %v1981 = vsel %vm430, %v1970, 0
    %1983 = vmatprep.subr.mxu0 0.0
    %1984 = vmatpush1.msra.mxu0 0.0
    %1985 = vmatprep.subr.mxu0 0.0
    %1986 = vmatpush1.msra.mxu0 0.0
    %1987 = vmatprep.subr.mxu0 0.0
    %1988 = vmatpush1.msra.mxu0 0.0
    %1989 = vmatprep.subr.mxu0 0.0
    %1990 = vmatpush1.msra.mxu0 0.0
    %1991 = vmatprep.subr.mxu0 0.0
    %1992 = vmatpush1.msra.mxu0 0.0
    %1993 = vmatprep.subr.mxu0 0.0
    %1994 = vmatpush1.msra.mxu0 0.0
    %1995 = vmatprep.subr.mxu0 0.0
    %1996 = vmatpush1.msra.mxu0 0.0
    %1997 = vmatprep.subr.mxu0 0.0
    %1998 = vmatpush1.msra.mxu0 0.0
    %1999 = vmatprep.subr.mxu0 0.0
    %2000 = vmatpush1.msra.mxu0 0.0
    %2001 = vmatprep.subr.mxu0 0.0
    %2002 = vmatpush1.msra.mxu0 0.0
    %2003 = vmatprep.subr.mxu0 0.0
    %2004 = vmatpush1.msra.mxu0 0.0
    %2005 = vmatprep.subr.mxu0 0.0
    %2006 = vmatpush1.msra.mxu0 0.0
    %2007 = vmatprep.subr.mxu0 0.0
    %2008 = vmatpush1.msra.mxu0 0.0
    %2009 = vmatprep.subr.mxu0 0.0
    %2010 = vmatpush1.msra.mxu0 0.0
    %2011 = vmatprep.subr.mxu0 0.0
    %2012 = vmatpush1.msra.mxu0 %v1974
    %2013 = vmatprep.subr.mxu0 0.0
    %2014 = vmatpush1.msra.mxu0 %v1972
    %2015 = vmatprep.subr.mxu0 0.0
    %2016 = vmatpush2.msra.mxu0 0.0
    %2017 = vmatprep.subr.mxu0 0.0
    %2018 = vmatpush2.msra.mxu0 0.0
    %2019 = vmatprep.subr.mxu0 0.0
    %2020 = vmatpush2.msra.mxu0 0.0
    %2021 = vmatprep.subr.mxu0 0.0
    %2022 = vmatpush2.msra.mxu0 0.0
    %2023 = vmatprep.subr.mxu0 0.0
    %2024 = vmatpush2.msra.mxu0 0.0
    %2025 = vmatprep.subr.mxu0 0.0
    %2026 = vmatpush2.msra.mxu0 0.0
    %2027 = vmatprep.subr.mxu0 0.0
    %2028 = vmatpush2.msra.mxu0 0.0
    %2029 = vmatprep.subr.mxu0 0.0
    %2030 = vmatpush2.msra.mxu0 0.0
    %2031 = vmatprep.subr.mxu0 0.0
    %2032 = vmatpush2.msra.mxu0 0.0
    %2033 = vmatprep.subr.mxu0 0.0
    %2034 = vmatpush2.msra.mxu0 0.0
    %2035 = vmatprep.subr.mxu0 0.0
    %2036 = vmatpush2.msra.mxu0 0.0
    %2037 = vmatprep.subr.mxu0 0.0
    %2038 = vmatpush2.msra.mxu0 0.0
    %2039 = vmatprep.subr.mxu0 0.0
    %2040 = vmatpush2.msra.mxu0 0.0
    %2041 = vmatprep.subr.mxu0 0.0
    %2042 = vmatpush2.msra.mxu0 0.0
    %2043 = vmatprep.subr.mxu0 0.0
    %2044 = vmatpush2.msra.mxu0 0.0
    %2045 = vmatprep.subr.mxu0 0.0
    %2046 = vmatpush2.msra.mxu0 0.0
    %2047 = vmatprep.mubr.f32.mxu0 0.0
    %2048 = vmatmul.mubr.f32.gmra.mxu0 %v1978
    %v2049 = vpop.f32.mrf.mxu0
    %v2050 = vadd.f32 0.0, %v2049
    %v2051 = vpop.f32.mrf.mxu0
    %2052 = vmatprep.mubr.f32.mxu0 0.0
    %2053 = vmatmul.mubr.f32.gmra.mxu0 %v1981
    %v2054 = vpop.f32.mrf.mxu0
    %v2055 = vadd.f32 0.0, %v2054
    %v2056 = vpop.f32.mrf.mxu0
    %2057 = vdwg.mxu0
    %2058 = vrot.lane.b32.xlu0 %v1847, 120
    %v2059 = vpop.permute.xlu0 %2058
    %2060 = vrot.lane.b32.xlu0 %v1852, 120
    %v2061 = vpop.permute.xlu0 %2060
    %2062 = vrot.lane.b32.xlu0 %v1847, 88
    %v2063 = vpop.permute.xlu0 %2062
    %2064 = vrot.lane.b32.xlu0 %v1852, 88
    %v2065 = vpop.permute.xlu0 %2064
    %v2066 = vsel %vm346, %v2059, 0
    %v2068 = vsel %vm346, %v2061, 0
    %v2070 = vsel %vm346, %v2063, 0
    %v2072 = vsel %vm346, %v2065, 0
    %2074 = vmatprep.subr.mxu0 0.0
    %2075 = vmatpush1.xpose.msra.mxu0 0.0
    %2076 = vmatprep.subr.mxu0 0.0
    %2077 = vmatpush1.xpose.msra.mxu0 0.0
    %2078 = vmatprep.subr.mxu0 0.0
    %2079 = vmatpush1.xpose.msra.mxu0 0.0
    %2080 = vmatprep.subr.mxu0 0.0
    %2081 = vmatpush1.xpose.msra.mxu0 0.0
    %2082 = vmatprep.subr.mxu0 0.0
    %2083 = vmatpush1.xpose.msra.mxu0 0.0
    %2084 = vmatprep.subr.mxu0 0.0
    %2085 = vmatpush1.xpose.msra.mxu0 0.0
    %2086 = vmatprep.subr.mxu0 0.0
    %2087 = vmatpush1.xpose.msra.mxu0 0.0
    %2088 = vmatprep.subr.mxu0 0.0
    %2089 = vmatpush1.xpose.msra.mxu0 0.0
    %2090 = vmatprep.subr.mxu0 0.0
    %2091 = vmatpush1.xpose.msra.mxu0 0.0
    %2092 = vmatprep.subr.mxu0 0.0
    %2093 = vmatpush1.xpose.msra.mxu0 0.0
    %2094 = vmatprep.subr.mxu0 0.0
    %2095 = vmatpush1.xpose.msra.mxu0 0.0
    %2096 = vmatprep.subr.mxu0 0.0
    %2097 = vmatpush1.xpose.msra.mxu0 0.0
    %2098 = vmatprep.subr.mxu0 0.0
    %2099 = vmatpush1.xpose.msra.mxu0 0.0
    %2100 = vmatprep.subr.mxu0 0.0
    %2101 = vmatpush1.xpose.msra.mxu0 0.0
    %2102 = vmatprep.subr.mxu0 0.0
    %2103 = vmatpush1.xpose.msra.mxu0 %v2072
    %2104 = vmatprep.subr.mxu0 0.0
    %2105 = vmatpush1.xpose.msra.mxu0 %v2070
    %2106 = vmatprep.subr.mxu0 0.0
    %2107 = vmatpush2.xpose.msra.mxu0 0.0
    %2108 = vmatprep.subr.mxu0 0.0
    %2109 = vmatpush2.xpose.msra.mxu0 0.0
    %2110 = vmatprep.subr.mxu0 0.0
    %2111 = vmatpush2.xpose.msra.mxu0 0.0
    %2112 = vmatprep.subr.mxu0 0.0
    %2113 = vmatpush2.xpose.msra.mxu0 0.0
    %2114 = vmatprep.subr.mxu0 0.0
    %2115 = vmatpush2.xpose.msra.mxu0 0.0
    %2116 = vmatprep.subr.mxu0 0.0
    %2117 = vmatpush2.xpose.msra.mxu0 0.0
    %2118 = vmatprep.subr.mxu0 0.0
    %2119 = vmatpush2.xpose.msra.mxu0 0.0
    %2120 = vmatprep.subr.mxu0 0.0
    %2121 = vmatpush2.xpose.msra.mxu0 0.0
    %2122 = vmatprep.subr.mxu0 0.0
    %2123 = vmatpush2.xpose.msra.mxu0 0.0
    %2124 = vmatprep.subr.mxu0 0.0
    %2125 = vmatpush2.xpose.msra.mxu0 0.0
    %2126 = vmatprep.subr.mxu0 0.0
    %2127 = vmatpush2.xpose.msra.mxu0 0.0
    %2128 = vmatprep.subr.mxu0 0.0
    %2129 = vmatpush2.xpose.msra.mxu0 0.0
    %2130 = vmatprep.subr.mxu0 0.0
    %2131 = vmatpush2.xpose.msra.mxu0 0.0
    %2132 = vmatprep.subr.mxu0 0.0
    %2133 = vmatpush2.xpose.msra.mxu0 0.0
    %2134 = vmatprep.subr.mxu0 0.0
    %2135 = vmatpush2.xpose.msra.mxu0 0.0
    %2136 = vmatprep.subr.mxu0 0.0
    %2137 = vmatpush2.xpose.msra.mxu0 0.0
    %2138 = vmatprep.mubr.f32.mxu0 0.0
    %2139 = vmatmul.mubr.f32.gmra.mxu0 %v2066
    %v2140 = vpop.f32.mrf.mxu0
    %v2141 = vadd.f32 %v143, %v2140
    %v2142 = vpop.f32.mrf.mxu0
    %2143 = vmatprep.mubr.f32.mxu0 0.0
    %2144 = vmatmul.mubr.f32.gmra.mxu0 %v2068
    %v2145 = vpop.f32.mrf.mxu0
    %v2146 = vadd.f32 %v144, %v2145
    %v2147 = vpop.f32.mrf.mxu0
    %2148 = vdwg.mxu0
    %v2149 = vsel %vm430, %v2141, -inf
    %2150 = vmax.xlane.f32.xlu0 %v2149
    %v2151 = vpop.xlane.xlu0 %2150
    %v2152 = vsel %vm430, %v2146, -inf
    %2153 = vmax.xlane.f32.xlu0 %v2152
    %v2154 = vpop.xlane.xlu0 %2153
    %v2155 = vsub.f32 %v2141, %v2151
    %v2156 = vsub.f32 %v2146, %v2154
    %v2157 = vmul.f32 %v2155, 1.442695
    %v2158 = vpow.pop %v2157
    %v2159 = vmul.f32 %v2156, 1.442695
    %v2160 = vpow.pop %v2159
    %v2161 = vsel %vm430, %v2158, 0.0
    %2162 = vadd.xlane.f32.xlu0 %v2161
    %v2163 = vpop.xlane.xlu0 %2162
    %v2164 = vsel %vm430, %v2160, 0.0
    %2165 = vadd.xlane.f32.xlu0 %v2164
    %v2166 = vpop.xlane.xlu0 %2165
    %v2167 = vrcp.pop %v2163
    %v2168 = vrcp.pop %v2166
    %v2169 = vmul.f32 %v2158, %v2167
    %v2170 = vmul.f32 %v2160, %v2168
    %2171 = vrot.lane.b32.xlu0 %v1847, 56
    %v2172 = vpop.permute.xlu0 %2171
    %2173 = vrot.lane.b32.xlu0 %v1852, 56
    %v2174 = vpop.permute.xlu0 %2173
    %v2178 = vsel %vm430, %v2169, 0
    %v2181 = vsel %vm430, %v2170, 0
    %2183 = vmatprep.subr.mxu0 0.0
    %2184 = vmatpush1.msra.mxu0 0.0
    %2185 = vmatprep.subr.mxu0 0.0
    %2186 = vmatpush1.msra.mxu0 0.0
    %2187 = vmatprep.subr.mxu0 0.0
    %2188 = vmatpush1.msra.mxu0 0.0
    %2189 = vmatprep.subr.mxu0 0.0
    %2190 = vmatpush1.msra.mxu0 0.0
    %2191 = vmatprep.subr.mxu0 0.0
    %2192 = vmatpush1.msra.mxu0 0.0
    %2193 = vmatprep.subr.mxu0 0.0
    %2194 = vmatpush1.msra.mxu0 0.0
    %2195 = vmatprep.subr.mxu0 0.0
    %2196 = vmatpush1.msra.mxu0 0.0
    %2197 = vmatprep.subr.mxu0 0.0
    %2198 = vmatpush1.msra.mxu0 0.0
    %2199 = vmatprep.subr.mxu0 0.0
    %2200 = vmatpush1.msra.mxu0 0.0
    %2201 = vmatprep.subr.mxu0 0.0
    %2202 = vmatpush1.msra.mxu0 0.0
    %2203 = vmatprep.subr.mxu0 0.0
    %2204 = vmatpush1.msra.mxu0 0.0
    %2205 = vmatprep.subr.mxu0 0.0
    %2206 = vmatpush1.msra.mxu0 0.0
    %2207 = vmatprep.subr.mxu0 0.0
    %2208 = vmatpush1.msra.mxu0 0.0
    %2209 = vmatprep.subr.mxu0 0.0
    %2210 = vmatpush1.msra.mxu0 0.0
    %2211 = vmatprep.subr.mxu0 0.0
    %2212 = vmatpush1.msra.mxu0 %v2174
    %2213 = vmatprep.subr.mxu0 0.0
    %2214 = vmatpush1.msra.mxu0 %v2172
    %2215 = vmatprep.subr.mxu0 0.0
    %2216 = vmatpush2.msra.mxu0 0.0
    %2217 = vmatprep.subr.mxu0 0.0
    %2218 = vmatpush2.msra.mxu0 0.0
    %2219 = vmatprep.subr.mxu0 0.0
    %2220 = vmatpush2.msra.mxu0 0.0
    %2221 = vmatprep.subr.mxu0 0.0
    %2222 = vmatpush2.msra.mxu0 0.0
    %2223 = vmatprep.subr.mxu0 0.0
    %2224 = vmatpush2.msra.mxu0 0.0
    %2225 = vmatprep.subr.mxu0 0.0
    %2226 = vmatpush2.msra.mxu0 0.0
    %2227 = vmatprep.subr.mxu0 0.0
    %2228 = vmatpush2.msra.mxu0 0.0
    %2229 = vmatprep.subr.mxu0 0.0
    %2230 = vmatpush2.msra.mxu0 0.0
    %2231 = vmatprep.subr.mxu0 0.0
    %2232 = vmatpush2.msra.mxu0 0.0
    %2233 = vmatprep.subr.mxu0 0.0
    %2234 = vmatpush2.msra.mxu0 0.0
    %2235 = vmatprep.subr.mxu0 0.0
    %2236 = vmatpush2.msra.mxu0 0.0
    %2237 = vmatprep.subr.mxu0 0.0
    %2238 = vmatpush2.msra.mxu0 0.0
    %2239 = vmatprep.subr.mxu0 0.0
    %2240 = vmatpush2.msra.mxu0 0.0
    %2241 = vmatprep.subr.mxu0 0.0
    %2242 = vmatpush2.msra.mxu0 0.0
    %2243 = vmatprep.subr.mxu0 0.0
    %2244 = vmatpush2.msra.mxu0 0.0
    %2245 = vmatprep.subr.mxu0 0.0
    %2246 = vmatpush2.msra.mxu0 0.0
    %2247 = vmatprep.mubr.f32.mxu0 0.0
    %2248 = vmatmul.mubr.f32.gmra.mxu0 %v2178
    %v2249 = vpop.f32.mrf.mxu0
    %v2250 = vadd.f32 0.0, %v2249
    %v2251 = vpop.f32.mrf.mxu0
    %2252 = vmatprep.mubr.f32.mxu0 0.0
    %2253 = vmatmul.mubr.f32.gmra.mxu0 %v2181
    %v2254 = vpop.f32.mrf.mxu0
    %v2255 = vadd.f32 0.0, %v2254
    %v2256 = vpop.f32.mrf.mxu0
    %2257 = vdwg.mxu0
    %v2259 = vsel %vm346, %v2250, 0
    %v2262 = vsel %vm346, %v2255, 0
    %2264 = vmatprep.subr.mxu0 0.0
    %2265 = vmatpush1.msra.mxu0 0.0
    %2266 = vmatprep.subr.mxu0 0.0
    %2267 = vmatpush1.msra.mxu0 0.0
    %2268 = vmatprep.subr.mxu0 0.0
    %2269 = vmatpush1.msra.mxu0 0.0
    %2270 = vmatprep.subr.mxu0 0.0
    %2271 = vmatpush1.msra.mxu0 0.0
    %2272 = vmatprep.subr.mxu0 0.0
    %2273 = vmatpush1.msra.mxu0 0.0
    %2274 = vmatprep.subr.mxu0 0.0
    %2275 = vmatpush1.msra.mxu0 0.0
    %2276 = vmatprep.subr.mxu0 0.0
    %2277 = vmatpush1.msra.mxu0 0.0
    %2278 = vmatprep.subr.mxu0 0.0
    %2279 = vmatpush1.msra.mxu0 0.0
    %2280 = vmatprep.subr.mxu0 0.0
    %2281 = vmatpush1.msra.mxu0 0.0
    %2282 = vmatprep.subr.mxu0 0.0
    %2283 = vmatpush1.msra.mxu0 0.0
    %2284 = vmatprep.subr.mxu0 0.0
    %2285 = vmatpush1.msra.mxu0 0.0
    %2286 = vmatprep.subr.mxu0 0.0
    %2287 = vmatpush1.msra.mxu0 0.0
    %2288 = vmatprep.subr.mxu0 0.0
    %2289 = vmatpush1.msra.mxu0 0.0
    %2290 = vmatprep.subr.mxu0 0.0
    %2291 = vmatpush1.msra.mxu0 0.0
    %2292 = vmatprep.subr.mxu0 0.0
    %2293 = vmatpush1.msra.mxu0 0.0
    %2294 = vmatprep.subr.mxu0 0.0
    %2295 = vmatpush1.msra.mxu0 %v1857
    %2296 = vmatprep.subr.mxu0 0.0
    %2297 = vmatpush2.msra.mxu0 0.0
    %2298 = vmatprep.subr.mxu0 0.0
    %2299 = vmatpush2.msra.mxu0 0.0
    %2300 = vmatprep.subr.mxu0 0.0
    %2301 = vmatpush2.msra.mxu0 0.0
    %2302 = vmatprep.subr.mxu0 0.0
    %2303 = vmatpush2.msra.mxu0 0.0
    %2304 = vmatprep.subr.mxu0 0.0
    %2305 = vmatpush2.msra.mxu0 0.0
    %2306 = vmatprep.subr.mxu0 0.0
    %2307 = vmatpush2.msra.mxu0 0.0
    %2308 = vmatprep.subr.mxu0 0.0
    %2309 = vmatpush2.msra.mxu0 0.0
    %2310 = vmatprep.subr.mxu0 0.0
    %2311 = vmatpush2.msra.mxu0 0.0
    %2312 = vmatprep.subr.mxu0 0.0
    %2313 = vmatpush2.msra.mxu0 0.0
    %2314 = vmatprep.subr.mxu0 0.0
    %2315 = vmatpush2.msra.mxu0 0.0
    %2316 = vmatprep.subr.mxu0 0.0
    %2317 = vmatpush2.msra.mxu0 0.0
    %2318 = vmatprep.subr.mxu0 0.0
    %2319 = vmatpush2.msra.mxu0 0.0
    %2320 = vmatprep.subr.mxu0 0.0
    %2321 = vmatpush2.msra.mxu0 0.0
    %2322 = vmatprep.subr.mxu0 0.0
    %2323 = vmatpush2.msra.mxu0 0.0
    %2324 = vmatprep.subr.mxu0 0.0
    %2325 = vmatpush2.msra.mxu0 0.0
    %2326 = vmatprep.subr.mxu0 0.0
    %2327 = vmatpush2.msra.mxu0 0.0
    %2328 = vmatprep.mubr.f32.mxu0 0.0
    %2329 = vmatmul.mubr.f32.gmra.mxu0 %v2259
    %v2330 = vpop.f32.mrf.mxu0
    %v2331 = vadd.f32 0.0, %v2330
    %v2332 = vpop.f32.mrf.mxu0
    %2333 = vmatprep.mubr.f32.mxu0 0.0
    %2334 = vmatmul.mubr.f32.gmra.mxu0 %v2262
    %v2335 = vpop.f32.mrf.mxu0
    %v2336 = vadd.f32 0.0, %v2335
    %v2337 = vpop.f32.mrf.mxu0
    %2338 = vdwg.mxu0
    %v2340 = vsel %vm346, %v2050, 0
    %v2343 = vsel %vm346, %v2055, 0
    %2345 = vmatprep.subr.mxu0 0.0
    %2346 = vmatpush1.msra.mxu0 0.0
    %2347 = vmatprep.subr.mxu0 0.0
    %2348 = vmatpush1.msra.mxu0 0.0
    %2349 = vmatprep.subr.mxu0 0.0
    %2350 = vmatpush1.msra.mxu0 0.0
    %2351 = vmatprep.subr.mxu0 0.0
    %2352 = vmatpush1.msra.mxu0 0.0
    %2353 = vmatprep.subr.mxu0 0.0
    %2354 = vmatpush1.msra.mxu0 0.0
    %2355 = vmatprep.subr.mxu0 0.0
    %2356 = vmatpush1.msra.mxu0 0.0
    %2357 = vmatprep.subr.mxu0 0.0
    %2358 = vmatpush1.msra.mxu0 0.0
    %2359 = vmatprep.subr.mxu0 0.0
    %2360 = vmatpush1.msra.mxu0 0.0
    %2361 = vmatprep.subr.mxu0 0.0
    %2362 = vmatpush1.msra.mxu0 0.0
    %2363 = vmatprep.subr.mxu0 0.0
    %2364 = vmatpush1.msra.mxu0 0.0
    %2365 = vmatprep.subr.mxu0 0.0
    %2366 = vmatpush1.msra.mxu0 0.0
    %2367 = vmatprep.subr.mxu0 0.0
    %2368 = vmatpush1.msra.mxu0 0.0
    %2369 = vmatprep.subr.mxu0 0.0
    %2370 = vmatpush1.msra.mxu0 0.0
    %2371 = vmatprep.subr.mxu0 0.0
    %2372 = vmatpush1.msra.mxu0 0.0
    %2373 = vmatprep.subr.mxu0 0.0
    %2374 = vmatpush1.msra.mxu0 0.0
    %2375 = vmatprep.subr.mxu0 0.0
    %2376 = vmatpush1.msra.mxu0 %v1856
    %2377 = vmatprep.subr.mxu0 0.0
    %2378 = vmatpush2.msra.mxu0 0.0
    %2379 = vmatprep.subr.mxu0 0.0
    %2380 = vmatpush2.msra.mxu0 0.0
    %2381 = vmatprep.subr.mxu0 0.0
    %2382 = vmatpush2.msra.mxu0 0.0
    %2383 = vmatprep.subr.mxu0 0.0
    %2384 = vmatpush2.msra.mxu0 0.0
    %2385 = vmatprep.subr.mxu0 0.0
    %2386 = vmatpush2.msra.mxu0 0.0
    %2387 = vmatprep.subr.mxu0 0.0
    %2388 = vmatpush2.msra.mxu0 0.0
    %2389 = vmatprep.subr.mxu0 0.0
    %2390 = vmatpush2.msra.mxu0 0.0
    %2391 = vmatprep.subr.mxu0 0.0
    %2392 = vmatpush2.msra.mxu0 0.0
    %2393 = vmatprep.subr.mxu0 0.0
    %2394 = vmatpush2.msra.mxu0 0.0
    %2395 = vmatprep.subr.mxu0 0.0
    %2396 = vmatpush2.msra.mxu0 0.0
    %2397 = vmatprep.subr.mxu0 0.0
    %2398 = vmatpush2.msra.mxu0 0.0
    %2399 = vmatprep.subr.mxu0 0.0
    %2400 = vmatpush2.msra.mxu0 0.0
    %2401 = vmatprep.subr.mxu0 0.0
    %2402 = vmatpush2.msra.mxu0 0.0
    %2403 = vmatprep.subr.mxu0 0.0
    %2404 = vmatpush2.msra.mxu0 0.0
    %2405 = vmatprep.subr.mxu0 0.0
    %2406 = vmatpush2.msra.mxu0 0.0
    %2407 = vmatprep.subr.mxu0 0.0
    %2408 = vmatpush2.msra.mxu0 0.0
    %2409 = vmatprep.mubr.f32.mxu0 0.0
    %2410 = vmatmul.mubr.f32.gmra.mxu0 %v2340
    %v2411 = vpop.f32.mrf.mxu0
    %v2412 = vadd.f32 %v2331, %v2411
    %v2413 = vpop.f32.mrf.mxu0
    %2414 = vmatprep.mubr.f32.mxu0 0.0
    %2415 = vmatmul.mubr.f32.gmra.mxu0 %v2343
    %v2416 = vpop.f32.mrf.mxu0
    %v2417 = vadd.f32 %v2336, %v2416
    %v2418 = vpop.f32.mrf.mxu0
    %2419 = vdwg.mxu0
    %2420 = vrot.lane.b32.xlu0 %v1847, 112
    %v2421 = vpop.permute.xlu0 %2420
    %2422 = vrot.lane.b32.xlu0 %v1852, 112
    %v2423 = vpop.permute.xlu0 %2422
    %2424 = vrot.lane.b32.xlu0 %v1847, 80
    %v2425 = vpop.permute.xlu0 %2424
    %2426 = vrot.lane.b32.xlu0 %v1852, 80
    %v2427 = vpop.permute.xlu0 %2426
    %v2428 = vsel %vm346, %v2421, 0
    %v2430 = vsel %vm346, %v2423, 0
    %v2432 = vsel %vm346, %v2425, 0
    %v2434 = vsel %vm346, %v2427, 0
    %2436 = vmatprep.subr.mxu0 0.0
    %2437 = vmatpush1.xpose.msra.mxu0 0.0
    %2438 = vmatprep.subr.mxu0 0.0
    %2439 = vmatpush1.xpose.msra.mxu0 0.0
    %2440 = vmatprep.subr.mxu0 0.0
    %2441 = vmatpush1.xpose.msra.mxu0 0.0
    %2442 = vmatprep.subr.mxu0 0.0
    %2443 = vmatpush1.xpose.msra.mxu0 0.0
    %2444 = vmatprep.subr.mxu0 0.0
    %2445 = vmatpush1.xpose.msra.mxu0 0.0
    %2446 = vmatprep.subr.mxu0 0.0
    %2447 = vmatpush1.xpose.msra.mxu0 0.0
    %2448 = vmatprep.subr.mxu0 0.0
    %2449 = vmatpush1.xpose.msra.mxu0 0.0
    %2450 = vmatprep.subr.mxu0 0.0
    %2451 = vmatpush1.xpose.msra.mxu0 0.0
    %2452 = vmatprep.subr.mxu0 0.0
    %2453 = vmatpush1.xpose.msra.mxu0 0.0
    %2454 = vmatprep.subr.mxu0 0.0
    %2455 = vmatpush1.xpose.msra.mxu0 0.0
    %2456 = vmatprep.subr.mxu0 0.0
    %2457 = vmatpush1.xpose.msra.mxu0 0.0
    %2458 = vmatprep.subr.mxu0 0.0
    %2459 = vmatpush1.xpose.msra.mxu0 0.0
    %2460 = vmatprep.subr.mxu0 0.0
    %2461 = vmatpush1.xpose.msra.mxu0 0.0
    %2462 = vmatprep.subr.mxu0 0.0
    %2463 = vmatpush1.xpose.msra.mxu0 0.0
    %2464 = vmatprep.subr.mxu0 0.0
    %2465 = vmatpush1.xpose.msra.mxu0 %v2434
    %2466 = vmatprep.subr.mxu0 0.0
    %2467 = vmatpush1.xpose.msra.mxu0 %v2432
    %2468 = vmatprep.subr.mxu0 0.0
    %2469 = vmatpush2.xpose.msra.mxu0 0.0
    %2470 = vmatprep.subr.mxu0 0.0
    %2471 = vmatpush2.xpose.msra.mxu0 0.0
    %2472 = vmatprep.subr.mxu0 0.0
    %2473 = vmatpush2.xpose.msra.mxu0 0.0
    %2474 = vmatprep.subr.mxu0 0.0
    %2475 = vmatpush2.xpose.msra.mxu0 0.0
    %2476 = vmatprep.subr.mxu0 0.0
    %2477 = vmatpush2.xpose.msra.mxu0 0.0
    %2478 = vmatprep.subr.mxu0 0.0
    %2479 = vmatpush2.xpose.msra.mxu0 0.0
    %2480 = vmatprep.subr.mxu0 0.0
    %2481 = vmatpush2.xpose.msra.mxu0 0.0
    %2482 = vmatprep.subr.mxu0 0.0
    %2483 = vmatpush2.xpose.msra.mxu0 0.0
    %2484 = vmatprep.subr.mxu0 0.0
    %2485 = vmatpush2.xpose.msra.mxu0 0.0
    %2486 = vmatprep.subr.mxu0 0.0
    %2487 = vmatpush2.xpose.msra.mxu0 0.0
    %2488 = vmatprep.subr.mxu0 0.0
    %2489 = vmatpush2.xpose.msra.mxu0 0.0
    %2490 = vmatprep.subr.mxu0 0.0
    %2491 = vmatpush2.xpose.msra.mxu0 0.0
    %2492 = vmatprep.subr.mxu0 0.0
    %2493 = vmatpush2.xpose.msra.mxu0 0.0
    %2494 = vmatprep.subr.mxu0 0.0
    %2495 = vmatpush2.xpose.msra.mxu0 0.0
    %2496 = vmatprep.subr.mxu0 0.0
    %2497 = vmatpush2.xpose.msra.mxu0 0.0
    %2498 = vmatprep.subr.mxu0 0.0
    %2499 = vmatpush2.xpose.msra.mxu0 0.0
    %2500 = vmatprep.mubr.f32.mxu0 0.0
    %2501 = vmatmul.mubr.f32.gmra.mxu0 %v2428
    %v2502 = vpop.f32.mrf.mxu0
    %v2503 = vadd.f32 %v143, %v2502
    %v2504 = vpop.f32.mrf.mxu0
    %2505 = vmatprep.mubr.f32.mxu0 0.0
    %2506 = vmatmul.mubr.f32.gmra.mxu0 %v2430
    %v2507 = vpop.f32.mrf.mxu0
    %v2508 = vadd.f32 %v144, %v2507
    %v2509 = vpop.f32.mrf.mxu0
    %2510 = vdwg.mxu0
    %v2511 = vsel %vm430, %v2503, -inf
    %2512 = vmax.xlane.f32.xlu0 %v2511
    %v2513 = vpop.xlane.xlu0 %2512
    %v2514 = vsel %vm430, %v2508, -inf
    %2515 = vmax.xlane.f32.xlu0 %v2514
    %v2516 = vpop.xlane.xlu0 %2515
    %v2517 = vsub.f32 %v2503, %v2513
    %v2518 = vsub.f32 %v2508, %v2516
    %v2519 = vmul.f32 %v2517, 1.442695
    %v2520 = vpow.pop %v2519
    %v2521 = vmul.f32 %v2518, 1.442695
    %v2522 = vpow.pop %v2521
    %v2523 = vsel %vm430, %v2520, 0.0
    %2524 = vadd.xlane.f32.xlu0 %v2523
    %v2525 = vpop.xlane.xlu0 %2524
    %v2526 = vsel %vm430, %v2522, 0.0
    %2527 = vadd.xlane.f32.xlu0 %v2526
    %v2528 = vpop.xlane.xlu0 %2527
    %v2529 = vrcp.pop %v2525
    %v2530 = vrcp.pop %v2528
    %v2531 = vmul.f32 %v2520, %v2529
    %v2532 = vmul.f32 %v2522, %v2530
    %2533 = vrot.lane.b32.xlu0 %v1847, 48
    %v2534 = vpop.permute.xlu0 %2533
    %2535 = vrot.lane.b32.xlu0 %v1852, 48
    %v2536 = vpop.permute.xlu0 %2535
    %v2540 = vsel %vm430, %v2531, 0
    %v2543 = vsel %vm430, %v2532, 0
    %2545 = vmatprep.subr.mxu0 0.0
    %2546 = vmatpush1.msra.mxu0 0.0
    %2547 = vmatprep.subr.mxu0 0.0
    %2548 = vmatpush1.msra.mxu0 0.0
    %2549 = vmatprep.subr.mxu0 0.0
    %2550 = vmatpush1.msra.mxu0 0.0
    %2551 = vmatprep.subr.mxu0 0.0
    %2552 = vmatpush1.msra.mxu0 0.0
    %2553 = vmatprep.subr.mxu0 0.0
    %2554 = vmatpush1.msra.mxu0 0.0
    %2555 = vmatprep.subr.mxu0 0.0
    %2556 = vmatpush1.msra.mxu0 0.0
    %2557 = vmatprep.subr.mxu0 0.0
    %2558 = vmatpush1.msra.mxu0 0.0
    %2559 = vmatprep.subr.mxu0 0.0
    %2560 = vmatpush1.msra.mxu0 0.0
    %2561 = vmatprep.subr.mxu0 0.0
    %2562 = vmatpush1.msra.mxu0 0.0
    %2563 = vmatprep.subr.mxu0 0.0
    %2564 = vmatpush1.msra.mxu0 0.0
    %2565 = vmatprep.subr.mxu0 0.0
    %2566 = vmatpush1.msra.mxu0 0.0
    %2567 = vmatprep.subr.mxu0 0.0
    %2568 = vmatpush1.msra.mxu0 0.0
    %2569 = vmatprep.subr.mxu0 0.0
    %2570 = vmatpush1.msra.mxu0 0.0
    %2571 = vmatprep.subr.mxu0 0.0
    %2572 = vmatpush1.msra.mxu0 0.0
    %2573 = vmatprep.subr.mxu0 0.0
    %2574 = vmatpush1.msra.mxu0 %v2536
    %2575 = vmatprep.subr.mxu0 0.0
    %2576 = vmatpush1.msra.mxu0 %v2534
    %2577 = vmatprep.subr.mxu0 0.0
    %2578 = vmatpush2.msra.mxu0 0.0
    %2579 = vmatprep.subr.mxu0 0.0
    %2580 = vmatpush2.msra.mxu0 0.0
    %2581 = vmatprep.subr.mxu0 0.0
    %2582 = vmatpush2.msra.mxu0 0.0
    %2583 = vmatprep.subr.mxu0 0.0
    %2584 = vmatpush2.msra.mxu0 0.0
    %2585 = vmatprep.subr.mxu0 0.0
    %2586 = vmatpush2.msra.mxu0 0.0
    %2587 = vmatprep.subr.mxu0 0.0
    %2588 = vmatpush2.msra.mxu0 0.0
    %2589 = vmatprep.subr.mxu0 0.0
    %2590 = vmatpush2.msra.mxu0 0.0
    %2591 = vmatprep.subr.mxu0 0.0
    %2592 = vmatpush2.msra.mxu0 0.0
    %2593 = vmatprep.subr.mxu0 0.0
    %2594 = vmatpush2.msra.mxu0 0.0
    %2595 = vmatprep.subr.mxu0 0.0
    %2596 = vmatpush2.msra.mxu0 0.0
    %2597 = vmatprep.subr.mxu0 0.0
    %2598 = vmatpush2.msra.mxu0 0.0
    %2599 = vmatprep.subr.mxu0 0.0
    %2600 = vmatpush2.msra.mxu0 0.0
    %2601 = vmatprep.subr.mxu0 0.0
    %2602 = vmatpush2.msra.mxu0 0.0
    %2603 = vmatprep.subr.mxu0 0.0
    %2604 = vmatpush2.msra.mxu0 0.0
    %2605 = vmatprep.subr.mxu0 0.0
    %2606 = vmatpush2.msra.mxu0 0.0
    %2607 = vmatprep.subr.mxu0 0.0
    %2608 = vmatpush2.msra.mxu0 0.0
    %2609 = vmatprep.mubr.f32.mxu0 0.0
    %2610 = vmatmul.mubr.f32.gmra.mxu0 %v2540
    %v2611 = vpop.f32.mrf.mxu0
    %v2612 = vadd.f32 0.0, %v2611
    %v2613 = vpop.f32.mrf.mxu0
    %2614 = vmatprep.mubr.f32.mxu0 0.0
    %2615 = vmatmul.mubr.f32.gmra.mxu0 %v2543
    %v2616 = vpop.f32.mrf.mxu0
    %v2617 = vadd.f32 0.0, %v2616
    %v2618 = vpop.f32.mrf.mxu0
    %2619 = vdwg.mxu0
    %v2621 = vsel %vm346, %v2612, 0
    %v2624 = vsel %vm346, %v2617, 0
    %2626 = vmatprep.subr.mxu0 0.0
    %2627 = vmatpush1.msra.mxu0 0.0
    %2628 = vmatprep.subr.mxu0 0.0
    %2629 = vmatpush1.msra.mxu0 0.0
    %2630 = vmatprep.subr.mxu0 0.0
    %2631 = vmatpush1.msra.mxu0 0.0
    %2632 = vmatprep.subr.mxu0 0.0
    %2633 = vmatpush1.msra.mxu0 0.0
    %2634 = vmatprep.subr.mxu0 0.0
    %2635 = vmatpush1.msra.mxu0 0.0
    %2636 = vmatprep.subr.mxu0 0.0
    %2637 = vmatpush1.msra.mxu0 0.0
    %2638 = vmatprep.subr.mxu0 0.0
    %2639 = vmatpush1.msra.mxu0 0.0
    %2640 = vmatprep.subr.mxu0 0.0
    %2641 = vmatpush1.msra.mxu0 0.0
    %2642 = vmatprep.subr.mxu0 0.0
    %2643 = vmatpush1.msra.mxu0 0.0
    %2644 = vmatprep.subr.mxu0 0.0
    %2645 = vmatpush1.msra.mxu0 0.0
    %2646 = vmatprep.subr.mxu0 0.0
    %2647 = vmatpush1.msra.mxu0 0.0
    %2648 = vmatprep.subr.mxu0 0.0
    %2649 = vmatpush1.msra.mxu0 0.0
    %2650 = vmatprep.subr.mxu0 0.0
    %2651 = vmatpush1.msra.mxu0 0.0
    %2652 = vmatprep.subr.mxu0 0.0
    %2653 = vmatpush1.msra.mxu0 0.0
    %2654 = vmatprep.subr.mxu0 0.0
    %2655 = vmatpush1.msra.mxu0 0.0
    %2656 = vmatprep.subr.mxu0 0.0
    %2657 = vmatpush1.msra.mxu0 %v1858
    %2658 = vmatprep.subr.mxu0 0.0
    %2659 = vmatpush2.msra.mxu0 0.0
    %2660 = vmatprep.subr.mxu0 0.0
    %2661 = vmatpush2.msra.mxu0 0.0
    %2662 = vmatprep.subr.mxu0 0.0
    %2663 = vmatpush2.msra.mxu0 0.0
    %2664 = vmatprep.subr.mxu0 0.0
    %2665 = vmatpush2.msra.mxu0 0.0
    %2666 = vmatprep.subr.mxu0 0.0
    %2667 = vmatpush2.msra.mxu0 0.0
    %2668 = vmatprep.subr.mxu0 0.0
    %2669 = vmatpush2.msra.mxu0 0.0
    %2670 = vmatprep.subr.mxu0 0.0
    %2671 = vmatpush2.msra.mxu0 0.0
    %2672 = vmatprep.subr.mxu0 0.0
    %2673 = vmatpush2.msra.mxu0 0.0
    %2674 = vmatprep.subr.mxu0 0.0
    %2675 = vmatpush2.msra.mxu0 0.0
    %2676 = vmatprep.subr.mxu0 0.0
    %2677 = vmatpush2.msra.mxu0 0.0
    %2678 = vmatprep.subr.mxu0 0.0
    %2679 = vmatpush2.msra.mxu0 0.0
    %2680 = vmatprep.subr.mxu0 0.0
    %2681 = vmatpush2.msra.mxu0 0.0
    %2682 = vmatprep.subr.mxu0 0.0
    %2683 = vmatpush2.msra.mxu0 0.0
    %2684 = vmatprep.subr.mxu0 0.0
    %2685 = vmatpush2.msra.mxu0 0.0
    %2686 = vmatprep.subr.mxu0 0.0
    %2687 = vmatpush2.msra.mxu0 0.0
    %2688 = vmatprep.subr.mxu0 0.0
    %2689 = vmatpush2.msra.mxu0 0.0
    %2690 = vmatprep.mubr.f32.mxu0 0.0
    %2691 = vmatmul.mubr.f32.gmra.mxu0 %v2621
    %v2692 = vpop.f32.mrf.mxu0
    %v2693 = vadd.f32 0.0, %v2692
    %v2694 = vpop.f32.mrf.mxu0
    %2695 = vmatprep.mubr.f32.mxu0 0.0
    %2696 = vmatmul.mubr.f32.gmra.mxu0 %v2624
    %v2697 = vpop.f32.mrf.mxu0
    %v2698 = vadd.f32 0.0, %v2697
    %v2699 = vpop.f32.mrf.mxu0
    %2700 = vdwg.mxu0
    %v2701 = vadd.f32 %v2412, %v2693
    %v2702 = vadd.f32 %v2417, %v2698
    %2703 = vrot.lane.b32.xlu0 %v1847, 104
    %v2704 = vpop.permute.xlu0 %2703
    %2705 = vrot.lane.b32.xlu0 %v1852, 104
    %v2706 = vpop.permute.xlu0 %2705
    %2707 = vrot.lane.b32.xlu0 %v1847, 72
    %v2708 = vpop.permute.xlu0 %2707
    %2709 = vrot.lane.b32.xlu0 %v1852, 72
    %v2710 = vpop.permute.xlu0 %2709
    %v2711 = vsel %vm346, %v2704, 0
    %v2713 = vsel %vm346, %v2706, 0
    %v2715 = vsel %vm346, %v2708, 0
    %v2717 = vsel %vm346, %v2710, 0
    %2719 = vmatprep.subr.mxu0 0.0
    %2720 = vmatpush1.xpose.msra.mxu0 0.0
    %2721 = vmatprep.subr.mxu0 0.0
    %2722 = vmatpush1.xpose.msra.mxu0 0.0
    %2723 = vmatprep.subr.mxu0 0.0
    %2724 = vmatpush1.xpose.msra.mxu0 0.0
    %2725 = vmatprep.subr.mxu0 0.0
    %2726 = vmatpush1.xpose.msra.mxu0 0.0
    %2727 = vmatprep.subr.mxu0 0.0
    %2728 = vmatpush1.xpose.msra.mxu0 0.0
    %2729 = vmatprep.subr.mxu0 0.0
    %2730 = vmatpush1.xpose.msra.mxu0 0.0
    %2731 = vmatprep.subr.mxu0 0.0
    %2732 = vmatpush1.xpose.msra.mxu0 0.0
    %2733 = vmatprep.subr.mxu0 0.0
    %2734 = vmatpush1.xpose.msra.mxu0 0.0
    %2735 = vmatprep.subr.mxu0 0.0
    %2736 = vmatpush1.xpose.msra.mxu0 0.0
    %2737 = vmatprep.subr.mxu0 0.0
    %2738 = vmatpush1.xpose.msra.mxu0 0.0
    %2739 = vmatprep.subr.mxu0 0.0
    %2740 = vmatpush1.xpose.msra.mxu0 0.0
    %2741 = vmatprep.subr.mxu0 0.0
    %2742 = vmatpush1.xpose.msra.mxu0 0.0
    %2743 = vmatprep.subr.mxu0 0.0
    %2744 = vmatpush1.xpose.msra.mxu0 0.0
    %2745 = vmatprep.subr.mxu0 0.0
    %2746 = vmatpush1.xpose.msra.mxu0 0.0
    %2747 = vmatprep.subr.mxu0 0.0
    %2748 = vmatpush1.xpose.msra.mxu0 %v2717
    %2749 = vmatprep.subr.mxu0 0.0
    %2750 = vmatpush1.xpose.msra.mxu0 %v2715
    %2751 = vmatprep.subr.mxu0 0.0
    %2752 = vmatpush2.xpose.msra.mxu0 0.0
    %2753 = vmatprep.subr.mxu0 0.0
    %2754 = vmatpush2.xpose.msra.mxu0 0.0
    %2755 = vmatprep.subr.mxu0 0.0
    %2756 = vmatpush2.xpose.msra.mxu0 0.0
    %2757 = vmatprep.subr.mxu0 0.0
    %2758 = vmatpush2.xpose.msra.mxu0 0.0
    %2759 = vmatprep.subr.mxu0 0.0
    %2760 = vmatpush2.xpose.msra.mxu0 0.0
    %2761 = vmatprep.subr.mxu0 0.0
    %2762 = vmatpush2.xpose.msra.mxu0 0.0
    %2763 = vmatprep.subr.mxu0 0.0
    %2764 = vmatpush2.xpose.msra.mxu0 0.0
    %2765 = vmatprep.subr.mxu0 0.0
    %2766 = vmatpush2.xpose.msra.mxu0 0.0
    %2767 = vmatprep.subr.mxu0 0.0
    %2768 = vmatpush2.xpose.msra.mxu0 0.0
    %2769 = vmatprep.subr.mxu0 0.0
    %2770 = vmatpush2.xpose.msra.mxu0 0.0
    %2771 = vmatprep.subr.mxu0 0.0
    %2772 = vmatpush2.xpose.msra.mxu0 0.0
    %2773 = vmatprep.subr.mxu0 0.0
    %2774 = vmatpush2.xpose.msra.mxu0 0.0
    %2775 = vmatprep.subr.mxu0 0.0
    %2776 = vmatpush2.xpose.msra.mxu0 0.0
    %2777 = vmatprep.subr.mxu0 0.0
    %2778 = vmatpush2.xpose.msra.mxu0 0.0
    %2779 = vmatprep.subr.mxu0 0.0
    %2780 = vmatpush2.xpose.msra.mxu0 0.0
    %2781 = vmatprep.subr.mxu0 0.0
    %2782 = vmatpush2.xpose.msra.mxu0 0.0
    %2783 = vmatprep.mubr.f32.mxu0 0.0
    %2784 = vmatmul.mubr.f32.gmra.mxu0 %v2711
    %v2785 = vpop.f32.mrf.mxu0
    %v2786 = vadd.f32 %v143, %v2785
    %v2787 = vpop.f32.mrf.mxu0
    %2788 = vmatprep.mubr.f32.mxu0 0.0
    %2789 = vmatmul.mubr.f32.gmra.mxu0 %v2713
    %v2790 = vpop.f32.mrf.mxu0
    %v2791 = vadd.f32 %v144, %v2790
    %v2792 = vpop.f32.mrf.mxu0
    %2793 = vdwg.mxu0
    %v2794 = vsel %vm430, %v2786, -inf
    %2795 = vmax.xlane.f32.xlu0 %v2794
    %v2796 = vpop.xlane.xlu0 %2795
    %v2797 = vsel %vm430, %v2791, -inf
    %2798 = vmax.xlane.f32.xlu0 %v2797
    %v2799 = vpop.xlane.xlu0 %2798
    %v2800 = vsub.f32 %v2786, %v2796
    %v2801 = vsub.f32 %v2791, %v2799
    %v2802 = vmul.f32 %v2800, 1.442695
    %v2803 = vpow.pop %v2802
    %v2804 = vmul.f32 %v2801, 1.442695
    %v2805 = vpow.pop %v2804
    %v2806 = vsel %vm430, %v2803, 0.0
    %2807 = vadd.xlane.f32.xlu0 %v2806
    %v2808 = vpop.xlane.xlu0 %2807
    %v2809 = vsel %vm430, %v2805, 0.0
    %2810 = vadd.xlane.f32.xlu0 %v2809
    %v2811 = vpop.xlane.xlu0 %2810
    %v2812 = vrcp.pop %v2808
    %v2813 = vrcp.pop %v2811
    %v2814 = vmul.f32 %v2803, %v2812
    %v2815 = vmul.f32 %v2805, %v2813
    %2816 = vrot.lane.b32.xlu0 %v1847, 40
    %v2817 = vpop.permute.xlu0 %2816
    %2818 = vrot.lane.b32.xlu0 %v1852, 40
    %v2819 = vpop.permute.xlu0 %2818
    %v2823 = vsel %vm430, %v2814, 0
    %v2826 = vsel %vm430, %v2815, 0
    %2828 = vmatprep.subr.mxu0 0.0
    %2829 = vmatpush1.msra.mxu0 0.0
    %2830 = vmatprep.subr.mxu0 0.0
    %2831 = vmatpush1.msra.mxu0 0.0
    %2832 = vmatprep.subr.mxu0 0.0
    %2833 = vmatpush1.msra.mxu0 0.0
    %2834 = vmatprep.subr.mxu0 0.0
    %2835 = vmatpush1.msra.mxu0 0.0
    %2836 = vmatprep.subr.mxu0 0.0
    %2837 = vmatpush1.msra.mxu0 0.0
    %2838 = vmatprep.subr.mxu0 0.0
    %2839 = vmatpush1.msra.mxu0 0.0
    %2840 = vmatprep.subr.mxu0 0.0
    %2841 = vmatpush1.msra.mxu0 0.0
    %2842 = vmatprep.subr.mxu0 0.0
    %2843 = vmatpush1.msra.mxu0 0.0
    %2844 = vmatprep.subr.mxu0 0.0
    %2845 = vmatpush1.msra.mxu0 0.0
    %2846 = vmatprep.subr.mxu0 0.0
    %2847 = vmatpush1.msra.mxu0 0.0
    %2848 = vmatprep.subr.mxu0 0.0
    %2849 = vmatpush1.msra.mxu0 0.0
    %2850 = vmatprep.subr.mxu0 0.0
    %2851 = vmatpush1.msra.mxu0 0.0
    %2852 = vmatprep.subr.mxu0 0.0
    %2853 = vmatpush1.msra.mxu0 0.0
    %2854 = vmatprep.subr.mxu0 0.0
    %2855 = vmatpush1.msra.mxu0 0.0
    %2856 = vmatprep.subr.mxu0 0.0
    %2857 = vmatpush1.msra.mxu0 %v2819
    %2858 = vmatprep.subr.mxu0 0.0
    %2859 = vmatpush1.msra.mxu0 %v2817
    %2860 = vmatprep.subr.mxu0 0.0
    %2861 = vmatpush2.msra.mxu0 0.0
    %2862 = vmatprep.subr.mxu0 0.0
    %2863 = vmatpush2.msra.mxu0 0.0
    %2864 = vmatprep.subr.mxu0 0.0
    %2865 = vmatpush2.msra.mxu0 0.0
    %2866 = vmatprep.subr.mxu0 0.0
    %2867 = vmatpush2.msra.mxu0 0.0
    %2868 = vmatprep.subr.mxu0 0.0
    %2869 = vmatpush2.msra.mxu0 0.0
    %2870 = vmatprep.subr.mxu0 0.0
    %2871 = vmatpush2.msra.mxu0 0.0
    %2872 = vmatprep.subr.mxu0 0.0
    %2873 = vmatpush2.msra.mxu0 0.0
    %2874 = vmatprep.subr.mxu0 0.0
    %2875 = vmatpush2.msra.mxu0 0.0
    %2876 = vmatprep.subr.mxu0 0.0
    %2877 = vmatpush2.msra.mxu0 0.0
    %2878 = vmatprep.subr.mxu0 0.0
    %2879 = vmatpush2.msra.mxu0 0.0
    %2880 = vmatprep.subr.mxu0 0.0
    %2881 = vmatpush2.msra.mxu0 0.0
    %2882 = vmatprep.subr.mxu0 0.0
    %2883 = vmatpush2.msra.mxu0 0.0
    %2884 = vmatprep.subr.mxu0 0.0
    %2885 = vmatpush2.msra.mxu0 0.0
    %2886 = vmatprep.subr.mxu0 0.0
    %2887 = vmatpush2.msra.mxu0 0.0
    %2888 = vmatprep.subr.mxu0 0.0
    %2889 = vmatpush2.msra.mxu0 0.0
    %2890 = vmatprep.subr.mxu0 0.0
    %2891 = vmatpush2.msra.mxu0 0.0
    %2892 = vmatprep.mubr.f32.mxu0 0.0
    %2893 = vmatmul.mubr.f32.gmra.mxu0 %v2823
    %v2894 = vpop.f32.mrf.mxu0
    %v2895 = vadd.f32 0.0, %v2894
    %v2896 = vpop.f32.mrf.mxu0
    %2897 = vmatprep.mubr.f32.mxu0 0.0
    %2898 = vmatmul.mubr.f32.gmra.mxu0 %v2826
    %v2899 = vpop.f32.mrf.mxu0
    %v2900 = vadd.f32 0.0, %v2899
    %v2901 = vpop.f32.mrf.mxu0
    %2902 = vdwg.mxu0
    %v2904 = vsel %vm346, %v2895, 0
    %v2907 = vsel %vm346, %v2900, 0
    %2909 = vmatprep.subr.mxu0 0.0
    %2910 = vmatpush1.msra.mxu0 0.0
    %2911 = vmatprep.subr.mxu0 0.0
    %2912 = vmatpush1.msra.mxu0 0.0
    %2913 = vmatprep.subr.mxu0 0.0
    %2914 = vmatpush1.msra.mxu0 0.0
    %2915 = vmatprep.subr.mxu0 0.0
    %2916 = vmatpush1.msra.mxu0 0.0
    %2917 = vmatprep.subr.mxu0 0.0
    %2918 = vmatpush1.msra.mxu0 0.0
    %2919 = vmatprep.subr.mxu0 0.0
    %2920 = vmatpush1.msra.mxu0 0.0
    %2921 = vmatprep.subr.mxu0 0.0
    %2922 = vmatpush1.msra.mxu0 0.0
    %2923 = vmatprep.subr.mxu0 0.0
    %2924 = vmatpush1.msra.mxu0 0.0
    %2925 = vmatprep.subr.mxu0 0.0
    %2926 = vmatpush1.msra.mxu0 0.0
    %2927 = vmatprep.subr.mxu0 0.0
    %2928 = vmatpush1.msra.mxu0 0.0
    %2929 = vmatprep.subr.mxu0 0.0
    %2930 = vmatpush1.msra.mxu0 0.0
    %2931 = vmatprep.subr.mxu0 0.0
    %2932 = vmatpush1.msra.mxu0 0.0
    %2933 = vmatprep.subr.mxu0 0.0
    %2934 = vmatpush1.msra.mxu0 0.0
    %2935 = vmatprep.subr.mxu0 0.0
    %2936 = vmatpush1.msra.mxu0 0.0
    %2937 = vmatprep.subr.mxu0 0.0
    %2938 = vmatpush1.msra.mxu0 0.0
    %2939 = vmatprep.subr.mxu0 0.0
    %2940 = vmatpush1.msra.mxu0 %v1859
    %2941 = vmatprep.subr.mxu0 0.0
    %2942 = vmatpush2.msra.mxu0 0.0
    %2943 = vmatprep.subr.mxu0 0.0
    %2944 = vmatpush2.msra.mxu0 0.0
    %2945 = vmatprep.subr.mxu0 0.0
    %2946 = vmatpush2.msra.mxu0 0.0
    %2947 = vmatprep.subr.mxu0 0.0
    %2948 = vmatpush2.msra.mxu0 0.0
    %2949 = vmatprep.subr.mxu0 0.0
    %2950 = vmatpush2.msra.mxu0 0.0
    %2951 = vmatprep.subr.mxu0 0.0
    %2952 = vmatpush2.msra.mxu0 0.0
    %2953 = vmatprep.subr.mxu0 0.0
    %2954 = vmatpush2.msra.mxu0 0.0
    %2955 = vmatprep.subr.mxu0 0.0
    %2956 = vmatpush2.msra.mxu0 0.0
    %2957 = vmatprep.subr.mxu0 0.0
    %2958 = vmatpush2.msra.mxu0 0.0
    %2959 = vmatprep.subr.mxu0 0.0
    %2960 = vmatpush2.msra.mxu0 0.0
    %2961 = vmatprep.subr.mxu0 0.0
    %2962 = vmatpush2.msra.mxu0 0.0
    %2963 = vmatprep.subr.mxu0 0.0
    %2964 = vmatpush2.msra.mxu0 0.0
    %2965 = vmatprep.subr.mxu0 0.0
    %2966 = vmatpush2.msra.mxu0 0.0
    %2967 = vmatprep.subr.mxu0 0.0
    %2968 = vmatpush2.msra.mxu0 0.0
    %2969 = vmatprep.subr.mxu0 0.0
    %2970 = vmatpush2.msra.mxu0 0.0
    %2971 = vmatprep.subr.mxu0 0.0
    %2972 = vmatpush2.msra.mxu0 0.0
    %2973 = vmatprep.mubr.f32.mxu0 0.0
    %2974 = vmatmul.mubr.f32.gmra.mxu0 %v2904
    %v2975 = vpop.f32.mrf.mxu0
    %v2976 = vadd.f32 0.0, %v2975
    %v2977 = vpop.f32.mrf.mxu0
    %2978 = vmatprep.mubr.f32.mxu0 0.0
    %2979 = vmatmul.mubr.f32.gmra.mxu0 %v2907
    %v2980 = vpop.f32.mrf.mxu0
    %v2981 = vadd.f32 0.0, %v2980
    %v2982 = vpop.f32.mrf.mxu0
    %2983 = vdwg.mxu0
    %v2984 = vadd.f32 %v2701, %v2976
    %v2985 = vadd.f32 %v2702, %v2981
    %s2986 = scalar_lea.vmem [#allocation10], 1
    %v2987 = vld [vmem:[%s2986] sm:$0x1]
    %v2989 = vlaneseq
    %v2990 = vshrl.u32 %v2989, 7
    %v2991 = vsub.s32 0, %v2990
    %v2992 = vrot.slane %v2987, %v2991
    %v2994 = vadd.f32 %v2984, %v2992
    %v2995 = vadd.f32 %v2985, %v2992
    %v2996 = vadd.f32 %v1759, %v2994
    %v2997 = vadd.f32 %v1760, %v2995
    %s2998 = scalar_lea.vmem [#allocation11], 1
    %v2999 = vld [vmem:[%s2998] sm:$0x1]
    %s3000 = scalar_lea.vmem %s10, 1
    %v3001 = vld [vmem:[%s3000] sm:$0x1]
    %v3002 = vsel %vm254, %v2996, 0.0
    %3003 = vadd.xlane.f32.xlu0 %v3002
    %v3004 = vpop.xlane.xlu0 %3003
    %v3005 = vsel %vm254, %v2997, 0.0
    %3006 = vadd.xlane.f32.xlu0 %v3005
    %v3007 = vpop.xlane.xlu0 %3006
    %v3008 = vmul.f32 %v3004, %v1487
    %v3009 = vmul.f32 %v3007, %v1487
    %v3010 = vsub.f32 %v2996, %v3008
    %v3011 = vsub.f32 %v2997, %v3009
    %v3012 = vmul.f32 %v3010, %v3010
    %v3013 = vmul.f32 %v3011, %v3011
    %v3014 = vsel %vm254, %v3012, 0.0
    %3015 = vadd.xlane.f32.xlu0 %v3014
    %v3016 = vpop.xlane.xlu0 %3015
    %v3017 = vsel %vm254, %v3013, 0.0
    %3018 = vadd.xlane.f32.xlu0 %v3017
    %v3019 = vpop.xlane.xlu0 %3018
    %v3020 = vmul.f32 %v3016, %v1487
    %v3021 = vmul.f32 %v3019, %v1487
    %v3022 = vadd.f32 %v3020, 1e-05
    %v3023 = vadd.f32 %v3021, 1e-05
    %v3024 = vrsqrt.pop %v3022
    %v3025 = vrsqrt.pop %v3023
    %v3026 = vmul.f32 %v3010, %v3024
    %v3027 = vmul.f32 %v3011, %v3025
    %v3029 = vlaneseq
    %v3030 = vshrl.u32 %v3029, 7
    %v3031 = vsub.s32 0, %v3030
    %v3032 = vrot.slane %v2999, %v3031
    %v3034 = vmul.f32 %v3026, %v3032
    %v3035 = vmul.f32 %v3027, %v3032
    %v3037 = vlaneseq
    %v3038 = vshrl.u32 %v3037, 7
    %v3039 = vsub.s32 0, %v3038
    %v3040 = vrot.slane %v3001, %v3039
    %v3042 = vadd.f32 %v3034, %v3040
    %v3043 = vadd.f32 %v3035, %v3040
    %s3044 = scalar_lea.vmem %s13, 32
    %v3045 = vld [vmem:[%s3044] sm:$0xff]
    %v3046 = vld [vmem:[%s3044 + $0x8] sm:$0xff]
    %v3047 = vld [vmem:[%s3044 + $0x10] sm:$0xff]
    %v3048 = vld [vmem:[%s3044 + $0x18] sm:$0xff]
    %s3049 = scalar_lea.vmem %s14, 1
    %v3050 = vld [vmem:[%s3049] sm:$0x1]
    %v3052 = vlaneseq
    %v3053 = vshrl.u32 %v3052, 7
    %v3054 = vsub.s32 0, %v3053
    %v3055 = vrot.slane %v3050, %v3054
    %v3058 = vsel %vm254, %v3042, 0
    %v3061 = vsel %vm254, %v3043, 0
    %3063 = vmatprep.subr.mxu0 0.0
    %3064 = vmatpush1.msra.mxu0 0.0
    %3065 = vmatprep.subr.mxu0 0.0
    %3066 = vmatpush1.msra.mxu0 0.0
    %3067 = vmatprep.subr.mxu0 0.0
    %3068 = vmatpush1.msra.mxu0 0.0
    %3069 = vmatprep.subr.mxu0 0.0
    %3070 = vmatpush1.msra.mxu0 0.0
    %3071 = vmatprep.subr.mxu0 0.0
    %3072 = vmatpush1.msra.mxu0 0.0
    %3073 = vmatprep.subr.mxu0 0.0
    %3074 = vmatpush1.msra.mxu0 0.0
    %3075 = vmatprep.subr.mxu0 0.0
    %3076 = vmatpush1.msra.mxu0 0.0
    %3077 = vmatprep.subr.mxu0 0.0
    %3078 = vmatpush1.msra.mxu0 0.0
    %3079 = vmatprep.subr.mxu0 0.0
    %3080 = vmatpush1.msra.mxu0 0.0
    %3081 = vmatprep.subr.mxu0 0.0
    %3082 = vmatpush1.msra.mxu0 0.0
    %3083 = vmatprep.subr.mxu0 0.0
    %3084 = vmatpush1.msra.mxu0 0.0
    %3085 = vmatprep.subr.mxu0 0.0
    %3086 = vmatpush1.msra.mxu0 0.0
    %3087 = vmatprep.subr.mxu0 0.0
    %3088 = vmatpush1.msra.mxu0 %v3048
    %3089 = vmatprep.subr.mxu0 0.0
    %3090 = vmatpush1.msra.mxu0 %v3047
    %3091 = vmatprep.subr.mxu0 0.0
    %3092 = vmatpush1.msra.mxu0 %v3046
    %3093 = vmatprep.subr.mxu0 0.0
    %3094 = vmatpush1.msra.mxu0 %v3045
    %3095 = vmatprep.subr.mxu0 0.0
    %3096 = vmatpush2.msra.mxu0 0.0
    %3097 = vmatprep.subr.mxu0 0.0
    %3098 = vmatpush2.msra.mxu0 0.0
    %3099 = vmatprep.subr.mxu0 0.0
    %3100 = vmatpush2.msra.mxu0 0.0
    %3101 = vmatprep.subr.mxu0 0.0
    %3102 = vmatpush2.msra.mxu0 0.0
    %3103 = vmatprep.subr.mxu0 0.0
    %3104 = vmatpush2.msra.mxu0 0.0
    %3105 = vmatprep.subr.mxu0 0.0
    %3106 = vmatpush2.msra.mxu0 0.0
    %3107 = vmatprep.subr.mxu0 0.0
    %3108 = vmatpush2.msra.mxu0 0.0
    %3109 = vmatprep.subr.mxu0 0.0
    %3110 = vmatpush2.msra.mxu0 0.0
    %3111 = vmatprep.subr.mxu0 0.0
    %3112 = vmatpush2.msra.mxu0 0.0
    %3113 = vmatprep.subr.mxu0 0.0
    %3114 = vmatpush2.msra.mxu0 0.0
    %3115 = vmatprep.subr.mxu0 0.0
    %3116 = vmatpush2.msra.mxu0 0.0
    %3117 = vmatprep.subr.mxu0 0.0
    %3118 = vmatpush2.msra.mxu0 0.0
    %3119 = vmatprep.subr.mxu0 0.0
    %3120 = vmatpush2.msra.mxu0 0.0
    %3121 = vmatprep.subr.mxu0 0.0
    %3122 = vmatpush2.msra.mxu0 0.0
    %3123 = vmatprep.subr.mxu0 0.0
    %3124 = vmatpush2.msra.mxu0 0.0
    %3125 = vmatprep.subr.mxu0 0.0
    %3126 = vmatpush2.msra.mxu0 0.0
    %3127 = vmatprep.mubr.f32.mxu0 0.0
    %3128 = vmatmul.mubr.f32.gmra.mxu0 %v3058
    %v3129 = vpop.f32.mrf.mxu0
    %v3130 = vadd.f32 %v3055, %v3129
    %v3131 = vpop.f32.mrf.mxu0
    %3132 = vmatprep.mubr.f32.mxu0 0.0
    %3133 = vmatmul.mubr.f32.gmra.mxu0 %v3061
    %v3134 = vpop.f32.mrf.mxu0
    %v3135 = vadd.f32 %v3055, %v3134
    %v3136 = vpop.f32.mrf.mxu0
    %3137 = vdwg.mxu0
    %v3138 = vmax.f32 %v3130, 0.0
    %v3139 = vmax.f32 %v3135, 0.0
    %s3140 = scalar_lea.vmem %s15, 64
    %v3141 = vld [vmem:[%s3140] sm:$0xff]
    %v3142 = vld [vmem:[%s3140 + $0x8] sm:$0xff]
    %v3143 = vld [vmem:[%s3140 + $0x10] sm:$0xff]
    %v3144 = vld [vmem:[%s3140 + $0x18] sm:$0xff]
    %v3145 = vld [vmem:[%s3140 + $0x20] sm:$0xff]
    %v3146 = vld [vmem:[%s3140 + $0x28] sm:$0xff]
    %v3147 = vld [vmem:[%s3140 + $0x30] sm:$0xff]
    %v3148 = vld [vmem:[%s3140 + $0x38] sm:$0xff]
    %s3149 = scalar_lea.vmem %s16, 1
    %v3150 = vld [vmem:[%s3149] sm:$0x1]
    %v3152 = vlaneseq
    %v3153 = vshrl.u32 %v3152, 7
    %v3154 = vsub.s32 0, %v3153
    %v3155 = vrot.slane %v3150, %v3154
    %v3158 = vsel %vm1633, %v3138, 0
    %v3161 = vsel %vm1633, %v3139, 0
    %3163 = vmatprep.subr.mxu0 0.0
    %3164 = vmatpush1.msra.mxu0 0.0
    %3165 = vmatprep.subr.mxu0 0.0
    %3166 = vmatpush1.msra.mxu0 0.0
    %3167 = vmatprep.subr.mxu0 0.0
    %3168 = vmatpush1.msra.mxu0 0.0
    %3169 = vmatprep.subr.mxu0 0.0
    %3170 = vmatpush1.msra.mxu0 0.0
    %3171 = vmatprep.subr.mxu0 0.0
    %3172 = vmatpush1.msra.mxu0 0.0
    %3173 = vmatprep.subr.mxu0 0.0
    %3174 = vmatpush1.msra.mxu0 0.0
    %3175 = vmatprep.subr.mxu0 0.0
    %3176 = vmatpush1.msra.mxu0 0.0
    %3177 = vmatprep.subr.mxu0 0.0
    %3178 = vmatpush1.msra.mxu0 0.0
    %3179 = vmatprep.subr.mxu0 0.0
    %3180 = vmatpush1.msra.mxu0 %v3148
    %3181 = vmatprep.subr.mxu0 0.0
    %3182 = vmatpush1.msra.mxu0 %v3147
    %3183 = vmatprep.subr.mxu0 0.0
    %3184 = vmatpush1.msra.mxu0 %v3146
    %3185 = vmatprep.subr.mxu0 0.0
    %3186 = vmatpush1.msra.mxu0 %v3145
    %3187 = vmatprep.subr.mxu0 0.0
    %3188 = vmatpush1.msra.mxu0 %v3144
    %3189 = vmatprep.subr.mxu0 0.0
    %3190 = vmatpush1.msra.mxu0 %v3143
    %3191 = vmatprep.subr.mxu0 0.0
    %3192 = vmatpush1.msra.mxu0 %v3142
    %3193 = vmatprep.subr.mxu0 0.0
    %3194 = vmatpush1.msra.mxu0 %v3141
    %3195 = vmatprep.subr.mxu0 0.0
    %3196 = vmatpush2.msra.mxu0 0.0
    %3197 = vmatprep.subr.mxu0 0.0
    %3198 = vmatpush2.msra.mxu0 0.0
    %3199 = vmatprep.subr.mxu0 0.0
    %3200 = vmatpush2.msra.mxu0 0.0
    %3201 = vmatprep.subr.mxu0 0.0
    %3202 = vmatpush2.msra.mxu0 0.0
    %3203 = vmatprep.subr.mxu0 0.0
    %3204 = vmatpush2.msra.mxu0 0.0
    %3205 = vmatprep.subr.mxu0 0.0
    %3206 = vmatpush2.msra.mxu0 0.0
    %3207 = vmatprep.subr.mxu0 0.0
    %3208 = vmatpush2.msra.mxu0 0.0
    %3209 = vmatprep.subr.mxu0 0.0
    %3210 = vmatpush2.msra.mxu0 0.0
    %3211 = vmatprep.subr.mxu0 0.0
    %3212 = vmatpush2.msra.mxu0 0.0
    %3213 = vmatprep.subr.mxu0 0.0
    %3214 = vmatpush2.msra.mxu0 0.0
    %3215 = vmatprep.subr.mxu0 0.0
    %3216 = vmatpush2.msra.mxu0 0.0
    %3217 = vmatprep.subr.mxu0 0.0
    %3218 = vmatpush2.msra.mxu0 0.0
    %3219 = vmatprep.subr.mxu0 0.0
    %3220 = vmatpush2.msra.mxu0 0.0
    %3221 = vmatprep.subr.mxu0 0.0
    %3222 = vmatpush2.msra.mxu0 0.0
    %3223 = vmatprep.subr.mxu0 0.0
    %3224 = vmatpush2.msra.mxu0 0.0
    %3225 = vmatprep.subr.mxu0 0.0
    %3226 = vmatpush2.msra.mxu0 0.0
    %3227 = vmatprep.mubr.f32.mxu0 0.0
    %3228 = vmatmul.mubr.f32.gmra.mxu0 %v3158
    %v3229 = vpop.f32.mrf.mxu0
    %v3230 = vadd.f32 %v3155, %v3229
    %v3231 = vpop.f32.mrf.mxu0
    %3232 = vmatprep.mubr.f32.mxu0 0.0
    %3233 = vmatmul.mubr.f32.gmra.mxu0 %v3161
    %v3234 = vpop.f32.mrf.mxu0
    %v3235 = vadd.f32 %v3155, %v3234
    %v3236 = vpop.f32.mrf.mxu0
    %3237 = vdwg.mxu0
    %v3238 = vadd.f32 %v3042, %v3230
    %v3239 = vadd.f32 %v3043, %v3235
    %s3240 = scalar_lea.vmem %s11, 1
    %v3241 = vld [vmem:[%s3240] sm:$0x1]
    %s3242 = scalar_lea.vmem %s12, 1
    %v3243 = vld [vmem:[%s3242] sm:$0x1]
    %v3244 = vsel %vm254, %v3238, 0.0
    %3245 = vadd.xlane.f32.xlu0 %v3244
    %v3246 = vpop.xlane.xlu0 %3245
    %v3247 = vsel %vm254, %v3239, 0.0
    %3248 = vadd.xlane.f32.xlu0 %v3247
    %v3249 = vpop.xlane.xlu0 %3248
    %v3250 = vmul.f32 %v3246, %v1487
    %v3251 = vmul.f32 %v3249, %v1487
    %v3252 = vsub.f32 %v3238, %v3250
    %v3253 = vsub.f32 %v3239, %v3251
    %v3254 = vmul.f32 %v3252, %v3252
    %v3255 = vmul.f32 %v3253, %v3253
    %v3256 = vsel %vm254, %v3254, 0.0
    %3257 = vadd.xlane.f32.xlu0 %v3256
    %v3258 = vpop.xlane.xlu0 %3257
    %v3259 = vsel %vm254, %v3255, 0.0
    %3260 = vadd.xlane.f32.xlu0 %v3259
    %v3261 = vpop.xlane.xlu0 %3260
    %v3262 = vmul.f32 %v3258, %v1487
    %v3263 = vmul.f32 %v3261, %v1487
    %v3264 = vadd.f32 %v3262, 1e-05
    %v3265 = vadd.f32 %v3263, 1e-05
    %v3266 = vrsqrt.pop %v3264
    %v3267 = vrsqrt.pop %v3265
    %v3268 = vmul.f32 %v3252, %v3266
    %v3269 = vmul.f32 %v3253, %v3267
    %v3271 = vlaneseq
    %v3272 = vshrl.u32 %v3271, 7
    %v3273 = vsub.s32 0, %v3272
    %v3274 = vrot.slane %v3241, %v3273
    %v3276 = vmul.f32 %v3268, %v3274
    %v3277 = vmul.f32 %v3269, %v3274
    %v3279 = vlaneseq
    %v3280 = vshrl.u32 %v3279, 7
    %v3281 = vsub.s32 0, %v3280
    %v3282 = vrot.slane %v3243, %v3281
    %v3284 = vadd.f32 %v3276, %v3282
    %v3285 = vadd.f32 %v3277, %v3282
    %v3286 = vld [vmem:[%s17] sm:$0xff]
    %v3287 = vld [vmem:[%s17 + $0x8] sm:$0xff]
    %v3288 = vld [vmem:[%s17 + $0x10] sm:$0xff]
    %v3289 = vld [vmem:[%s17 + $0x18] sm:$0xff]
    %v3290 = vld [vmem:[%s18] sm:$0x1]
    %v3292 = vlaneseq
    %v3293 = vshrl.u32 %v3292, 7
    %v3294 = vsub.s32 0, %v3293
    %v3295 = vrot.slane %v3290, %v3294
    %v3298 = vsel %vm254, %v3284, 0
    %v3301 = vsel %vm254, %v3285, 0
    %3303 = vmatprep.subr.mxu0 0.0
    %3304 = vmatpush1.msra.mxu0 0.0
    %3305 = vmatprep.subr.mxu0 0.0
    %3306 = vmatpush1.msra.mxu0 0.0
    %3307 = vmatprep.subr.mxu0 0.0
    %3308 = vmatpush1.msra.mxu0 0.0
    %3309 = vmatprep.subr.mxu0 0.0
    %3310 = vmatpush1.msra.mxu0 0.0
    %3311 = vmatprep.subr.mxu0 0.0
    %3312 = vmatpush1.msra.mxu0 0.0
    %3313 = vmatprep.subr.mxu0 0.0
    %3314 = vmatpush1.msra.mxu0 0.0
    %3315 = vmatprep.subr.mxu0 0.0
    %3316 = vmatpush1.msra.mxu0 0.0
    %3317 = vmatprep.subr.mxu0 0.0
    %3318 = vmatpush1.msra.mxu0 0.0
    %3319 = vmatprep.subr.mxu0 0.0
    %3320 = vmatpush1.msra.mxu0 0.0
    %3321 = vmatprep.subr.mxu0 0.0
    %3322 = vmatpush1.msra.mxu0 0.0
    %3323 = vmatprep.subr.mxu0 0.0
    %3324 = vmatpush1.msra.mxu0 0.0
    %3325 = vmatprep.subr.mxu0 0.0
    %3326 = vmatpush1.msra.mxu0 0.0
    %3327 = vmatprep.subr.mxu0 0.0
    %3328 = vmatpush1.msra.mxu0 %v3289
    %3329 = vmatprep.subr.mxu0 0.0
    %3330 = vmatpush1.msra.mxu0 %v3288
    %3331 = vmatprep.subr.mxu0 0.0
    %3332 = vmatpush1.msra.mxu0 %v3287
    %3333 = vmatprep.subr.mxu0 0.0
    %3334 = vmatpush1.msra.mxu0 %v3286
    %3335 = vmatprep.subr.mxu0 0.0
    %3336 = vmatpush2.msra.mxu0 0.0
    %3337 = vmatprep.subr.mxu0 0.0
    %3338 = vmatpush2.msra.mxu0 0.0
    %3339 = vmatprep.subr.mxu0 0.0
    %3340 = vmatpush2.msra.mxu0 0.0
    %3341 = vmatprep.subr.mxu0 0.0
    %3342 = vmatpush2.msra.mxu0 0.0
    %3343 = vmatprep.subr.mxu0 0.0
    %3344 = vmatpush2.msra.mxu0 0.0
    %3345 = vmatprep.subr.mxu0 0.0
    %3346 = vmatpush2.msra.mxu0 0.0
    %3347 = vmatprep.subr.mxu0 0.0
    %3348 = vmatpush2.msra.mxu0 0.0
    %3349 = vmatprep.subr.mxu0 0.0
    %3350 = vmatpush2.msra.mxu0 0.0
    %3351 = vmatprep.subr.mxu0 0.0
    %3352 = vmatpush2.msra.mxu0 0.0
    %3353 = vmatprep.subr.mxu0 0.0
    %3354 = vmatpush2.msra.mxu0 0.0
    %3355 = vmatprep.subr.mxu0 0.0
    %3356 = vmatpush2.msra.mxu0 0.0
    %3357 = vmatprep.subr.mxu0 0.0
    %3358 = vmatpush2.msra.mxu0 0.0
    %3359 = vmatprep.subr.mxu0 0.0
    %3360 = vmatpush2.msra.mxu0 0.0
    %3361 = vmatprep.subr.mxu0 0.0
    %3362 = vmatpush2.msra.mxu0 0.0
    %3363 = vmatprep.subr.mxu0 0.0
    %3364 = vmatpush2.msra.mxu0 0.0
    %3365 = vmatprep.subr.mxu0 0.0
    %3366 = vmatpush2.msra.mxu0 0.0
    %3367 = vmatprep.mubr.f32.mxu0 0.0
    %3368 = vmatmul.mubr.f32.gmra.mxu0 %v3298
    %v3369 = vpop.f32.mrf.mxu0
    %v3370 = vadd.f32 %v3295, %v3369
    %v3371 = vpop.f32.mrf.mxu0
    %3372 = vmatprep.mubr.f32.mxu0 0.0
    %3373 = vmatmul.mubr.f32.gmra.mxu0 %v3301
    %v3374 = vpop.f32.mrf.mxu0
    %v3375 = vadd.f32 %v3295, %v3374
    %v3376 = vpop.f32.mrf.mxu0
    %3377 = vdwg.mxu0
    %3378 = vst [vmem:[#allocation13] sm:$0xff] %v3370
    %3379 = vst [vmem:[#allocation13 + $0x8] sm:$0xff] %v3375
    // Predicated region
    $region102: #{tpu_custom_call.1} parent=1 // pred_check
      _
    $region103: #{tpu_custom_call.1} parent=1 // pred_check_branch
      %3381 = sbr.rel (0) target = $region105
    $region104: #{tpu_custom_call.1} parent=1 // pred_region
      %s3383 = ssub.s32 256, 256
      %3384 = vsyncadd [#allocation4], %s3383
      %s3385 = sshll.u32 [#allocation13], 4
      %s3386 = int_to_ptr.vmem [resolvable:$true] %s3385
      %3391 = dma.vmem_to_hbm [thread:$0]  %s3386, 256, %s19, [#allocation4], 128, 128, 8
    $region105: #{tpu_custom_call.1} parent=1 // pred_fallthru
      _
    // Predicated region
    $region106: #{tpu_custom_call.1} parent=1 // pred_check
      _
    $region107: #{tpu_custom_call.1} parent=1 // pred_check_branch
      %3393 = sbr.rel (0) target = $region109
    $region108: #{tpu_custom_call.1} parent=1 // pred_region
      %3394 = dma.done [#allocation4], 256
    $region109: #{tpu_custom_call.1} parent=1 // pred_fallthru
      _
    %3395 = vsyncpa [#allocation3], 1
    %3396 = vsyncpa [#allocation6], 1
    %3397 = vsyncpa [#allocation9], 1
    %3398 = vsyncpa [#allocation12], 1
    %3399 = vsyncpa [#allocation4], 1

</llo_original>
